<compile_context>
chip_gen: v6e
topology: v6e:2x2x1
jax: 0.10.0
libtpu: 0.0.40
codegen_flags: <defaults>
</compile_context>

<pallas_src>
import functools
import math

import numpy as np
import jax
import jax.numpy as jnp
from jax.experimental import pallas as pl
from jax.experimental.pallas import tpu as pltpu


# ----------------------------------------------------------------------------
# Single fused Pallas kernel: the whole L0Layer forward on (N*H, W*C) layout.
# ----------------------------------------------------------------------------
def _l0layer_kernel(x_ref, wds_ref, w1_ref, w2_ref, w3_ref, w4_ref,
                    sup_ref, sdn_ref, chan_ref, bn_ref, gates_ref, o_ref,
                    *, m, eps):
    # x_ref     : (N*H, W*Cin)     lane-dense input (lane j = w*Cin + cin)
    # wds_ref   : (W*Cin, W*C)     1x1 downsample weight, block-diagonal
    # w1..w4_ref: (3, W*Cin, W*C)  per-kh block-tridiagonal 3x3 conv weights
    # sup_ref   : (N*H, N*H)       row-shift matrix: picks row r-1 (0 at h==0)
    # sdn_ref   : (N*H, N*H)       row-shift matrix: picks row r+1 (0 at h==H-1)
    # chan_ref  : (W*C, W*C)       channel selector: 1 where lane%C matches
    # bn_ref    : (5, 2, W*C)      lane-expanded [gamma; beta] (ds, bn1..bn4)
    # gates_ref : (3, W*C)         lane-expanded [gate1, main, gate2] masks
    # o_ref     : (N*H, W*C)       lane-dense output
    inv_m = 1.0 / m

    def conv3x3(y, w_ref):
        # 3x3 conv = 5 MXU dots: two constant row-shift matmuls (kh = 0, 2)
        # plus three full-width weight matmuls (kw taps + L/R zero padding are
        # folded into the block-tridiagonal weights).
        y_up = jnp.dot(sup_ref[...], y, preferred_element_type=jnp.float32)
        y_dn = jnp.dot(sdn_ref[...], y, preferred_element_type=jnp.float32)
        acc = jnp.dot(y_up, w_ref[0], preferred_element_type=jnp.float32)
        acc = acc + jnp.dot(y, w_ref[1], preferred_element_type=jnp.float32)
        acc = acc + jnp.dot(y_dn, w_ref[2], preferred_element_type=jnp.float32)
        return acc

    def bn_act(y, i, residual=None, relu=True, gate=None):
        # Train-mode BatchNorm2d over N*H*W (biased variance), folded into one
        # scale + shift.  Per-channel sums via the channel-selector matmul so
        # everything stays 128 lanes wide; conv bias omitted — train-mode BN
        # cancels it exactly.
        p1 = jnp.dot(y, chan_ref[...], preferred_element_type=jnp.float32)
        p2 = jnp.dot(y * y, chan_ref[...], preferred_element_type=jnp.float32)
        mean = jnp.sum(p1, axis=0, keepdims=True) * inv_m
        ex2 = jnp.sum(p2, axis=0, keepdims=True) * inv_m
        var = jnp.maximum(ex2 - mean * mean, 0.0)
        scale = bn_ref[i, 0] * jax.lax.rsqrt(var + eps)
        shift = bn_ref[i, 1] - mean * scale
        y = y * scale + shift
        if residual is not None:
            y = y + residual
        if relu:
            y = jnp.maximum(y, 0.0)
        if gate is not None:
            y = y * gate                      # per-channel L0 gate (lane-expanded)
        return y

    x = x_ref[...]

    # identity = ds_bn(ds_conv(x))            (1x1 conv, stride 1, no pad)
    identity = bn_act(
        jnp.dot(x, wds_ref[...], preferred_element_type=jnp.float32),
        0, relu=False)

    # h = gate1 * relu(bn1(conv1(x)))
    h = bn_act(conv3x3(x, w1_ref), 1, gate=gates_ref[0])

    # h = main * relu(bn2(conv2(h)) + identity);   identity = h
    h = bn_act(conv3x3(h, w2_ref), 2, residual=identity, gate=gates_ref[1])
    identity = h

    # h = gate2 * relu(bn3(conv3(h)))
    h = bn_act(conv3x3(h, w3_ref), 3, gate=gates_ref[2])

    # out = main * relu(bn4(conv4(h)) + identity)
    h = bn_act(conv3x3(h, w4_ref), 4, residual=identity, gate=gates_ref[1])

    o_ref[...] = h.astype(o_ref.dtype)


def _full_spec(shape):
    return pl.BlockSpec(shape, lambda *_: (0,) * len(shape))


# ----------------------------------------------------------------------------
# L0 gate mask (L0GateLayer.mask) — tiny per-channel op computed in glue;
# application over full tensors is fused into the kernel.
# ----------------------------------------------------------------------------
def l0_gate_mask(key, loc, *, temp=2.0 / 3.0, gamma=-0.1, zeta=1.1):
    u = jax.random.uniform(key, loc.shape, dtype=jnp.float32,
                           minval=1e-6, maxval=1.0 - 1e-6)
    s = jax.nn.sigmoid((jnp.log(u) - jnp.log1p(-u) + loc) / temp)
    s = s * (zeta - gamma) + gamma
    return jnp.clip(s, 0.0, 1.0)              # hard_sigmoid


# ----------------------------------------------------------------------------
# Host-side folding of conv weights / shift matrices into lane-dense matmuls.
# ----------------------------------------------------------------------------
def _fold_conv3x3_weight(w_hwio, width):
    """(3,3,cin,cout) HWIO -> (3, width*cin, width*cout) block-tridiagonal
    matrices (one per kh tap); kw shift + left/right zero-pad folded in."""
    _, _, cin, cout = w_hwio.shape
    mats = []
    for kh in range(3):
        acc = jnp.zeros((width * cin, width * cout), jnp.float32)
        for kw in range(3):
            dw = kw - 1
            sel = np.zeros((width, width), np.float32)
            for w in range(width):
                if 0 <= w + dw < width:
                    sel[w + dw, w] = 1.0      # output col w reads input col w+dw
            acc = acc + jnp.kron(jnp.asarray(sel), w_hwio[kh, kw])
        mats.append(acc)
    return jnp.stack(mats)


def _fold_conv1x1_weight(w_1x1, width):
    return jnp.kron(jnp.eye(width, dtype=jnp.float32), w_1x1)


def _row_shift_matrices(n, h):
    """Constant (N*H, N*H) matrices: pick the row above / below within an
    image; zero at the image edge and across image boundaries."""
    nh = n * h
    sup = np.zeros((nh, nh), np.float32)
    sdn = np.zeros((nh, nh), np.float32)
    for r in range(nh):
        if r % h != 0:
            sup[r, r - 1] = 1.0
        if r % h != h - 1:
            sdn[r, r + 1] = 1.0
    return jnp.asarray(sup), jnp.asarray(sdn)


def _channel_selector(width, c):
    lanes = width * c
    j = np.arange(lanes)
    return jnp.asarray((j[:, None] % c == j[None, :] % c).astype(np.float32))


# ----------------------------------------------------------------------------
# Parameter construction (concat_middle_conv / concat_batch_norm semantics).
# Conv biases are not materialized: every conv feeds a train-mode BatchNorm,
# which cancels the bias exactly.
# ----------------------------------------------------------------------------
def init_concat_conv(key, half_in, half_out, kh, kw):
    """Block-diagonal concatenated conv weight, HWIO layout."""
    k1, k2 = jax.random.split(key)
    bound = 1.0 / math.sqrt(half_in * kh * kw)
    w1 = jax.random.uniform(k1, (half_out, half_in, kh, kw),
                            minval=-bound, maxval=bound)
    w2 = jax.random.uniform(k2, (half_out, half_in, kh, kw),
                            minval=-bound, maxval=bound)
    w = jnp.zeros((2 * half_out, 2 * half_in, kh, kw), jnp.float32)
    w = w.at[:half_out, :half_in].set(w1)      # layer1 block
    w = w.at[half_out:, half_in:].set(w2)      # layer2 block
    return jnp.transpose(w, (2, 3, 1, 0)).astype(jnp.float32)   # OIHW -> HWIO


def init_concat_bn(key, planes):
    k1, k2 = jax.random.split(key)
    gamma = 1.0 + 0.1 * jax.random.normal(k1, (planes,), jnp.float32)
    beta = 0.1 * jax.random.normal(k2, (planes,), jnp.float32)
    return gamma, beta


# ----------------------------------------------------------------------------
# L0Layer.forward — one fused pallas_call on the lane-dense layout.
# ----------------------------------------------------------------------------
def l0layer_forward(x_nhwc, params, mask_key, eps=1e-5):
    N, H, W, Cin = x_nhwc.shape
    C = params["main_loc"].shape[0]
    NH = N * H

    k_main, k_g1, k_g2 = jax.random.split(mask_key, 3)
    gates_c = jnp.stack([
        l0_gate_mask(k_g1, params["gate1_loc"]),
        l0_gate_mask(k_main, params["main_loc"]),
        l0_gate_mask(k_g2, params["gate2_loc"]),
    ], axis=0).astype(jnp.float32)                       # (3, C)
    gates = jnp.tile(gates_c, (1, W))                    # (3, W*C) lane-expanded

    bn_c = jnp.stack([
        jnp.stack([params["ds_gamma"], params["ds_beta"]]),
        jnp.stack([params["gamma1"], params["beta1"]]),
        jnp.stack([params["gamma2"], params["beta2"]]),
        jnp.stack([params["gamma3"], params["beta3"]]),
        jnp.stack([params["gamma4"], params["beta4"]]),
    ], axis=0).astype(jnp.float32)                       # (5, 2, C)
    bn = jnp.tile(bn_c, (1, 1, W))                       # (5, 2, W*C)

    wds = _fold_conv1x1_weight(params["ds_w"].reshape(Cin, C), W)
    w1 = _fold_conv3x3_weight(params["w1"], W)
    w2 = _fold_conv3x3_weight(params["w2"], W)
    w3 = _fold_conv3x3_weight(params["w3"], W)
    w4 = _fold_conv3x3_weight(params["w4"], W)
    sup, sdn = _row_shift_matrices(N, H)
    chan = _channel_selector(W, C)

    x2d = x_nhwc.reshape(NH, W * Cin)                    # lane-dense (32, 128)

    kernel = functools.partial(_l0layer_kernel, m=N * H * W, eps=eps)
    out2d = pl.pallas_call(
        kernel,
        out_shape=jax.ShapeDtypeStruct((NH, W * C), jnp.float32),
        grid=(1,),
        in_specs=[
            _full_spec((NH, W * Cin)),
            _full_spec((W * Cin, W * C)),
            _full_spec((3, W * Cin, W * C)),
            _full_spec((3, W * C, W * C)),
            _full_spec((3, W * C, W * C)),
            _full_spec((3, W * C, W * C)),
            _full_spec((NH, NH)),
            _full_spec((NH, NH)),
            _full_spec((W * C, W * C)),
            _full_spec((5, 2, W * C)),
            _full_spec((3, W * C)),
        ],
        out_specs=_full_spec((NH, W * C)),
        compiler_params=pltpu.CompilerParams(
            dimension_semantics=("arbitrary",)),
    )(x2d, wds, w1, w2, w3, w4, sup, sdn, chan, bn, gates)

    return out2d.reshape(N, H, W, C)


if __name__ == "__main__":
    N, H, W = 2, 16, 16
    half_in, half_out = 4, 4
    planes = 2 * half_out            # = layer1.conv1.out_channels * 2
    c_in = 2 * half_in               # input channels of the concatenated block

    root = jax.random.PRNGKey(0)
    keys = jax.random.split(root, 16)

    params = {}
    params["ds_w"] = init_concat_conv(keys[0], half_in, half_out, 1, 1)
    params["ds_gamma"], params["ds_beta"] = init_concat_bn(keys[1], planes)
    params["w1"] = init_concat_conv(keys[2], half_in, half_out, 3, 3)
    params["gamma1"], params["beta1"] = init_concat_bn(keys[3], planes)
    params["w2"] = init_concat_conv(keys[4], half_out, half_out, 3, 3)
    params["gamma2"], params["beta2"] = init_concat_bn(keys[5], planes)
    params["w3"] = init_concat_conv(keys[6], half_out, half_out, 3, 3)
    params["gamma3"], params["beta3"] = init_concat_bn(keys[7], planes)
    params["w4"] = init_concat_conv(keys[8], half_out, half_out, 3, 3)
    params["gamma4"], params["beta4"] = init_concat_bn(keys[9], planes)
    # L0 gate `loc` parameters ~ Normal(loc_mean=1, loc_sd=0.01)
    params["main_loc"] = 1.0 + 0.01 * jax.random.normal(keys[10], (planes,), jnp.float32)
    params["gate1_loc"] = 1.0 + 0.01 * jax.random.normal(keys[11], (planes,), jnp.float32)
    params["gate2_loc"] = 1.0 + 0.01 * jax.random.normal(keys[12], (planes,), jnp.float32)

    # PyTorch-layout input (NCHW), converted to the kernel's NHWC layout.
    x_nchw = jax.random.normal(keys[13], (N, c_in, H, W), jnp.float32)
    x_nhwc = jnp.transpose(x_nchw, (0, 2, 3, 1))

    fwd = jax.jit(l0layer_forward)
    out = fwd(x_nhwc, params, keys[14])
    out = jax.block_until_ready(out)
    assert out.shape == (N, H, W, planes), out.shape
    assert bool(jnp.all(jnp.isfinite(out)))
    print("KERNEL_OK")
</pallas_src>

<mosaic_0001>
module attributes {stable_mosaic.version = 11 : i64} {
  func.func @_l0layer_kernel(%arg0: i32, %arg1: memref<32x128xf32, #tpu.memory_space<vmem>>, %arg2: memref<128x128xf32, #tpu.memory_space<vmem>>, %arg3: memref<3x128x128xf32, #tpu.memory_space<vmem>>, %arg4: memref<3x128x128xf32, #tpu.memory_space<vmem>>, %arg5: memref<3x128x128xf32, #tpu.memory_space<vmem>>, %arg6: memref<3x128x128xf32, #tpu.memory_space<vmem>>, %arg7: memref<32x32xf32, #tpu.memory_space<vmem>>, %arg8: memref<32x32xf32, #tpu.memory_space<vmem>>, %arg9: memref<128x128xf32, #tpu.memory_space<vmem>>, %arg10: memref<5x2x128xf32, #tpu.memory_space<vmem>>, %arg11: memref<3x128xf32, #tpu.memory_space<vmem>>, %arg12: memref<32x128xf32, #tpu.memory_space<vmem>>) attributes {dimension_semantics = [#tpu.dimension_semantics<arbitrary>], iteration_bounds = array<i64: 1>, scalar_prefetch = 0 : i64, scratch_operands = 0 : i64, tpu.core_type = #tpu.core_type<tc>, window_params = [{pipeline_mode = #tpu.pipeline_mode<synchronous>, transform_indices = @transform_0, window_bounds = array<i64: 32, 128>}, {pipeline_mode = #tpu.pipeline_mode<synchronous>, transform_indices = @transform_1, window_bounds = array<i64: 128, 128>}, {pipeline_mode = #tpu.pipeline_mode<synchronous>, transform_indices = @transform_2, window_bounds = array<i64: 3, 128, 128>}, {pipeline_mode = #tpu.pipeline_mode<synchronous>, transform_indices = @transform_3, window_bounds = array<i64: 3, 128, 128>}, {pipeline_mode = #tpu.pipeline_mode<synchronous>, transform_indices = @transform_4, window_bounds = array<i64: 3, 128, 128>}, {pipeline_mode = #tpu.pipeline_mode<synchronous>, transform_indices = @transform_5, window_bounds = array<i64: 3, 128, 128>}, {pipeline_mode = #tpu.pipeline_mode<synchronous>, transform_indices = @transform_6, window_bounds = array<i64: 32, 32>}, {pipeline_mode = #tpu.pipeline_mode<synchronous>, transform_indices = @transform_7, window_bounds = array<i64: 32, 32>}, {pipeline_mode = #tpu.pipeline_mode<synchronous>, transform_indices = @transform_8, window_bounds = array<i64: 128, 128>}, {pipeline_mode = #tpu.pipeline_mode<synchronous>, transform_indices = @transform_9, window_bounds = array<i64: 5, 2, 128>}, {pipeline_mode = #tpu.pipeline_mode<synchronous>, transform_indices = @transform_10, window_bounds = array<i64: 3, 128>}, {pipeline_mode = #tpu.pipeline_mode<synchronous>, transform_indices = @transform_11, window_bounds = array<i64: 32, 128>}]} {
    %c0 = arith.constant 0 : index
    %c0_0 = arith.constant 0 : index
    %0 = vector.load %arg1[%c0, %c0_0] : memref<32x128xf32, #tpu.memory_space<vmem>>, vector<32x128xf32>
    %c0_1 = arith.constant 0 : index
    %c0_2 = arith.constant 0 : index
    %1 = vector.load %arg2[%c0_1, %c0_2] : memref<128x128xf32, #tpu.memory_space<vmem>>, vector<128x128xf32>
    %cst = arith.constant dense<0.000000e+00> : vector<32x128xf32>
    %2 = tpu.matmul %0, %1, %cst {dimension_numbers = #tpu.dot_dimension_numbers<[1], [0], [0], [1], [0, 0, 1, 1], [], []>} : vector<32x128xf32>, vector<128x128xf32>, vector<32x128xf32> -> vector<32x128xf32>
    %c0_3 = arith.constant 0 : index
    %c0_4 = arith.constant 0 : index
    %3 = vector.load %arg9[%c0_3, %c0_4] : memref<128x128xf32, #tpu.memory_space<vmem>>, vector<128x128xf32>
    %cst_5 = arith.constant dense<0.000000e+00> : vector<32x128xf32>
    %4 = tpu.matmul %2, %3, %cst_5 {dimension_numbers = #tpu.dot_dimension_numbers<[1], [0], [0], [1], [0, 0, 1, 1], [], []>} : vector<32x128xf32>, vector<128x128xf32>, vector<32x128xf32> -> vector<32x128xf32>
    %5 = arith.mulf %2, %2 : vector<32x128xf32>
    %c0_6 = arith.constant 0 : index
    %c0_7 = arith.constant 0 : index
    %6 = vector.load %arg9[%c0_6, %c0_7] : memref<128x128xf32, #tpu.memory_space<vmem>>, vector<128x128xf32>
    %cst_8 = arith.constant dense<0.000000e+00> : vector<32x128xf32>
    %7 = tpu.matmul %5, %6, %cst_8 {dimension_numbers = #tpu.dot_dimension_numbers<[1], [0], [0], [1], [0, 0, 1, 1], [], []>} : vector<32x128xf32>, vector<128x128xf32>, vector<32x128xf32> -> vector<32x128xf32>
    %cst_9 = arith.constant dense<0.000000e+00> : vector<128xf32>
    %8 = vector.multi_reduction <add>, %4, %cst_9 [0] : vector<32x128xf32> to vector<128xf32>
    %9 = vector.shape_cast %8 : vector<128xf32> to vector<1x128xf32>
    %cst_10 = arith.constant 0.001953125 : f32
    %10 = vector.broadcast %cst_10 : f32 to vector<1x128xf32>
    %11 = arith.mulf %9, %10 : vector<1x128xf32>
    %cst_11 = arith.constant dense<0.000000e+00> : vector<128xf32>
    %12 = vector.multi_reduction <add>, %7, %cst_11 [0] : vector<32x128xf32> to vector<128xf32>
    %13 = vector.shape_cast %12 : vector<128xf32> to vector<1x128xf32>
    %cst_12 = arith.constant 0.001953125 : f32
    %14 = vector.broadcast %cst_12 : f32 to vector<1x128xf32>
    %15 = arith.mulf %13, %14 : vector<1x128xf32>
    %16 = arith.mulf %11, %11 : vector<1x128xf32>
    %17 = arith.subf %15, %16 : vector<1x128xf32>
    %cst_13 = arith.constant 0.000000e+00 : f32
    %18 = vector.broadcast %cst_13 : f32 to vector<1x128xf32>
    %19 = arith.maximumf %17, %18 : vector<1x128xf32>
    %c0_14 = arith.constant 0 : index
    %c0_15 = arith.constant 0 : index
    %c0_16 = arith.constant 0 : index
    %20 = vector.load %arg10[%c0_14, %c0_15, %c0_16] : memref<5x2x128xf32, #tpu.memory_space<vmem>>, vector<1x1x128xf32>
    %21 = vector.shape_cast %20 : vector<1x1x128xf32> to vector<128xf32>
    %cst_17 = arith.constant 9.99999974E-6 : f32
    %22 = vector.broadcast %cst_17 : f32 to vector<1x128xf32>
    %23 = arith.addf %19, %22 : vector<1x128xf32>
    %24 = math.rsqrt %23 : vector<1x128xf32>
    %25 = vector.shape_cast %21 : vector<128xf32> to vector<1x128xf32>
    %26 = arith.mulf %25, %24 : vector<1x128xf32>
    %c0_18 = arith.constant 0 : index
    %c1 = arith.constant 1 : index
    %c0_19 = arith.constant 0 : index
    %27 = vector.load %arg10[%c0_18, %c1, %c0_19] : memref<5x2x128xf32, #tpu.memory_space<vmem>>, vector<1x1x128xf32>
    %28 = vector.shape_cast %27 : vector<1x1x128xf32> to vector<128xf32>
    %29 = arith.mulf %11, %26 : vector<1x128xf32>
    %30 = vector.shape_cast %28 : vector<128xf32> to vector<1x128xf32>
    %31 = arith.subf %30, %29 : vector<1x128xf32>
    %32 = vector.broadcast %26 : vector<1x128xf32> to vector<32x128xf32>
    %33 = arith.mulf %2, %32 : vector<32x128xf32>
    %34 = vector.broadcast %31 : vector<1x128xf32> to vector<32x128xf32>
    %35 = arith.addf %33, %34 : vector<32x128xf32>
    %c0_20 = arith.constant 0 : index
    %c0_21 = arith.constant 0 : index
    %36 = vector.load %arg7[%c0_20, %c0_21] : memref<32x32xf32, #tpu.memory_space<vmem>>, vector<32x32xf32>
    %cst_22 = arith.constant dense<0.000000e+00> : vector<32x128xf32>
    %37 = tpu.matmul %36, %0, %cst_22 {dimension_numbers = #tpu.dot_dimension_numbers<[1], [0], [0], [1], [0, 0, 1, 1], [], []>} : vector<32x32xf32>, vector<32x128xf32>, vector<32x128xf32> -> vector<32x128xf32>
    %c0_23 = arith.constant 0 : index
    %c0_24 = arith.constant 0 : index
    %38 = vector.load %arg8[%c0_23, %c0_24] : memref<32x32xf32, #tpu.memory_space<vmem>>, vector<32x32xf32>
    %cst_25 = arith.constant dense<0.000000e+00> : vector<32x128xf32>
    %39 = tpu.matmul %38, %0, %cst_25 {dimension_numbers = #tpu.dot_dimension_numbers<[1], [0], [0], [1], [0, 0, 1, 1], [], []>} : vector<32x32xf32>, vector<32x128xf32>, vector<32x128xf32> -> vector<32x128xf32>
    %c0_26 = arith.constant 0 : index
    %c0_27 = arith.constant 0 : index
    %c0_28 = arith.constant 0 : index
    %40 = vector.load %arg3[%c0_26, %c0_27, %c0_28] : memref<3x128x128xf32, #tpu.memory_space<vmem>>, vector<1x128x128xf32>
    %41 = vector.shape_cast %40 : vector<1x128x128xf32> to vector<128x128xf32>
    %cst_29 = arith.constant dense<0.000000e+00> : vector<32x128xf32>
    %42 = tpu.matmul %37, %41, %cst_29 {dimension_numbers = #tpu.dot_dimension_numbers<[1], [0], [0], [1], [0, 0, 1, 1], [], []>} : vector<32x128xf32>, vector<128x128xf32>, vector<32x128xf32> -> vector<32x128xf32>
    %c1_30 = arith.constant 1 : index
    %c0_31 = arith.constant 0 : index
    %c0_32 = arith.constant 0 : index
    %43 = vector.load %arg3[%c1_30, %c0_31, %c0_32] : memref<3x128x128xf32, #tpu.memory_space<vmem>>, vector<1x128x128xf32>
    %44 = vector.shape_cast %43 : vector<1x128x128xf32> to vector<128x128xf32>
    %cst_33 = arith.constant dense<0.000000e+00> : vector<32x128xf32>
    %45 = tpu.matmul %0, %44, %cst_33 {dimension_numbers = #tpu.dot_dimension_numbers<[1], [0], [0], [1], [0, 0, 1, 1], [], []>} : vector<32x128xf32>, vector<128x128xf32>, vector<32x128xf32> -> vector<32x128xf32>
    %46 = arith.addf %42, %45 : vector<32x128xf32>
    %c2 = arith.constant 2 : index
    %c0_34 = arith.constant 0 : index
    %c0_35 = arith.constant 0 : index
    %47 = vector.load %arg3[%c2, %c0_34, %c0_35] : memref<3x128x128xf32, #tpu.memory_space<vmem>>, vector<1x128x128xf32>
    %48 = vector.shape_cast %47 : vector<1x128x128xf32> to vector<128x128xf32>
    %cst_36 = arith.constant dense<0.000000e+00> : vector<32x128xf32>
    %49 = tpu.matmul %39, %48, %cst_36 {dimension_numbers = #tpu.dot_dimension_numbers<[1], [0], [0], [1], [0, 0, 1, 1], [], []>} : vector<32x128xf32>, vector<128x128xf32>, vector<32x128xf32> -> vector<32x128xf32>
    %50 = arith.addf %46, %49 : vector<32x128xf32>
    %c0_37 = arith.constant 0 : index
    %c0_38 = arith.constant 0 : index
    %51 = vector.load %arg11[%c0_37, %c0_38] : memref<3x128xf32, #tpu.memory_space<vmem>>, vector<1x128xf32>
    %52 = vector.shape_cast %51 : vector<1x128xf32> to vector<128xf32>
    %c0_39 = arith.constant 0 : index
    %c0_40 = arith.constant 0 : index
    %53 = vector.load %arg9[%c0_39, %c0_40] : memref<128x128xf32, #tpu.memory_space<vmem>>, vector<128x128xf32>
    %cst_41 = arith.constant dense<0.000000e+00> : vector<32x128xf32>
    %54 = tpu.matmul %50, %53, %cst_41 {dimension_numbers = #tpu.dot_dimension_numbers<[1], [0], [0], [1], [0, 0, 1, 1], [], []>} : vector<32x128xf32>, vector<128x128xf32>, vector<32x128xf32> -> vector<32x128xf32>
    %55 = arith.mulf %50, %50 : vector<32x128xf32>
    %c0_42 = arith.constant 0 : index
    %c0_43 = arith.constant 0 : index
    %56 = vector.load %arg9[%c0_42, %c0_43] : memref<128x128xf32, #tpu.memory_space<vmem>>, vector<128x128xf32>
    %cst_44 = arith.constant dense<0.000000e+00> : vector<32x128xf32>
    %57 = tpu.matmul %55, %56, %cst_44 {dimension_numbers = #tpu.dot_dimension_numbers<[1], [0], [0], [1], [0, 0, 1, 1], [], []>} : vector<32x128xf32>, vector<128x128xf32>, vector<32x128xf32> -> vector<32x128xf32>
    %cst_45 = arith.constant dense<0.000000e+00> : vector<128xf32>
    %58 = vector.multi_reduction <add>, %54, %cst_45 [0] : vector<32x128xf32> to vector<128xf32>
    %59 = vector.shape_cast %58 : vector<128xf32> to vector<1x128xf32>
    %cst_46 = arith.constant 0.001953125 : f32
    %60 = vector.broadcast %cst_46 : f32 to vector<1x128xf32>
    %61 = arith.mulf %59, %60 : vector<1x128xf32>
    %cst_47 = arith.constant dense<0.000000e+00> : vector<128xf32>
    %62 = vector.multi_reduction <add>, %57, %cst_47 [0] : vector<32x128xf32> to vector<128xf32>
    %63 = vector.shape_cast %62 : vector<128xf32> to vector<1x128xf32>
    %cst_48 = arith.constant 0.001953125 : f32
    %64 = vector.broadcast %cst_48 : f32 to vector<1x128xf32>
    %65 = arith.mulf %63, %64 : vector<1x128xf32>
    %66 = arith.mulf %61, %61 : vector<1x128xf32>
    %67 = arith.subf %65, %66 : vector<1x128xf32>
    %cst_49 = arith.constant 0.000000e+00 : f32
    %68 = vector.broadcast %cst_49 : f32 to vector<1x128xf32>
    %69 = arith.maximumf %67, %68 : vector<1x128xf32>
    %c1_50 = arith.constant 1 : index
    %c0_51 = arith.constant 0 : index
    %c0_52 = arith.constant 0 : index
    %70 = vector.load %arg10[%c1_50, %c0_51, %c0_52] : memref<5x2x128xf32, #tpu.memory_space<vmem>>, vector<1x1x128xf32>
    %71 = vector.shape_cast %70 : vector<1x1x128xf32> to vector<128xf32>
    %cst_53 = arith.constant 9.99999974E-6 : f32
    %72 = vector.broadcast %cst_53 : f32 to vector<1x128xf32>
    %73 = arith.addf %69, %72 : vector<1x128xf32>
    %74 = math.rsqrt %73 : vector<1x128xf32>
    %75 = vector.shape_cast %71 : vector<128xf32> to vector<1x128xf32>
    %76 = arith.mulf %75, %74 : vector<1x128xf32>
    %c1_54 = arith.constant 1 : index
    %c1_55 = arith.constant 1 : index
    %c0_56 = arith.constant 0 : index
    %77 = vector.load %arg10[%c1_54, %c1_55, %c0_56] : memref<5x2x128xf32, #tpu.memory_space<vmem>>, vector<1x1x128xf32>
    %78 = vector.shape_cast %77 : vector<1x1x128xf32> to vector<128xf32>
    %79 = arith.mulf %61, %76 : vector<1x128xf32>
    %80 = vector.shape_cast %78 : vector<128xf32> to vector<1x128xf32>
    %81 = arith.subf %80, %79 : vector<1x128xf32>
    %82 = vector.broadcast %76 : vector<1x128xf32> to vector<32x128xf32>
    %83 = arith.mulf %50, %82 : vector<32x128xf32>
    %84 = vector.broadcast %81 : vector<1x128xf32> to vector<32x128xf32>
    %85 = arith.addf %83, %84 : vector<32x128xf32>
    %cst_57 = arith.constant 0.000000e+00 : f32
    %86 = vector.broadcast %cst_57 : f32 to vector<32x128xf32>
    %87 = arith.maximumf %85, %86 : vector<32x128xf32>
    %88 = vector.shape_cast %52 : vector<128xf32> to vector<1x128xf32>
    %89 = vector.broadcast %88 : vector<1x128xf32> to vector<32x128xf32>
    %90 = arith.mulf %87, %89 : vector<32x128xf32>
    %c0_58 = arith.constant 0 : index
    %c0_59 = arith.constant 0 : index
    %91 = vector.load %arg7[%c0_58, %c0_59] : memref<32x32xf32, #tpu.memory_space<vmem>>, vector<32x32xf32>
    %cst_60 = arith.constant dense<0.000000e+00> : vector<32x128xf32>
    %92 = tpu.matmul %91, %90, %cst_60 {dimension_numbers = #tpu.dot_dimension_numbers<[1], [0], [0], [1], [0, 0, 1, 1], [], []>} : vector<32x32xf32>, vector<32x128xf32>, vector<32x128xf32> -> vector<32x128xf32>
    %c0_61 = arith.constant 0 : index
    %c0_62 = arith.constant 0 : index
    %93 = vector.load %arg8[%c0_61, %c0_62] : memref<32x32xf32, #tpu.memory_space<vmem>>, vector<32x32xf32>
    %cst_63 = arith.constant dense<0.000000e+00> : vector<32x128xf32>
    %94 = tpu.matmul %93, %90, %cst_63 {dimension_numbers = #tpu.dot_dimension_numbers<[1], [0], [0], [1], [0, 0, 1, 1], [], []>} : vector<32x32xf32>, vector<32x128xf32>, vector<32x128xf32> -> vector<32x128xf32>
    %c0_64 = arith.constant 0 : index
    %c0_65 = arith.constant 0 : index
    %c0_66 = arith.constant 0 : index
    %95 = vector.load %arg4[%c0_64, %c0_65, %c0_66] : memref<3x128x128xf32, #tpu.memory_space<vmem>>, vector<1x128x128xf32>
    %96 = vector.shape_cast %95 : vector<1x128x128xf32> to vector<128x128xf32>
    %cst_67 = arith.constant dense<0.000000e+00> : vector<32x128xf32>
    %97 = tpu.matmul %92, %96, %cst_67 {dimension_numbers = #tpu.dot_dimension_numbers<[1], [0], [0], [1], [0, 0, 1, 1], [], []>} : vector<32x128xf32>, vector<128x128xf32>, vector<32x128xf32> -> vector<32x128xf32>
    %c1_68 = arith.constant 1 : index
    %c0_69 = arith.constant 0 : index
    %c0_70 = arith.constant 0 : index
    %98 = vector.load %arg4[%c1_68, %c0_69, %c0_70] : memref<3x128x128xf32, #tpu.memory_space<vmem>>, vector<1x128x128xf32>
    %99 = vector.shape_cast %98 : vector<1x128x128xf32> to vector<128x128xf32>
    %cst_71 = arith.constant dense<0.000000e+00> : vector<32x128xf32>
    %100 = tpu.matmul %90, %99, %cst_71 {dimension_numbers = #tpu.dot_dimension_numbers<[1], [0], [0], [1], [0, 0, 1, 1], [], []>} : vector<32x128xf32>, vector<128x128xf32>, vector<32x128xf32> -> vector<32x128xf32>
    %101 = arith.addf %97, %100 : vector<32x128xf32>
    %c2_72 = arith.constant 2 : index
    %c0_73 = arith.constant 0 : index
    %c0_74 = arith.constant 0 : index
    %102 = vector.load %arg4[%c2_72, %c0_73, %c0_74] : memref<3x128x128xf32, #tpu.memory_space<vmem>>, vector<1x128x128xf32>
    %103 = vector.shape_cast %102 : vector<1x128x128xf32> to vector<128x128xf32>
    %cst_75 = arith.constant dense<0.000000e+00> : vector<32x128xf32>
    %104 = tpu.matmul %94, %103, %cst_75 {dimension_numbers = #tpu.dot_dimension_numbers<[1], [0], [0], [1], [0, 0, 1, 1], [], []>} : vector<32x128xf32>, vector<128x128xf32>, vector<32x128xf32> -> vector<32x128xf32>
    %105 = arith.addf %101, %104 : vector<32x128xf32>
    %c1_76 = arith.constant 1 : index
    %c0_77 = arith.constant 0 : index
    %106 = vector.load %arg11[%c1_76, %c0_77] : memref<3x128xf32, #tpu.memory_space<vmem>>, vector<1x128xf32>
    %107 = vector.shape_cast %106 : vector<1x128xf32> to vector<128xf32>
    %c0_78 = arith.constant 0 : index
    %c0_79 = arith.constant 0 : index
    %108 = vector.load %arg9[%c0_78, %c0_79] : memref<128x128xf32, #tpu.memory_space<vmem>>, vector<128x128xf32>
    %cst_80 = arith.constant dense<0.000000e+00> : vector<32x128xf32>
    %109 = tpu.matmul %105, %108, %cst_80 {dimension_numbers = #tpu.dot_dimension_numbers<[1], [0], [0], [1], [0, 0, 1, 1], [], []>} : vector<32x128xf32>, vector<128x128xf32>, vector<32x128xf32> -> vector<32x128xf32>
    %110 = arith.mulf %105, %105 : vector<32x128xf32>
    %c0_81 = arith.constant 0 : index
    %c0_82 = arith.constant 0 : index
    %111 = vector.load %arg9[%c0_81, %c0_82] : memref<128x128xf32, #tpu.memory_space<vmem>>, vector<128x128xf32>
    %cst_83 = arith.constant dense<0.000000e+00> : vector<32x128xf32>
    %112 = tpu.matmul %110, %111, %cst_83 {dimension_numbers = #tpu.dot_dimension_numbers<[1], [0], [0], [1], [0, 0, 1, 1], [], []>} : vector<32x128xf32>, vector<128x128xf32>, vector<32x128xf32> -> vector<32x128xf32>
    %cst_84 = arith.constant dense<0.000000e+00> : vector<128xf32>
    %113 = vector.multi_reduction <add>, %109, %cst_84 [0] : vector<32x128xf32> to vector<128xf32>
    %114 = vector.shape_cast %113 : vector<128xf32> to vector<1x128xf32>
    %cst_85 = arith.constant 0.001953125 : f32
    %115 = vector.broadcast %cst_85 : f32 to vector<1x128xf32>
    %116 = arith.mulf %114, %115 : vector<1x128xf32>
    %cst_86 = arith.constant dense<0.000000e+00> : vector<128xf32>
    %117 = vector.multi_reduction <add>, %112, %cst_86 [0] : vector<32x128xf32> to vector<128xf32>
    %118 = vector.shape_cast %117 : vector<128xf32> to vector<1x128xf32>
    %cst_87 = arith.constant 0.001953125 : f32
    %119 = vector.broadcast %cst_87 : f32 to vector<1x128xf32>
    %120 = arith.mulf %118, %119 : vector<1x128xf32>
    %121 = arith.mulf %116, %116 : vector<1x128xf32>
    %122 = arith.subf %120, %121 : vector<1x128xf32>
    %cst_88 = arith.constant 0.000000e+00 : f32
    %123 = vector.broadcast %cst_88 : f32 to vector<1x128xf32>
    %124 = arith.maximumf %122, %123 : vector<1x128xf32>
    %c2_89 = arith.constant 2 : index
    %c0_90 = arith.constant 0 : index
    %c0_91 = arith.constant 0 : index
    %125 = vector.load %arg10[%c2_89, %c0_90, %c0_91] : memref<5x2x128xf32, #tpu.memory_space<vmem>>, vector<1x1x128xf32>
    %126 = vector.shape_cast %125 : vector<1x1x128xf32> to vector<128xf32>
    %cst_92 = arith.constant 9.99999974E-6 : f32
    %127 = vector.broadcast %cst_92 : f32 to vector<1x128xf32>
    %128 = arith.addf %124, %127 : vector<1x128xf32>
    %129 = math.rsqrt %128 : vector<1x128xf32>
    %130 = vector.shape_cast %126 : vector<128xf32> to vector<1x128xf32>
    %131 = arith.mulf %130, %129 : vector<1x128xf32>
    %c2_93 = arith.constant 2 : index
    %c1_94 = arith.constant 1 : index
    %c0_95 = arith.constant 0 : index
    %132 = vector.load %arg10[%c2_93, %c1_94, %c0_95] : memref<5x2x128xf32, #tpu.memory_space<vmem>>, vector<1x1x128xf32>
    %133 = vector.shape_cast %132 : vector<1x1x128xf32> to vector<128xf32>
    %134 = arith.mulf %116, %131 : vector<1x128xf32>
    %135 = vector.shape_cast %133 : vector<128xf32> to vector<1x128xf32>
    %136 = arith.subf %135, %134 : vector<1x128xf32>
    %137 = vector.broadcast %131 : vector<1x128xf32> to vector<32x128xf32>
    %138 = arith.mulf %105, %137 : vector<32x128xf32>
    %139 = vector.broadcast %136 : vector<1x128xf32> to vector<32x128xf32>
    %140 = arith.addf %138, %139 : vector<32x128xf32>
    %141 = arith.addf %140, %35 : vector<32x128xf32>
    %cst_96 = arith.constant 0.000000e+00 : f32
    %142 = vector.broadcast %cst_96 : f32 to vector<32x128xf32>
    %143 = arith.maximumf %141, %142 : vector<32x128xf32>
    %144 = vector.shape_cast %107 : vector<128xf32> to vector<1x128xf32>
    %145 = vector.broadcast %144 : vector<1x128xf32> to vector<32x128xf32>
    %146 = arith.mulf %143, %145 : vector<32x128xf32>
    %c0_97 = arith.constant 0 : index
    %c0_98 = arith.constant 0 : index
    %147 = vector.load %arg7[%c0_97, %c0_98] : memref<32x32xf32, #tpu.memory_space<vmem>>, vector<32x32xf32>
    %cst_99 = arith.constant dense<0.000000e+00> : vector<32x128xf32>
    %148 = tpu.matmul %147, %146, %cst_99 {dimension_numbers = #tpu.dot_dimension_numbers<[1], [0], [0], [1], [0, 0, 1, 1], [], []>} : vector<32x32xf32>, vector<32x128xf32>, vector<32x128xf32> -> vector<32x128xf32>
    %c0_100 = arith.constant 0 : index
    %c0_101 = arith.constant 0 : index
    %149 = vector.load %arg8[%c0_100, %c0_101] : memref<32x32xf32, #tpu.memory_space<vmem>>, vector<32x32xf32>
    %cst_102 = arith.constant dense<0.000000e+00> : vector<32x128xf32>
    %150 = tpu.matmul %149, %146, %cst_102 {dimension_numbers = #tpu.dot_dimension_numbers<[1], [0], [0], [1], [0, 0, 1, 1], [], []>} : vector<32x32xf32>, vector<32x128xf32>, vector<32x128xf32> -> vector<32x128xf32>
    %c0_103 = arith.constant 0 : index
    %c0_104 = arith.constant 0 : index
    %c0_105 = arith.constant 0 : index
    %151 = vector.load %arg5[%c0_103, %c0_104, %c0_105] : memref<3x128x128xf32, #tpu.memory_space<vmem>>, vector<1x128x128xf32>
    %152 = vector.shape_cast %151 : vector<1x128x128xf32> to vector<128x128xf32>
    %cst_106 = arith.constant dense<0.000000e+00> : vector<32x128xf32>
    %153 = tpu.matmul %148, %152, %cst_106 {dimension_numbers = #tpu.dot_dimension_numbers<[1], [0], [0], [1], [0, 0, 1, 1], [], []>} : vector<32x128xf32>, vector<128x128xf32>, vector<32x128xf32> -> vector<32x128xf32>
    %c1_107 = arith.constant 1 : index
    %c0_108 = arith.constant 0 : index
    %c0_109 = arith.constant 0 : index
    %154 = vector.load %arg5[%c1_107, %c0_108, %c0_109] : memref<3x128x128xf32, #tpu.memory_space<vmem>>, vector<1x128x128xf32>
    %155 = vector.shape_cast %154 : vector<1x128x128xf32> to vector<128x128xf32>
    %cst_110 = arith.constant dense<0.000000e+00> : vector<32x128xf32>
    %156 = tpu.matmul %146, %155, %cst_110 {dimension_numbers = #tpu.dot_dimension_numbers<[1], [0], [0], [1], [0, 0, 1, 1], [], []>} : vector<32x128xf32>, vector<128x128xf32>, vector<32x128xf32> -> vector<32x128xf32>
    %157 = arith.addf %153, %156 : vector<32x128xf32>
    %c2_111 = arith.constant 2 : index
    %c0_112 = arith.constant 0 : index
    %c0_113 = arith.constant 0 : index
    %158 = vector.load %arg5[%c2_111, %c0_112, %c0_113] : memref<3x128x128xf32, #tpu.memory_space<vmem>>, vector<1x128x128xf32>
    %159 = vector.shape_cast %158 : vector<1x128x128xf32> to vector<128x128xf32>
    %cst_114 = arith.constant dense<0.000000e+00> : vector<32x128xf32>
    %160 = tpu.matmul %150, %159, %cst_114 {dimension_numbers = #tpu.dot_dimension_numbers<[1], [0], [0], [1], [0, 0, 1, 1], [], []>} : vector<32x128xf32>, vector<128x128xf32>, vector<32x128xf32> -> vector<32x128xf32>
    %161 = arith.addf %157, %160 : vector<32x128xf32>
    %c2_115 = arith.constant 2 : index
    %c0_116 = arith.constant 0 : index
    %162 = vector.load %arg11[%c2_115, %c0_116] : memref<3x128xf32, #tpu.memory_space<vmem>>, vector<1x128xf32>
    %163 = vector.shape_cast %162 : vector<1x128xf32> to vector<128xf32>
    %c0_117 = arith.constant 0 : index
    %c0_118 = arith.constant 0 : index
    %164 = vector.load %arg9[%c0_117, %c0_118] : memref<128x128xf32, #tpu.memory_space<vmem>>, vector<128x128xf32>
    %cst_119 = arith.constant dense<0.000000e+00> : vector<32x128xf32>
    %165 = tpu.matmul %161, %164, %cst_119 {dimension_numbers = #tpu.dot_dimension_numbers<[1], [0], [0], [1], [0, 0, 1, 1], [], []>} : vector<32x128xf32>, vector<128x128xf32>, vector<32x128xf32> -> vector<32x128xf32>
    %166 = arith.mulf %161, %161 : vector<32x128xf32>
    %c0_120 = arith.constant 0 : index
    %c0_121 = arith.constant 0 : index
    %167 = vector.load %arg9[%c0_120, %c0_121] : memref<128x128xf32, #tpu.memory_space<vmem>>, vector<128x128xf32>
    %cst_122 = arith.constant dense<0.000000e+00> : vector<32x128xf32>
    %168 = tpu.matmul %166, %167, %cst_122 {dimension_numbers = #tpu.dot_dimension_numbers<[1], [0], [0], [1], [0, 0, 1, 1], [], []>} : vector<32x128xf32>, vector<128x128xf32>, vector<32x128xf32> -> vector<32x128xf32>
    %cst_123 = arith.constant dense<0.000000e+00> : vector<128xf32>
    %169 = vector.multi_reduction <add>, %165, %cst_123 [0] : vector<32x128xf32> to vector<128xf32>
    %170 = vector.shape_cast %169 : vector<128xf32> to vector<1x128xf32>
    %cst_124 = arith.constant 0.001953125 : f32
    %171 = vector.broadcast %cst_124 : f32 to vector<1x128xf32>
    %172 = arith.mulf %170, %171 : vector<1x128xf32>
    %cst_125 = arith.constant dense<0.000000e+00> : vector<128xf32>
    %173 = vector.multi_reduction <add>, %168, %cst_125 [0] : vector<32x128xf32> to vector<128xf32>
    %174 = vector.shape_cast %173 : vector<128xf32> to vector<1x128xf32>
    %cst_126 = arith.constant 0.001953125 : f32
    %175 = vector.broadcast %cst_126 : f32 to vector<1x128xf32>
    %176 = arith.mulf %174, %175 : vector<1x128xf32>
    %177 = arith.mulf %172, %172 : vector<1x128xf32>
    %178 = arith.subf %176, %177 : vector<1x128xf32>
    %cst_127 = arith.constant 0.000000e+00 : f32
    %179 = vector.broadcast %cst_127 : f32 to vector<1x128xf32>
    %180 = arith.maximumf %178, %179 : vector<1x128xf32>
    %c3 = arith.constant 3 : index
    %c0_128 = arith.constant 0 : index
    %c0_129 = arith.constant 0 : index
    %181 = vector.load %arg10[%c3, %c0_128, %c0_129] : memref<5x2x128xf32, #tpu.memory_space<vmem>>, vector<1x1x128xf32>
    %182 = vector.shape_cast %181 : vector<1x1x128xf32> to vector<128xf32>
    %cst_130 = arith.constant 9.99999974E-6 : f32
    %183 = vector.broadcast %cst_130 : f32 to vector<1x128xf32>
    %184 = arith.addf %180, %183 : vector<1x128xf32>
    %185 = math.rsqrt %184 : vector<1x128xf32>
    %186 = vector.shape_cast %182 : vector<128xf32> to vector<1x128xf32>
    %187 = arith.mulf %186, %185 : vector<1x128xf32>
    %c3_131 = arith.constant 3 : index
    %c1_132 = arith.constant 1 : index
    %c0_133 = arith.constant 0 : index
    %188 = vector.load %arg10[%c3_131, %c1_132, %c0_133] : memref<5x2x128xf32, #tpu.memory_space<vmem>>, vector<1x1x128xf32>
    %189 = vector.shape_cast %188 : vector<1x1x128xf32> to vector<128xf32>
    %190 = arith.mulf %172, %187 : vector<1x128xf32>
    %191 = vector.shape_cast %189 : vector<128xf32> to vector<1x128xf32>
    %192 = arith.subf %191, %190 : vector<1x128xf32>
    %193 = vector.broadcast %187 : vector<1x128xf32> to vector<32x128xf32>
    %194 = arith.mulf %161, %193 : vector<32x128xf32>
    %195 = vector.broadcast %192 : vector<1x128xf32> to vector<32x128xf32>
    %196 = arith.addf %194, %195 : vector<32x128xf32>
    %cst_134 = arith.constant 0.000000e+00 : f32
    %197 = vector.broadcast %cst_134 : f32 to vector<32x128xf32>
    %198 = arith.maximumf %196, %197 : vector<32x128xf32>
    %199 = vector.shape_cast %163 : vector<128xf32> to vector<1x128xf32>
    %200 = vector.broadcast %199 : vector<1x128xf32> to vector<32x128xf32>
    %201 = arith.mulf %198, %200 : vector<32x128xf32>
    %c0_135 = arith.constant 0 : index
    %c0_136 = arith.constant 0 : index
    %202 = vector.load %arg7[%c0_135, %c0_136] : memref<32x32xf32, #tpu.memory_space<vmem>>, vector<32x32xf32>
    %cst_137 = arith.constant dense<0.000000e+00> : vector<32x128xf32>
    %203 = tpu.matmul %202, %201, %cst_137 {dimension_numbers = #tpu.dot_dimension_numbers<[1], [0], [0], [1], [0, 0, 1, 1], [], []>} : vector<32x32xf32>, vector<32x128xf32>, vector<32x128xf32> -> vector<32x128xf32>
    %c0_138 = arith.constant 0 : index
    %c0_139 = arith.constant 0 : index
    %204 = vector.load %arg8[%c0_138, %c0_139] : memref<32x32xf32, #tpu.memory_space<vmem>>, vector<32x32xf32>
    %cst_140 = arith.constant dense<0.000000e+00> : vector<32x128xf32>
    %205 = tpu.matmul %204, %201, %cst_140 {dimension_numbers = #tpu.dot_dimension_numbers<[1], [0], [0], [1], [0, 0, 1, 1], [], []>} : vector<32x32xf32>, vector<32x128xf32>, vector<32x128xf32> -> vector<32x128xf32>
    %c0_141 = arith.constant 0 : index
    %c0_142 = arith.constant 0 : index
    %c0_143 = arith.constant 0 : index
    %206 = vector.load %arg6[%c0_141, %c0_142, %c0_143] : memref<3x128x128xf32, #tpu.memory_space<vmem>>, vector<1x128x128xf32>
    %207 = vector.shape_cast %206 : vector<1x128x128xf32> to vector<128x128xf32>
    %cst_144 = arith.constant dense<0.000000e+00> : vector<32x128xf32>
    %208 = tpu.matmul %203, %207, %cst_144 {dimension_numbers = #tpu.dot_dimension_numbers<[1], [0], [0], [1], [0, 0, 1, 1], [], []>} : vector<32x128xf32>, vector<128x128xf32>, vector<32x128xf32> -> vector<32x128xf32>
    %c1_145 = arith.constant 1 : index
    %c0_146 = arith.constant 0 : index
    %c0_147 = arith.constant 0 : index
    %209 = vector.load %arg6[%c1_145, %c0_146, %c0_147] : memref<3x128x128xf32, #tpu.memory_space<vmem>>, vector<1x128x128xf32>
    %210 = vector.shape_cast %209 : vector<1x128x128xf32> to vector<128x128xf32>
    %cst_148 = arith.constant dense<0.000000e+00> : vector<32x128xf32>
    %211 = tpu.matmul %201, %210, %cst_148 {dimension_numbers = #tpu.dot_dimension_numbers<[1], [0], [0], [1], [0, 0, 1, 1], [], []>} : vector<32x128xf32>, vector<128x128xf32>, vector<32x128xf32> -> vector<32x128xf32>
    %212 = arith.addf %208, %211 : vector<32x128xf32>
    %c2_149 = arith.constant 2 : index
    %c0_150 = arith.constant 0 : index
    %c0_151 = arith.constant 0 : index
    %213 = vector.load %arg6[%c2_149, %c0_150, %c0_151] : memref<3x128x128xf32, #tpu.memory_space<vmem>>, vector<1x128x128xf32>
    %214 = vector.shape_cast %213 : vector<1x128x128xf32> to vector<128x128xf32>
    %cst_152 = arith.constant dense<0.000000e+00> : vector<32x128xf32>
    %215 = tpu.matmul %205, %214, %cst_152 {dimension_numbers = #tpu.dot_dimension_numbers<[1], [0], [0], [1], [0, 0, 1, 1], [], []>} : vector<32x128xf32>, vector<128x128xf32>, vector<32x128xf32> -> vector<32x128xf32>
    %216 = arith.addf %212, %215 : vector<32x128xf32>
    %c1_153 = arith.constant 1 : index
    %c0_154 = arith.constant 0 : index
    %217 = vector.load %arg11[%c1_153, %c0_154] : memref<3x128xf32, #tpu.memory_space<vmem>>, vector<1x128xf32>
    %218 = vector.shape_cast %217 : vector<1x128xf32> to vector<128xf32>
    %c0_155 = arith.constant 0 : index
    %c0_156 = arith.constant 0 : index
    %219 = vector.load %arg9[%c0_155, %c0_156] : memref<128x128xf32, #tpu.memory_space<vmem>>, vector<128x128xf32>
    %cst_157 = arith.constant dense<0.000000e+00> : vector<32x128xf32>
    %220 = tpu.matmul %216, %219, %cst_157 {dimension_numbers = #tpu.dot_dimension_numbers<[1], [0], [0], [1], [0, 0, 1, 1], [], []>} : vector<32x128xf32>, vector<128x128xf32>, vector<32x128xf32> -> vector<32x128xf32>
    %221 = arith.mulf %216, %216 : vector<32x128xf32>
    %c0_158 = arith.constant 0 : index
    %c0_159 = arith.constant 0 : index
    %222 = vector.load %arg9[%c0_158, %c0_159] : memref<128x128xf32, #tpu.memory_space<vmem>>, vector<128x128xf32>
    %cst_160 = arith.constant dense<0.000000e+00> : vector<32x128xf32>
    %223 = tpu.matmul %221, %222, %cst_160 {dimension_numbers = #tpu.dot_dimension_numbers<[1], [0], [0], [1], [0, 0, 1, 1], [], []>} : vector<32x128xf32>, vector<128x128xf32>, vector<32x128xf32> -> vector<32x128xf32>
    %cst_161 = arith.constant dense<0.000000e+00> : vector<128xf32>
    %224 = vector.multi_reduction <add>, %220, %cst_161 [0] : vector<32x128xf32> to vector<128xf32>
    %225 = vector.shape_cast %224 : vector<128xf32> to vector<1x128xf32>
    %cst_162 = arith.constant 0.001953125 : f32
    %226 = vector.broadcast %cst_162 : f32 to vector<1x128xf32>
    %227 = arith.mulf %225, %226 : vector<1x128xf32>
    %cst_163 = arith.constant dense<0.000000e+00> : vector<128xf32>
    %228 = vector.multi_reduction <add>, %223, %cst_163 [0] : vector<32x128xf32> to vector<128xf32>
    %229 = vector.shape_cast %228 : vector<128xf32> to vector<1x128xf32>
    %cst_164 = arith.constant 0.001953125 : f32
    %230 = vector.broadcast %cst_164 : f32 to vector<1x128xf32>
    %231 = arith.mulf %229, %230 : vector<1x128xf32>
    %232 = arith.mulf %227, %227 : vector<1x128xf32>
    %233 = arith.subf %231, %232 : vector<1x128xf32>
    %cst_165 = arith.constant 0.000000e+00 : f32
    %234 = vector.broadcast %cst_165 : f32 to vector<1x128xf32>
    %235 = arith.maximumf %233, %234 : vector<1x128xf32>
    %c4 = arith.constant 4 : index
    %c0_166 = arith.constant 0 : index
    %c0_167 = arith.constant 0 : index
    %236 = vector.load %arg10[%c4, %c0_166, %c0_167] : memref<5x2x128xf32, #tpu.memory_space<vmem>>, vector<1x1x128xf32>
    %237 = vector.shape_cast %236 : vector<1x1x128xf32> to vector<128xf32>
    %cst_168 = arith.constant 9.99999974E-6 : f32
    %238 = vector.broadcast %cst_168 : f32 to vector<1x128xf32>
    %239 = arith.addf %235, %238 : vector<1x128xf32>
    %240 = math.rsqrt %239 : vector<1x128xf32>
    %241 = vector.shape_cast %237 : vector<128xf32> to vector<1x128xf32>
    %242 = arith.mulf %241, %240 : vector<1x128xf32>
    %c4_169 = arith.constant 4 : index
    %c1_170 = arith.constant 1 : index
    %c0_171 = arith.constant 0 : index
    %243 = vector.load %arg10[%c4_169, %c1_170, %c0_171] : memref<5x2x128xf32, #tpu.memory_space<vmem>>, vector<1x1x128xf32>
    %244 = vector.shape_cast %243 : vector<1x1x128xf32> to vector<128xf32>
    %245 = arith.mulf %227, %242 : vector<1x128xf32>
    %246 = vector.shape_cast %244 : vector<128xf32> to vector<1x128xf32>
    %247 = arith.subf %246, %245 : vector<1x128xf32>
    %248 = vector.broadcast %242 : vector<1x128xf32> to vector<32x128xf32>
    %249 = arith.mulf %216, %248 : vector<32x128xf32>
    %250 = vector.broadcast %247 : vector<1x128xf32> to vector<32x128xf32>
    %251 = arith.addf %249, %250 : vector<32x128xf32>
    %252 = arith.addf %251, %146 : vector<32x128xf32>
    %cst_172 = arith.constant 0.000000e+00 : f32
    %253 = vector.broadcast %cst_172 : f32 to vector<32x128xf32>
    %254 = arith.maximumf %252, %253 : vector<32x128xf32>
    %255 = vector.shape_cast %218 : vector<128xf32> to vector<1x128xf32>
    %256 = vector.broadcast %255 : vector<1x128xf32> to vector<32x128xf32>
    %257 = arith.mulf %254, %256 : vector<32x128xf32>
    %c0_173 = arith.constant 0 : index
    %c0_174 = arith.constant 0 : index
    %258 = vector.load %arg12[%c0_173, %c0_174] : memref<32x128xf32, #tpu.memory_space<vmem>>, vector<32x128xf32>
    tpu.vector_store %arg12[%c0_173, %c0_174], %257 {strides = array<i32>} : memref<32x128xf32, #tpu.memory_space<vmem>>, vector<32x128xf32>,
    return
  }
  func.func @transform_0(%arg0: i32) -> (i32, i32) {
    %c0_i32 = arith.constant 0 : i32
    %c0_i32_0 = arith.constant 0 : i32
    %c0_i32_1 = arith.constant 0 : i32
    return %c0_i32, %c0_i32_0 : i32, i32
  }
  func.func @transform_1(%arg0: i32) -> (i32, i32) {
    %c0_i32 = arith.constant 0 : i32
    %c0_i32_0 = arith.constant 0 : i32
    %c0_i32_1 = arith.constant 0 : i32
    return %c0_i32, %c0_i32_0 : i32, i32
  }
  func.func @transform_2(%arg0: i32) -> (i32, i32, i32) {
    %c0_i32 = arith.constant 0 : i32
    %c0_i32_0 = arith.constant 0 : i32
    %c0_i32_1 = arith.constant 0 : i32
    %c0_i32_2 = arith.constant 0 : i32
    return %c0_i32, %c0_i32_0, %c0_i32_1 : i32, i32, i32
  }
  func.func @transform_3(%arg0: i32) -> (i32, i32, i32) {
    %c0_i32 = arith.constant 0 : i32
    %c0_i32_0 = arith.constant 0 : i32
    %c0_i32_1 = arith.constant 0 : i32
    %c0_i32_2 = arith.constant 0 : i32
    return %c0_i32, %c0_i32_0, %c0_i32_1 : i32, i32, i32
  }
  func.func @transform_4(%arg0: i32) -> (i32, i32, i32) {
    %c0_i32 = arith.constant 0 : i32
    %c0_i32_0 = arith.constant 0 : i32
    %c0_i32_1 = arith.constant 0 : i32
    %c0_i32_2 = arith.constant 0 : i32
    return %c0_i32, %c0_i32_0, %c0_i32_1 : i32, i32, i32
  }
  func.func @transform_5(%arg0: i32) -> (i32, i32, i32) {
    %c0_i32 = arith.constant 0 : i32
    %c0_i32_0 = arith.constant 0 : i32
    %c0_i32_1 = arith.constant 0 : i32
    %c0_i32_2 = arith.constant 0 : i32
    return %c0_i32, %c0_i32_0, %c0_i32_1 : i32, i32, i32
  }
  func.func @transform_6(%arg0: i32) -> (i32, i32) {
    %c0_i32 = arith.constant 0 : i32
    %c0_i32_0 = arith.constant 0 : i32
    %c0_i32_1 = arith.constant 0 : i32
    return %c0_i32, %c0_i32_0 : i32, i32
  }
  func.func @transform_7(%arg0: i32) -> (i32, i32) {
    %c0_i32 = arith.constant 0 : i32
    %c0_i32_0 = arith.constant 0 : i32
    %c0_i32_1 = arith.constant 0 : i32
    return %c0_i32, %c0_i32_0 : i32, i32
  }
  func.func @transform_8(%arg0: i32) -> (i32, i32) {
    %c0_i32 = arith.constant 0 : i32
    %c0_i32_0 = arith.constant 0 : i32
    %c0_i32_1 = arith.constant 0 : i32
    return %c0_i32, %c0_i32_0 : i32, i32
  }
  func.func @transform_9(%arg0: i32) -> (i32, i32, i32) {
    %c0_i32 = arith.constant 0 : i32
    %c0_i32_0 = arith.constant 0 : i32
    %c0_i32_1 = arith.constant 0 : i32
    %c0_i32_2 = arith.constant 0 : i32
    return %c0_i32, %c0_i32_0, %c0_i32_1 : i32, i32, i32
  }
  func.func @transform_10(%arg0: i32) -> (i32, i32) {
    %c0_i32 = arith.constant 0 : i32
    %c0_i32_0 = arith.constant 0 : i32
    %c0_i32_1 = arith.constant 0 : i32
    return %c0_i32, %c0_i32_0 : i32, i32
  }
  func.func @transform_11(%arg0: i32) -> (i32, i32) {
    %c0_i32 = arith.constant 0 : i32
    %c0_i32_0 = arith.constant 0 : i32
    %c0_i32_1 = arith.constant 0 : i32
    return %c0_i32, %c0_i32_0 : i32, i32
  }
}

</mosaic_0001>

<llo_original>
// kernel: tile.14
$region0: #{tile.14}
  %s0 = inlined_call_operand.vmem [shape: f32[3,16,8], index: 0, kind: input, shape index: {}]
  %s1 = inlined_call_operand.vmem [shape: f32[3,128], index: 1, kind: output, shape index: {}]
  $region1: #{tile.14} parent=0
    #allocation0 [shape = 'u8[4096]{0}', space=vmem, size = 0x1000, scoped, tag = 'scoped mem for output reshape']
    %s2 = smov 3
    %v3 = vld [vmem:[%s0] ss:$16 sm:%s2]
    %s4 = scalar_lea.vmem %s0, 30
    %v5 = vld [vmem:[%s4] sm:$0x4]
    %vm6 = vcmask 1042434
    %v7 = vsel %vm6, %v5, %v3
    %vm8 = vcmask 64512
    %9 = vst.msk [vmem:[#allocation0] sm:$0x7] %vm8, %v7
    %s10 = scalar_lea.vmem %s0, 15
    %s11 = smov 3
    %v12 = vld [vmem:[%s10] ss:$16 sm:%s11]
    %s13 = scalar_lea.vmem %s0, 45
    %v14 = vld [vmem:[%s13] sm:$0x4]
    %vm15 = vcmask 1042434
    %v16 = vsel %vm15, %v14, %v12
    %17 = vrot.lane.b32.xlu0 %v16, 120
    %v18 = vpop.permute.xlu0 %17
    %vm19 = vcmask 1048512
    %20 = vst.msk [vmem:[#allocation0] sm:$0x7] %vm19, %v18
    %s21 = scalar_lea.vmem %s0, 14
    %s22 = smov 3
    %v23 = vld [vmem:[%s21] ss:$16 sm:%s22]
    %s24 = scalar_lea.vmem %s0, 44
    %v25 = vld [vmem:[%s24] sm:$0x4]
    %vm26 = vcmask 1042434
    %v27 = vsel %vm26, %v25, %v23
    %28 = vrot.lane.b32.xlu0 %v27, 112
    %v29 = vpop.permute.xlu0 %28
    %vm30 = vcmask 982912
    %31 = vst.msk [vmem:[#allocation0] sm:$0x7] %vm30, %v29
    %s32 = scalar_lea.vmem %s0, 13
    %s33 = smov 3
    %v34 = vld [vmem:[%s32] ss:$16 sm:%s33]
    %s35 = scalar_lea.vmem %s0, 43
    %v36 = vld [vmem:[%s35] sm:$0x4]
    %vm37 = vcmask 1042434
    %v38 = vsel %vm37, %v36, %v34
    %39 = vrot.lane.b32.xlu0 %v38, 104
    %v40 = vpop.permute.xlu0 %39
    %vm41 = vcmask 917312
    %42 = vst.msk [vmem:[#allocation0] sm:$0x7] %vm41, %v40
    %s43 = scalar_lea.vmem %s0, 12
    %s44 = smov 3
    %v45 = vld [vmem:[%s43] ss:$16 sm:%s44]
    %s46 = scalar_lea.vmem %s0, 42
    %v47 = vld [vmem:[%s46] sm:$0x4]
    %vm48 = vcmask 1042434
    %v49 = vsel %vm48, %v47, %v45
    %50 = vrot.lane.b32.xlu0 %v49, 96
    %v51 = vpop.permute.xlu0 %50
    %vm52 = vcmask 851712
    %53 = vst.msk [vmem:[#allocation0] sm:$0x7] %vm52, %v51
    %s54 = scalar_lea.vmem %s0, 11
    %s55 = smov 3
    %v56 = vld [vmem:[%s54] ss:$16 sm:%s55]
    %s57 = scalar_lea.vmem %s0, 41
    %v58 = vld [vmem:[%s57] sm:$0x4]
    %vm59 = vcmask 1042434
    %v60 = vsel %vm59, %v58, %v56
    %61 = vrot.lane.b32.xlu0 %v60, 88
    %v62 = vpop.permute.xlu0 %61
    %vm63 = vcmask 786112
    %64 = vst.msk [vmem:[#allocation0] sm:$0x7] %vm63, %v62
    %s65 = scalar_lea.vmem %s0, 10
    %s66 = smov 3
    %v67 = vld [vmem:[%s65] ss:$16 sm:%s66]
    %s68 = scalar_lea.vmem %s0, 40
    %v69 = vld [vmem:[%s68] sm:$0x4]
    %vm70 = vcmask 1042434
    %v71 = vsel %vm70, %v69, %v67
    %72 = vrot.lane.b32.xlu0 %v71, 80
    %v73 = vpop.permute.xlu0 %72
    %vm74 = vcmask 720512
    %75 = vst.msk [vmem:[#allocation0] sm:$0x7] %vm74, %v73
    %s76 = scalar_lea.vmem %s0, 9
    %s77 = smov 3
    %v78 = vld [vmem:[%s76] ss:$16 sm:%s77]
    %s79 = scalar_lea.vmem %s0, 39
    %v80 = vld [vmem:[%s79] sm:$0x4]
    %vm81 = vcmask 1042434
    %v82 = vsel %vm81, %v80, %v78
    %83 = vrot.lane.b32.xlu0 %v82, 72
    %v84 = vpop.permute.xlu0 %83
    %vm85 = vcmask 654912
    %86 = vst.msk [vmem:[#allocation0] sm:$0x7] %vm85, %v84
    %s87 = scalar_lea.vmem %s0, 8
    %s88 = smov 3
    %v89 = vld [vmem:[%s87] ss:$16 sm:%s88]
    %s90 = scalar_lea.vmem %s0, 38
    %v91 = vld [vmem:[%s90] sm:$0x4]
    %vm92 = vcmask 1042434
    %v93 = vsel %vm92, %v91, %v89
    %94 = vrot.lane.b32.xlu0 %v93, 64
    %v95 = vpop.permute.xlu0 %94
    %vm96 = vcmask 589312
    %97 = vst.msk [vmem:[#allocation0] sm:$0x7] %vm96, %v95
    %s98 = scalar_lea.vmem %s0, 7
    %s99 = smov 3
    %v100 = vld [vmem:[%s98] ss:$16 sm:%s99]
    %s101 = scalar_lea.vmem %s0, 37
    %v102 = vld [vmem:[%s101] sm:$0x4]
    %vm103 = vcmask 1042434
    %v104 = vsel %vm103, %v102, %v100
    %105 = vrot.lane.b32.xlu0 %v104, 56
    %v106 = vpop.permute.xlu0 %105
    %vm107 = vcmask 523712
    %108 = vst.msk [vmem:[#allocation0] sm:$0x7] %vm107, %v106
    %s109 = scalar_lea.vmem %s0, 6
    %s110 = smov 3
    %v111 = vld [vmem:[%s109] ss:$16 sm:%s110]
    %s112 = scalar_lea.vmem %s0, 36
    %v113 = vld [vmem:[%s112] sm:$0x4]
    %vm114 = vcmask 1042434
    %v115 = vsel %vm114, %v113, %v111
    %116 = vrot.lane.b32.xlu0 %v115, 48
    %v117 = vpop.permute.xlu0 %116
    %vm118 = vcmask 458112
    %119 = vst.msk [vmem:[#allocation0] sm:$0x7] %vm118, %v117
    %s120 = scalar_lea.vmem %s0, 5
    %s121 = smov 3
    %v122 = vld [vmem:[%s120] ss:$16 sm:%s121]
    %s123 = scalar_lea.vmem %s0, 35
    %v124 = vld [vmem:[%s123] sm:$0x4]
    %vm125 = vcmask 1042434
    %v126 = vsel %vm125, %v124, %v122
    %127 = vrot.lane.b32.xlu0 %v126, 40
    %v128 = vpop.permute.xlu0 %127
    %vm129 = vcmask 392512
    %130 = vst.msk [vmem:[#allocation0] sm:$0x7] %vm129, %v128
    %s131 = scalar_lea.vmem %s0, 4
    %s132 = smov 3
    %v133 = vld [vmem:[%s131] ss:$16 sm:%s132]
    %s134 = scalar_lea.vmem %s0, 34
    %v135 = vld [vmem:[%s134] sm:$0x4]
    %vm136 = vcmask 1042434
    %v137 = vsel %vm136, %v135, %v133
    %138 = vrot.lane.b32.xlu0 %v137, 32
    %v139 = vpop.permute.xlu0 %138
    %vm140 = vcmask 326912
    %141 = vst.msk [vmem:[#allocation0] sm:$0x7] %vm140, %v139
    %s142 = scalar_lea.vmem %s0, 3
    %s143 = smov 3
    %v144 = vld [vmem:[%s142] ss:$16 sm:%s143]
    %s145 = scalar_lea.vmem %s0, 33
    %v146 = vld [vmem:[%s145] sm:$0x4]
    %vm147 = vcmask 1042434
    %v148 = vsel %vm147, %v146, %v144
    %149 = vrot.lane.b32.xlu0 %v148, 24
    %v150 = vpop.permute.xlu0 %149
    %vm151 = vcmask 261312
    %152 = vst.msk [vmem:[#allocation0] sm:$0x7] %vm151, %v150
    %s153 = scalar_lea.vmem %s0, 2
    %s154 = smov 3
    %v155 = vld [vmem:[%s153] ss:$16 sm:%s154]
    %s156 = scalar_lea.vmem %s0, 32
    %v157 = vld [vmem:[%s156] sm:$0x4]
    %vm158 = vcmask 1042434
    %v159 = vsel %vm158, %v157, %v155
    %160 = vrot.lane.b32.xlu0 %v159, 16
    %v161 = vpop.permute.xlu0 %160
    %vm162 = vcmask 195712
    %163 = vst.msk [vmem:[#allocation0] sm:$0x7] %vm162, %v161
    %s164 = scalar_lea.vmem %s0, 1
    %s165 = smov 3
    %v166 = vld [vmem:[%s164] ss:$16 sm:%s165]
    %s167 = scalar_lea.vmem %s0, 31
    %v168 = vld [vmem:[%s167] sm:$0x4]
    %vm169 = vcmask 1042434
    %v170 = vsel %vm169, %v168, %v166
    %171 = vrot.lane.b32.xlu0 %v170, 8
    %v172 = vpop.permute.xlu0 %171
    %vm173 = vcmask 130112
    %174 = vst.msk [vmem:[#allocation0] sm:$0x7] %vm173, %v172
    %s176 = sshll.u32 1, 4
    %s177 = ssub.s32 %s176, 1
    %v179 = vld [vmem:[#allocation0] sm:%s177]
    %s180 = sshll.u32 1, 4
    %s181 = ssub.s32 %s180, 1
    %182 = vst [vmem:[%s1] sm:%s181] %v179

// kernel: tile.19
$region0: #{tile.19}
  %s0 = inlined_call_operand.vmem [shape: f32[5,2,16,8], index: 0, kind: input, shape index: {}]
  %s1 = inlined_call_operand.vmem [shape: f32[5,2,128], index: 1, kind: output, shape index: {}]
  $region1: #{tile.19} parent=0
    #allocation0 [shape = 'u8[20480]{0}', space=vmem, size = 0x5000, scoped, tag = 'scoped mem for output reshape']
    %s2 = smov 3
    %v3 = vld [vmem:[%s0] ss:$16 sm:%s2]
    %s4 = smov 12
    %v5 = vld [vmem:[%s0] ss:$16 sm:%s4]
    %vm6 = vcmask 1043458
    %v7 = vsel %vm6, %v5, %v3
    %s8 = smov 48
    %v9 = vld [vmem:[%s0] ss:$16 sm:%s8]
    %vm10 = vcmask 1045508
    %v11 = vsel %vm10, %v9, %v7
    %s12 = smov 192
    %v13 = vld [vmem:[%s0] ss:$16 sm:%s12]
    %vm14 = vcmask 1047558
    %v15 = vsel %vm14, %v13, %v11
    %vm16 = vcmask 64512
    %17 = vst.msk [vmem:[#allocation0] sm:$0x3] %vm16, %v15
    %s18 = scalar_lea.vmem [#allocation0], 6
    %19 = vst.msk [vmem:[%s18] sm:$0xc] %vm16, %v15
    %s20 = scalar_lea.vmem [#allocation0], 12
    %21 = vst.msk [vmem:[%s20] sm:$0x30] %vm16, %v15
    %s22 = scalar_lea.vmem [#allocation0], 18
    %23 = vst.msk [vmem:[%s22] sm:$0xc0] %vm16, %v15
    %s24 = scalar_lea.vmem %s0, 128
    %s25 = smov 3
    %v26 = vld [vmem:[%s24] ss:$16 sm:%s25]
    %vm27 = vcmask 64512
    %s28 = scalar_lea.vmem [#allocation0], 32
    %29 = vst.msk [vmem:[%s28] sm:$0x3] %vm27, %v26
    %s30 = scalar_lea.vmem %s0, 15
    %s31 = smov 3
    %v32 = vld [vmem:[%s30] ss:$16 sm:%s31]
    %s33 = scalar_lea.vmem %s0, 15
    %s34 = smov 12
    %v35 = vld [vmem:[%s33] ss:$16 sm:%s34]
    %vm36 = vcmask 1043458
    %v37 = vsel %vm36, %v35, %v32
    %s38 = scalar_lea.vmem %s0, 15
    %s39 = smov 48
    %v40 = vld [vmem:[%s38] ss:$16 sm:%s39]
    %vm41 = vcmask 1045508
    %v42 = vsel %vm41, %v40, %v37
    %s43 = scalar_lea.vmem %s0, 15
    %s44 = smov 192
    %v45 = vld [vmem:[%s43] ss:$16 sm:%s44]
    %vm46 = vcmask 1047558
    %v47 = vsel %vm46, %v45, %v42
    %48 = vrot.lane.b32.xlu0 %v47, 120
    %v49 = vpop.permute.xlu0 %48
    %vm50 = vcmask 1048512
    %51 = vst.msk [vmem:[#allocation0] sm:$0x3] %vm50, %v49
    %s52 = scalar_lea.vmem [#allocation0], 6
    %53 = vst.msk [vmem:[%s52] sm:$0xc] %vm50, %v49
    %s54 = scalar_lea.vmem [#allocation0], 12
    %55 = vst.msk [vmem:[%s54] sm:$0x30] %vm50, %v49
    %s56 = scalar_lea.vmem [#allocation0], 18
    %57 = vst.msk [vmem:[%s56] sm:$0xc0] %vm50, %v49
    %s58 = scalar_lea.vmem %s0, 143
    %s59 = smov 3
    %v60 = vld [vmem:[%s58] ss:$16 sm:%s59]
    %61 = vrot.lane.b32.xlu0 %v60, 120
    %v62 = vpop.permute.xlu0 %61
    %vm63 = vcmask 1048512
    %s64 = scalar_lea.vmem [#allocation0], 32
    %65 = vst.msk [vmem:[%s64] sm:$0x3] %vm63, %v62
    %s66 = scalar_lea.vmem %s0, 14
    %s67 = smov 3
    %v68 = vld [vmem:[%s66] ss:$16 sm:%s67]
    %s69 = scalar_lea.vmem %s0, 14
    %s70 = smov 12
    %v71 = vld [vmem:[%s69] ss:$16 sm:%s70]
    %vm72 = vcmask 1043458
    %v73 = vsel %vm72, %v71, %v68
    %s74 = scalar_lea.vmem %s0, 14
    %s75 = smov 48
    %v76 = vld [vmem:[%s74] ss:$16 sm:%s75]
    %vm77 = vcmask 1045508
    %v78 = vsel %vm77, %v76, %v73
    %s79 = scalar_lea.vmem %s0, 14
    %s80 = smov 192
    %v81 = vld [vmem:[%s79] ss:$16 sm:%s80]
    %vm82 = vcmask 1047558
    %v83 = vsel %vm82, %v81, %v78
    %84 = vrot.lane.b32.xlu0 %v83, 112
    %v85 = vpop.permute.xlu0 %84
    %vm86 = vcmask 982912
    %87 = vst.msk [vmem:[#allocation0] sm:$0x3] %vm86, %v85
    %s88 = scalar_lea.vmem [#allocation0], 6
    %89 = vst.msk [vmem:[%s88] sm:$0xc] %vm86, %v85
    %s90 = scalar_lea.vmem [#allocation0], 12
    %91 = vst.msk [vmem:[%s90] sm:$0x30] %vm86, %v85
    %s92 = scalar_lea.vmem [#allocation0], 18
    %93 = vst.msk [vmem:[%s92] sm:$0xc0] %vm86, %v85
    %s94 = scalar_lea.vmem %s0, 142
    %s95 = smov 3
    %v96 = vld [vmem:[%s94] ss:$16 sm:%s95]
    %97 = vrot.lane.b32.xlu0 %v96, 112
    %v98 = vpop.permute.xlu0 %97
    %vm99 = vcmask 982912
    %s100 = scalar_lea.vmem [#allocation0], 32
    %101 = vst.msk [vmem:[%s100] sm:$0x3] %vm99, %v98
    %s102 = scalar_lea.vmem %s0, 13
    %s103 = smov 3
    %v104 = vld [vmem:[%s102] ss:$16 sm:%s103]
    %s105 = scalar_lea.vmem %s0, 13
    %s106 = smov 12
    %v107 = vld [vmem:[%s105] ss:$16 sm:%s106]
    %vm108 = vcmask 1043458
    %v109 = vsel %vm108, %v107, %v104
    %s110 = scalar_lea.vmem %s0, 13
    %s111 = smov 48
    %v112 = vld [vmem:[%s110] ss:$16 sm:%s111]
    %vm113 = vcmask 1045508
    %v114 = vsel %vm113, %v112, %v109
    %s115 = scalar_lea.vmem %s0, 13
    %s116 = smov 192
    %v117 = vld [vmem:[%s115] ss:$16 sm:%s116]
    %vm118 = vcmask 1047558
    %v119 = vsel %vm118, %v117, %v114
    %120 = vrot.lane.b32.xlu0 %v119, 104
    %v121 = vpop.permute.xlu0 %120
    %vm122 = vcmask 917312
    %123 = vst.msk [vmem:[#allocation0] sm:$0x3] %vm122, %v121
    %s124 = scalar_lea.vmem [#allocation0], 6
    %125 = vst.msk [vmem:[%s124] sm:$0xc] %vm122, %v121
    %s126 = scalar_lea.vmem [#allocation0], 12
    %127 = vst.msk [vmem:[%s126] sm:$0x30] %vm122, %v121
    %s128 = scalar_lea.vmem [#allocation0], 18
    %129 = vst.msk [vmem:[%s128] sm:$0xc0] %vm122, %v121
    %s130 = scalar_lea.vmem %s0, 141
    %s131 = smov 3
    %v132 = vld [vmem:[%s130] ss:$16 sm:%s131]
    %133 = vrot.lane.b32.xlu0 %v132, 104
    %v134 = vpop.permute.xlu0 %133
    %vm135 = vcmask 917312
    %s136 = scalar_lea.vmem [#allocation0], 32
    %137 = vst.msk [vmem:[%s136] sm:$0x3] %vm135, %v134
    %s138 = scalar_lea.vmem %s0, 12
    %s139 = smov 3
    %v140 = vld [vmem:[%s138] ss:$16 sm:%s139]
    %s141 = scalar_lea.vmem %s0, 12
    %s142 = smov 12
    %v143 = vld [vmem:[%s141] ss:$16 sm:%s142]
    %vm144 = vcmask 1043458
    %v145 = vsel %vm144, %v143, %v140
    %s146 = scalar_lea.vmem %s0, 12
    %s147 = smov 48
    %v148 = vld [vmem:[%s146] ss:$16 sm:%s147]
    %vm149 = vcmask 1045508
    %v150 = vsel %vm149, %v148, %v145
    %s151 = scalar_lea.vmem %s0, 12
    %s152 = smov 192
    %v153 = vld [vmem:[%s151] ss:$16 sm:%s152]
    %vm154 = vcmask 1047558
    %v155 = vsel %vm154, %v153, %v150
    %156 = vrot.lane.b32.xlu0 %v155, 96
    %v157 = vpop.permute.xlu0 %156
    %vm158 = vcmask 851712
    %159 = vst.msk [vmem:[#allocation0] sm:$0x3] %vm158, %v157
    %s160 = scalar_lea.vmem [#allocation0], 6
    %161 = vst.msk [vmem:[%s160] sm:$0xc] %vm158, %v157
    %s162 = scalar_lea.vmem [#allocation0], 12
    %163 = vst.msk [vmem:[%s162] sm:$0x30] %vm158, %v157
    %s164 = scalar_lea.vmem [#allocation0], 18
    %165 = vst.msk [vmem:[%s164] sm:$0xc0] %vm158, %v157
    %s166 = scalar_lea.vmem %s0, 140
    %s167 = smov 3
    %v168 = vld [vmem:[%s166] ss:$16 sm:%s167]
    %169 = vrot.lane.b32.xlu0 %v168, 96
    %v170 = vpop.permute.xlu0 %169
    %vm171 = vcmask 851712
    %s172 = scalar_lea.vmem [#allocation0], 32
    %173 = vst.msk [vmem:[%s172] sm:$0x3] %vm171, %v170
    %s174 = scalar_lea.vmem %s0, 11
    %s175 = smov 3
    %v176 = vld [vmem:[%s174] ss:$16 sm:%s175]
    %s177 = scalar_lea.vmem %s0, 11
    %s178 = smov 12
    %v179 = vld [vmem:[%s177] ss:$16 sm:%s178]
    %vm180 = vcmask 1043458
    %v181 = vsel %vm180, %v179, %v176
    %s182 = scalar_lea.vmem %s0, 11
    %s183 = smov 48
    %v184 = vld [vmem:[%s182] ss:$16 sm:%s183]
    %vm185 = vcmask 1045508
    %v186 = vsel %vm185, %v184, %v181
    %s187 = scalar_lea.vmem %s0, 11
    %s188 = smov 192
    %v189 = vld [vmem:[%s187] ss:$16 sm:%s188]
    %vm190 = vcmask 1047558
    %v191 = vsel %vm190, %v189, %v186
    %192 = vrot.lane.b32.xlu0 %v191, 88
    %v193 = vpop.permute.xlu0 %192
    %vm194 = vcmask 786112
    %195 = vst.msk [vmem:[#allocation0] sm:$0x3] %vm194, %v193
    %s196 = scalar_lea.vmem [#allocation0], 6
    %197 = vst.msk [vmem:[%s196] sm:$0xc] %vm194, %v193
    %s198 = scalar_lea.vmem [#allocation0], 12
    %199 = vst.msk [vmem:[%s198] sm:$0x30] %vm194, %v193
    %s200 = scalar_lea.vmem [#allocation0], 18
    %201 = vst.msk [vmem:[%s200] sm:$0xc0] %vm194, %v193
    %s202 = scalar_lea.vmem %s0, 139
    %s203 = smov 3
    %v204 = vld [vmem:[%s202] ss:$16 sm:%s203]
    %205 = vrot.lane.b32.xlu0 %v204, 88
    %v206 = vpop.permute.xlu0 %205
    %vm207 = vcmask 786112
    %s208 = scalar_lea.vmem [#allocation0], 32
    %209 = vst.msk [vmem:[%s208] sm:$0x3] %vm207, %v206
    %s210 = scalar_lea.vmem %s0, 10
    %s211 = smov 3
    %v212 = vld [vmem:[%s210] ss:$16 sm:%s211]
    %s213 = scalar_lea.vmem %s0, 10
    %s214 = smov 12
    %v215 = vld [vmem:[%s213] ss:$16 sm:%s214]
    %vm216 = vcmask 1043458
    %v217 = vsel %vm216, %v215, %v212
    %s218 = scalar_lea.vmem %s0, 10
    %s219 = smov 48
    %v220 = vld [vmem:[%s218] ss:$16 sm:%s219]
    %vm221 = vcmask 1045508
    %v222 = vsel %vm221, %v220, %v217
    %s223 = scalar_lea.vmem %s0, 10
    %s224 = smov 192
    %v225 = vld [vmem:[%s223] ss:$16 sm:%s224]
    %vm226 = vcmask 1047558
    %v227 = vsel %vm226, %v225, %v222
    %228 = vrot.lane.b32.xlu0 %v227, 80
    %v229 = vpop.permute.xlu0 %228
    %vm230 = vcmask 720512
    %231 = vst.msk [vmem:[#allocation0] sm:$0x3] %vm230, %v229
    %s232 = scalar_lea.vmem [#allocation0], 6
    %233 = vst.msk [vmem:[%s232] sm:$0xc] %vm230, %v229
    %s234 = scalar_lea.vmem [#allocation0], 12
    %235 = vst.msk [vmem:[%s234] sm:$0x30] %vm230, %v229
    %s236 = scalar_lea.vmem [#allocation0], 18
    %237 = vst.msk [vmem:[%s236] sm:$0xc0] %vm230, %v229
    %s238 = scalar_lea.vmem %s0, 138
    %s239 = smov 3
    %v240 = vld [vmem:[%s238] ss:$16 sm:%s239]
    %241 = vrot.lane.b32.xlu0 %v240, 80
    %v242 = vpop.permute.xlu0 %241
    %vm243 = vcmask 720512
    %s244 = scalar_lea.vmem [#allocation0], 32
    %245 = vst.msk [vmem:[%s244] sm:$0x3] %vm243, %v242
    %s246 = scalar_lea.vmem %s0, 9
    %s247 = smov 3
    %v248 = vld [vmem:[%s246] ss:$16 sm:%s247]
    %s249 = scalar_lea.vmem %s0, 9
    %s250 = smov 12
    %v251 = vld [vmem:[%s249] ss:$16 sm:%s250]
    %vm252 = vcmask 1043458
    %v253 = vsel %vm252, %v251, %v248
    %s254 = scalar_lea.vmem %s0, 9
    %s255 = smov 48
    %v256 = vld [vmem:[%s254] ss:$16 sm:%s255]
    %vm257 = vcmask 1045508
    %v258 = vsel %vm257, %v256, %v253
    %s259 = scalar_lea.vmem %s0, 9
    %s260 = smov 192
    %v261 = vld [vmem:[%s259] ss:$16 sm:%s260]
    %vm262 = vcmask 1047558
    %v263 = vsel %vm262, %v261, %v258
    %264 = vrot.lane.b32.xlu0 %v263, 72
    %v265 = vpop.permute.xlu0 %264
    %vm266 = vcmask 654912
    %267 = vst.msk [vmem:[#allocation0] sm:$0x3] %vm266, %v265
    %s268 = scalar_lea.vmem [#allocation0], 6
    %269 = vst.msk [vmem:[%s268] sm:$0xc] %vm266, %v265
    %s270 = scalar_lea.vmem [#allocation0], 12
    %271 = vst.msk [vmem:[%s270] sm:$0x30] %vm266, %v265
    %s272 = scalar_lea.vmem [#allocation0], 18
    %273 = vst.msk [vmem:[%s272] sm:$0xc0] %vm266, %v265
    %s274 = scalar_lea.vmem %s0, 137
    %s275 = smov 3
    %v276 = vld [vmem:[%s274] ss:$16 sm:%s275]
    %277 = vrot.lane.b32.xlu0 %v276, 72
    %v278 = vpop.permute.xlu0 %277
    %vm279 = vcmask 654912
    %s280 = scalar_lea.vmem [#allocation0], 32
    %281 = vst.msk [vmem:[%s280] sm:$0x3] %vm279, %v278
    %s282 = scalar_lea.vmem %s0, 8
    %s283 = smov 3
    %v284 = vld [vmem:[%s282] ss:$16 sm:%s283]
    %s285 = scalar_lea.vmem %s0, 8
    %s286 = smov 12
    %v287 = vld [vmem:[%s285] ss:$16 sm:%s286]
    %vm288 = vcmask 1043458
    %v289 = vsel %vm288, %v287, %v284
    %s290 = scalar_lea.vmem %s0, 8
    %s291 = smov 48
    %v292 = vld [vmem:[%s290] ss:$16 sm:%s291]
    %vm293 = vcmask 1045508
    %v294 = vsel %vm293, %v292, %v289
    %s295 = scalar_lea.vmem %s0, 8
    %s296 = smov 192
    %v297 = vld [vmem:[%s295] ss:$16 sm:%s296]
    %vm298 = vcmask 1047558
    %v299 = vsel %vm298, %v297, %v294
    %300 = vrot.lane.b32.xlu0 %v299, 64
    %v301 = vpop.permute.xlu0 %300
    %vm302 = vcmask 589312
    %303 = vst.msk [vmem:[#allocation0] sm:$0x3] %vm302, %v301
    %s304 = scalar_lea.vmem [#allocation0], 6
    %305 = vst.msk [vmem:[%s304] sm:$0xc] %vm302, %v301
    %s306 = scalar_lea.vmem [#allocation0], 12
    %307 = vst.msk [vmem:[%s306] sm:$0x30] %vm302, %v301
    %s308 = scalar_lea.vmem [#allocation0], 18
    %309 = vst.msk [vmem:[%s308] sm:$0xc0] %vm302, %v301
    %s310 = scalar_lea.vmem %s0, 136
    %s311 = smov 3
    %v312 = vld [vmem:[%s310] ss:$16 sm:%s311]
    %313 = vrot.lane.b32.xlu0 %v312, 64
    %v314 = vpop.permute.xlu0 %313
    %vm315 = vcmask 589312
    %s316 = scalar_lea.vmem [#allocation0], 32
    %317 = vst.msk [vmem:[%s316] sm:$0x3] %vm315, %v314
    %s318 = scalar_lea.vmem %s0, 7
    %s319 = smov 3
    %v320 = vld [vmem:[%s318] ss:$16 sm:%s319]
    %s321 = scalar_lea.vmem %s0, 7
    %s322 = smov 12
    %v323 = vld [vmem:[%s321] ss:$16 sm:%s322]
    %vm324 = vcmask 1043458
    %v325 = vsel %vm324, %v323, %v320
    %s326 = scalar_lea.vmem %s0, 7
    %s327 = smov 48
    %v328 = vld [vmem:[%s326] ss:$16 sm:%s327]
    %vm329 = vcmask 1045508
    %v330 = vsel %vm329, %v328, %v325
    %s331 = scalar_lea.vmem %s0, 7
    %s332 = smov 192
    %v333 = vld [vmem:[%s331] ss:$16 sm:%s332]
    %vm334 = vcmask 1047558
    %v335 = vsel %vm334, %v333, %v330
    %336 = vrot.lane.b32.xlu0 %v335, 56
    %v337 = vpop.permute.xlu0 %336
    %vm338 = vcmask 523712
    %339 = vst.msk [vmem:[#allocation0] sm:$0x3] %vm338, %v337
    %s340 = scalar_lea.vmem [#allocation0], 6
    %341 = vst.msk [vmem:[%s340] sm:$0xc] %vm338, %v337
    %s342 = scalar_lea.vmem [#allocation0], 12
    %343 = vst.msk [vmem:[%s342] sm:$0x30] %vm338, %v337
    %s344 = scalar_lea.vmem [#allocation0], 18
    %345 = vst.msk [vmem:[%s344] sm:$0xc0] %vm338, %v337
    %s346 = scalar_lea.vmem %s0, 135
    %s347 = smov 3
    %v348 = vld [vmem:[%s346] ss:$16 sm:%s347]
    %349 = vrot.lane.b32.xlu0 %v348, 56
    %v350 = vpop.permute.xlu0 %349
    %vm351 = vcmask 523712
    %s352 = scalar_lea.vmem [#allocation0], 32
    %353 = vst.msk [vmem:[%s352] sm:$0x3] %vm351, %v350
    %s354 = scalar_lea.vmem %s0, 6
    %s355 = smov 3
    %v356 = vld [vmem:[%s354] ss:$16 sm:%s355]
    %s357 = scalar_lea.vmem %s0, 6
    %s358 = smov 12
    %v359 = vld [vmem:[%s357] ss:$16 sm:%s358]
    %vm360 = vcmask 1043458
    %v361 = vsel %vm360, %v359, %v356
    %s362 = scalar_lea.vmem %s0, 6
    %s363 = smov 48
    %v364 = vld [vmem:[%s362] ss:$16 sm:%s363]
    %vm365 = vcmask 1045508
    %v366 = vsel %vm365, %v364, %v361
    %s367 = scalar_lea.vmem %s0, 6
    %s368 = smov 192
    %v369 = vld [vmem:[%s367] ss:$16 sm:%s368]
    %vm370 = vcmask 1047558
    %v371 = vsel %vm370, %v369, %v366
    %372 = vrot.lane.b32.xlu0 %v371, 48
    %v373 = vpop.permute.xlu0 %372
    %vm374 = vcmask 458112
    %375 = vst.msk [vmem:[#allocation0] sm:$0x3] %vm374, %v373
    %s376 = scalar_lea.vmem [#allocation0], 6
    %377 = vst.msk [vmem:[%s376] sm:$0xc] %vm374, %v373
    %s378 = scalar_lea.vmem [#allocation0], 12
    %379 = vst.msk [vmem:[%s378] sm:$0x30] %vm374, %v373
    %s380 = scalar_lea.vmem [#allocation0], 18
    %381 = vst.msk [vmem:[%s380] sm:$0xc0] %vm374, %v373
    %s382 = scalar_lea.vmem %s0, 134
    %s383 = smov 3
    %v384 = vld [vmem:[%s382] ss:$16 sm:%s383]
    %385 = vrot.lane.b32.xlu0 %v384, 48
    %v386 = vpop.permute.xlu0 %385
    %vm387 = vcmask 458112
    %s388 = scalar_lea.vmem [#allocation0], 32
    %389 = vst.msk [vmem:[%s388] sm:$0x3] %vm387, %v386
    %s390 = scalar_lea.vmem %s0, 5
    %s391 = smov 3
    %v392 = vld [vmem:[%s390] ss:$16 sm:%s391]
    %s393 = scalar_lea.vmem %s0, 5
    %s394 = smov 12
    %v395 = vld [vmem:[%s393] ss:$16 sm:%s394]
    %vm396 = vcmask 1043458
    %v397 = vsel %vm396, %v395, %v392
    %s398 = scalar_lea.vmem %s0, 5
    %s399 = smov 48
    %v400 = vld [vmem:[%s398] ss:$16 sm:%s399]
    %vm401 = vcmask 1045508
    %v402 = vsel %vm401, %v400, %v397
    %s403 = scalar_lea.vmem %s0, 5
    %s404 = smov 192
    %v405 = vld [vmem:[%s403] ss:$16 sm:%s404]
    %vm406 = vcmask 1047558
    %v407 = vsel %vm406, %v405, %v402
    %408 = vrot.lane.b32.xlu0 %v407, 40
    %v409 = vpop.permute.xlu0 %408
    %vm410 = vcmask 392512
    %411 = vst.msk [vmem:[#allocation0] sm:$0x3] %vm410, %v409
    %s412 = scalar_lea.vmem [#allocation0], 6
    %413 = vst.msk [vmem:[%s412] sm:$0xc] %vm410, %v409
    %s414 = scalar_lea.vmem [#allocation0], 12
    %415 = vst.msk [vmem:[%s414] sm:$0x30] %vm410, %v409
    %s416 = scalar_lea.vmem [#allocation0], 18
    %417 = vst.msk [vmem:[%s416] sm:$0xc0] %vm410, %v409
    %s418 = scalar_lea.vmem %s0, 133
    %s419 = smov 3
    %v420 = vld [vmem:[%s418] ss:$16 sm:%s419]
    %421 = vrot.lane.b32.xlu0 %v420, 40
    %v422 = vpop.permute.xlu0 %421
    %vm423 = vcmask 392512
    %s424 = scalar_lea.vmem [#allocation0], 32
    %425 = vst.msk [vmem:[%s424] sm:$0x3] %vm423, %v422
    %s426 = scalar_lea.vmem %s0, 4
    %s427 = smov 3
    %v428 = vld [vmem:[%s426] ss:$16 sm:%s427]
    %s429 = scalar_lea.vmem %s0, 4
    %s430 = smov 12
    %v431 = vld [vmem:[%s429] ss:$16 sm:%s430]
    %vm432 = vcmask 1043458
    %v433 = vsel %vm432, %v431, %v428
    %s434 = scalar_lea.vmem %s0, 4
    %s435 = smov 48
    %v436 = vld [vmem:[%s434] ss:$16 sm:%s435]
    %vm437 = vcmask 1045508
    %v438 = vsel %vm437, %v436, %v433
    %s439 = scalar_lea.vmem %s0, 4
    %s440 = smov 192
    %v441 = vld [vmem:[%s439] ss:$16 sm:%s440]
    %vm442 = vcmask 1047558
    %v443 = vsel %vm442, %v441, %v438
    %444 = vrot.lane.b32.xlu0 %v443, 32
    %v445 = vpop.permute.xlu0 %444
    %vm446 = vcmask 326912
    %447 = vst.msk [vmem:[#allocation0] sm:$0x3] %vm446, %v445
    %s448 = scalar_lea.vmem [#allocation0], 6
    %449 = vst.msk [vmem:[%s448] sm:$0xc] %vm446, %v445
    %s450 = scalar_lea.vmem [#allocation0], 12
    %451 = vst.msk [vmem:[%s450] sm:$0x30] %vm446, %v445
    %s452 = scalar_lea.vmem [#allocation0], 18
    %453 = vst.msk [vmem:[%s452] sm:$0xc0] %vm446, %v445
    %s454 = scalar_lea.vmem %s0, 132
    %s455 = smov 3
    %v456 = vld [vmem:[%s454] ss:$16 sm:%s455]
    %457 = vrot.lane.b32.xlu0 %v456, 32
    %v458 = vpop.permute.xlu0 %457
    %vm459 = vcmask 326912
    %s460 = scalar_lea.vmem [#allocation0], 32
    %461 = vst.msk [vmem:[%s460] sm:$0x3] %vm459, %v458
    %s462 = scalar_lea.vmem %s0, 3
    %s463 = smov 3
    %v464 = vld [vmem:[%s462] ss:$16 sm:%s463]
    %s465 = scalar_lea.vmem %s0, 3
    %s466 = smov 12
    %v467 = vld [vmem:[%s465] ss:$16 sm:%s466]
    %vm468 = vcmask 1043458
    %v469 = vsel %vm468, %v467, %v464
    %s470 = scalar_lea.vmem %s0, 3
    %s471 = smov 48
    %v472 = vld [vmem:[%s470] ss:$16 sm:%s471]
    %vm473 = vcmask 1045508
    %v474 = vsel %vm473, %v472, %v469
    %s475 = scalar_lea.vmem %s0, 3
    %s476 = smov 192
    %v477 = vld [vmem:[%s475] ss:$16 sm:%s476]
    %vm478 = vcmask 1047558
    %v479 = vsel %vm478, %v477, %v474
    %480 = vrot.lane.b32.xlu0 %v479, 24
    %v481 = vpop.permute.xlu0 %480
    %vm482 = vcmask 261312
    %483 = vst.msk [vmem:[#allocation0] sm:$0x3] %vm482, %v481
    %s484 = scalar_lea.vmem [#allocation0], 6
    %485 = vst.msk [vmem:[%s484] sm:$0xc] %vm482, %v481
    %s486 = scalar_lea.vmem [#allocation0], 12
    %487 = vst.msk [vmem:[%s486] sm:$0x30] %vm482, %v481
    %s488 = scalar_lea.vmem [#allocation0], 18
    %489 = vst.msk [vmem:[%s488] sm:$0xc0] %vm482, %v481
    %s490 = scalar_lea.vmem %s0, 131
    %s491 = smov 3
    %v492 = vld [vmem:[%s490] ss:$16 sm:%s491]
    %493 = vrot.lane.b32.xlu0 %v492, 24
    %v494 = vpop.permute.xlu0 %493
    %vm495 = vcmask 261312
    %s496 = scalar_lea.vmem [#allocation0], 32
    %497 = vst.msk [vmem:[%s496] sm:$0x3] %vm495, %v494
    %s498 = scalar_lea.vmem %s0, 2
    %s499 = smov 3
    %v500 = vld [vmem:[%s498] ss:$16 sm:%s499]
    %s501 = scalar_lea.vmem %s0, 2
    %s502 = smov 12
    %v503 = vld [vmem:[%s501] ss:$16 sm:%s502]
    %vm504 = vcmask 1043458
    %v505 = vsel %vm504, %v503, %v500
    %s506 = scalar_lea.vmem %s0, 2
    %s507 = smov 48
    %v508 = vld [vmem:[%s506] ss:$16 sm:%s507]
    %vm509 = vcmask 1045508
    %v510 = vsel %vm509, %v508, %v505
    %s511 = scalar_lea.vmem %s0, 2
    %s512 = smov 192
    %v513 = vld [vmem:[%s511] ss:$16 sm:%s512]
    %vm514 = vcmask 1047558
    %v515 = vsel %vm514, %v513, %v510
    %516 = vrot.lane.b32.xlu0 %v515, 16
    %v517 = vpop.permute.xlu0 %516
    %vm518 = vcmask 195712
    %519 = vst.msk [vmem:[#allocation0] sm:$0x3] %vm518, %v517
    %s520 = scalar_lea.vmem [#allocation0], 6
    %521 = vst.msk [vmem:[%s520] sm:$0xc] %vm518, %v517
    %s522 = scalar_lea.vmem [#allocation0], 12
    %523 = vst.msk [vmem:[%s522] sm:$0x30] %vm518, %v517
    %s524 = scalar_lea.vmem [#allocation0], 18
    %525 = vst.msk [vmem:[%s524] sm:$0xc0] %vm518, %v517
    %s526 = scalar_lea.vmem %s0, 130
    %s527 = smov 3
    %v528 = vld [vmem:[%s526] ss:$16 sm:%s527]
    %529 = vrot.lane.b32.xlu0 %v528, 16
    %v530 = vpop.permute.xlu0 %529
    %vm531 = vcmask 195712
    %s532 = scalar_lea.vmem [#allocation0], 32
    %533 = vst.msk [vmem:[%s532] sm:$0x3] %vm531, %v530
    %s534 = scalar_lea.vmem %s0, 1
    %s535 = smov 3
    %v536 = vld [vmem:[%s534] ss:$16 sm:%s535]
    %s537 = scalar_lea.vmem %s0, 1
    %s538 = smov 12
    %v539 = vld [vmem:[%s537] ss:$16 sm:%s538]
    %vm540 = vcmask 1043458
    %v541 = vsel %vm540, %v539, %v536
    %s542 = scalar_lea.vmem %s0, 1
    %s543 = smov 48
    %v544 = vld [vmem:[%s542] ss:$16 sm:%s543]
    %vm545 = vcmask 1045508
    %v546 = vsel %vm545, %v544, %v541
    %s547 = scalar_lea.vmem %s0, 1
    %s548 = smov 192
    %v549 = vld [vmem:[%s547] ss:$16 sm:%s548]
    %vm550 = vcmask 1047558
    %v551 = vsel %vm550, %v549, %v546
    %552 = vrot.lane.b32.xlu0 %v551, 8
    %v553 = vpop.permute.xlu0 %552
    %vm554 = vcmask 130112
    %555 = vst.msk [vmem:[#allocation0] sm:$0x3] %vm554, %v553
    %s556 = scalar_lea.vmem [#allocation0], 6
    %557 = vst.msk [vmem:[%s556] sm:$0xc] %vm554, %v553
    %s558 = scalar_lea.vmem [#allocation0], 12
    %559 = vst.msk [vmem:[%s558] sm:$0x30] %vm554, %v553
    %s560 = scalar_lea.vmem [#allocation0], 18
    %561 = vst.msk [vmem:[%s560] sm:$0xc0] %vm554, %v553
    %s562 = scalar_lea.vmem %s0, 129
    %s563 = smov 3
    %v564 = vld [vmem:[%s562] ss:$16 sm:%s563]
    %565 = vrot.lane.b32.xlu0 %v564, 8
    %v566 = vpop.permute.xlu0 %565
    %vm567 = vcmask 130112
    %s568 = scalar_lea.vmem [#allocation0], 32
    %569 = vst.msk [vmem:[%s568] sm:$0x3] %vm567, %v566
    %s571 = sshll.u32 1, 2
    %s572 = ssub.s32 %s571, 1
    %v574 = vld [vmem:[#allocation0] sm:%s572]
    %s575 = sshll.u32 1, 2
    %s576 = ssub.s32 %s575, 1
    %577 = vst [vmem:[%s1] sm:%s576] %v574
    %s578 = scalar_lea.vmem [#allocation0], 8
    %v579 = vld [vmem:[%s578] sm:%s572]
    %s580 = sshll.u32 1, 2
    %s581 = ssub.s32 %s580, 1
    %s582 = scalar_lea.vmem %s1, 2
    %583 = vst [vmem:[%s582] sm:%s581] %v579
    %s584 = scalar_lea.vmem [#allocation0], 16
    %v585 = vld [vmem:[%s584] sm:%s572]
    %s586 = sshll.u32 1, 2
    %s587 = ssub.s32 %s586, 1
    %s588 = smul.addr 2, 2
    %s589 = scalar_lea.vmem %s1, %s588
    %590 = vst [vmem:[%s589] sm:%s587] %v585
    %s591 = scalar_lea.vmem [#allocation0], 24
    %v592 = vld [vmem:[%s591] sm:%s572]
    %s593 = sshll.u32 1, 2
    %s594 = ssub.s32 %s593, 1
    %s595 = smul.addr 2, 3
    %s596 = scalar_lea.vmem %s1, %s595
    %597 = vst [vmem:[%s596] sm:%s594] %v592
    %s598 = scalar_lea.vmem [#allocation0], 32
    %v599 = vld [vmem:[%s598] sm:%s572]
    %s600 = sshll.u32 1, 2
    %s601 = ssub.s32 %s600, 1
    %s602 = smul.addr 2, 4
    %s603 = scalar_lea.vmem %s1, %s602
    %604 = vst [vmem:[%s603] sm:%s601] %v599

// kernel: l0layer_forward.3
$region0: #{l0layer_forward.3}
  #allocation0 [shape = 'u32[]', space=smem, size = 0x4, offset = 0x4, fixed_abs, tag = 'smem constant byte address 0x4 - core index']
  #allocation1 [shape = 'u32[144,128]{1,0:T(1,128)}', space=vmem, size = 0x12000, scoped, tag = 'internal scratch']
  %s0 = inlined_call_operand.vmem [shape: f32[32,128], index: 0, kind: input, shape index: {}]
  %s1 = inlined_call_operand.vmem [shape: f32[128,128], index: 1, kind: input, shape index: {}]
  %s2 = inlined_call_operand.vmem [shape: f32[3,128,128], index: 2, kind: input, shape index: {}]
  %s3 = inlined_call_operand.vmem [shape: f32[3,128,128], index: 3, kind: input, shape index: {}]
  %s4 = inlined_call_operand.vmem [shape: f32[3,128,128], index: 4, kind: input, shape index: {}]
  %s5 = inlined_call_operand.vmem [shape: f32[3,128,128], index: 5, kind: input, shape index: {}]
  %s6 = inlined_call_operand.vmem [shape: f32[32,32], index: 6, kind: input, shape index: {}]
  %s7 = inlined_call_operand.vmem [shape: f32[32,32], index: 7, kind: input, shape index: {}]
  %s8 = inlined_call_operand.vmem [shape: f32[128,128], index: 8, kind: input, shape index: {}]
  %s9 = inlined_call_operand.vmem [shape: f32[5,2,128], index: 9, kind: input, shape index: {}]
  %s10 = inlined_call_operand.vmem [shape: f32[3,128], index: 10, kind: input, shape index: {}]
  %s11 = inlined_call_operand.vmem [shape: f32[32,128], index: 11, kind: output, shape index: {}]
  %s12 = sld [smem:[#allocation0]]
  $region54: #{l0layer_forward.3} parent=0
    _
  %s14 = ssub.s32 1, %s12
  %s15 = scalar_select 0, %s14, %s12
  // Predicated region
  $region2: #{l0layer_forward.3} parent=0 // pred_check
    _
  $region3: #{l0layer_forward.3} parent=0 // pred_check_branch
    %17 = sbr.rel (0) target = $region5
  $region4: #{l0layer_forward.3} parent=0 // pred_region
    _
  $region5: #{l0layer_forward.3} parent=0 // pred_fallthru
    _
  // Predicated region
  $region6: #{l0layer_forward.3} parent=0 // pred_check
    _
  $region7: #{l0layer_forward.3} parent=0 // pred_check_branch
    %19 = sbr.rel (0) target = $region9
  $region8: #{l0layer_forward.3} parent=0 // pred_region
    _
  $region9: #{l0layer_forward.3} parent=0 // pred_fallthru
    _
  // Predicated region
  $region10: #{l0layer_forward.3} parent=0 // pred_check
    _
  $region11: #{l0layer_forward.3} parent=0 // pred_check_branch
    %21 = sbr.rel (0) target = $region13
  $region12: #{l0layer_forward.3} parent=0 // pred_region
    _
  $region13: #{l0layer_forward.3} parent=0 // pred_fallthru
    _
  // Predicated region
  $region14: #{l0layer_forward.3} parent=0 // pred_check
    _
  $region15: #{l0layer_forward.3} parent=0 // pred_check_branch
    %23 = sbr.rel (0) target = $region17
  $region16: #{l0layer_forward.3} parent=0 // pred_region
    _
  $region17: #{l0layer_forward.3} parent=0 // pred_fallthru
    _
  // Predicated region
  $region18: #{l0layer_forward.3} parent=0 // pred_check
    _
  $region19: #{l0layer_forward.3} parent=0 // pred_check_branch
    %25 = sbr.rel (0) target = $region21
  $region20: #{l0layer_forward.3} parent=0 // pred_region
    _
  $region21: #{l0layer_forward.3} parent=0 // pred_fallthru
    _
  // Predicated region
  $region22: #{l0layer_forward.3} parent=0 // pred_check
    _
  $region23: #{l0layer_forward.3} parent=0 // pred_check_branch
    %27 = sbr.rel (0) target = $region25
  $region24: #{l0layer_forward.3} parent=0 // pred_region
    _
  $region25: #{l0layer_forward.3} parent=0 // pred_fallthru
    _
  // Predicated region
  $region26: #{l0layer_forward.3} parent=0 // pred_check
    _
  $region27: #{l0layer_forward.3} parent=0 // pred_check_branch
    %29 = sbr.rel (0) target = $region29
  $region28: #{l0layer_forward.3} parent=0 // pred_region
    _
  $region29: #{l0layer_forward.3} parent=0 // pred_fallthru
    _
  // Predicated region
  $region30: #{l0layer_forward.3} parent=0 // pred_check
    _
  $region31: #{l0layer_forward.3} parent=0 // pred_check_branch
    %31 = sbr.rel (0) target = $region33
  $region32: #{l0layer_forward.3} parent=0 // pred_region
    _
  $region33: #{l0layer_forward.3} parent=0 // pred_fallthru
    _
  // Predicated region
  $region34: #{l0layer_forward.3} parent=0 // pred_check
    _
  $region35: #{l0layer_forward.3} parent=0 // pred_check_branch
    %33 = sbr.rel (0) target = $region37
  $region36: #{l0layer_forward.3} parent=0 // pred_region
    _
  $region37: #{l0layer_forward.3} parent=0 // pred_fallthru
    _
  // Predicated region
  $region38: #{l0layer_forward.3} parent=0 // pred_check
    _
  $region39: #{l0layer_forward.3} parent=0 // pred_check_branch
    %35 = sbr.rel (0) target = $region41
  $region40: #{l0layer_forward.3} parent=0 // pred_region
    _
  $region41: #{l0layer_forward.3} parent=0 // pred_fallthru
    _
  // Predicated region
  $region42: #{l0layer_forward.3} parent=0 // pred_check
    _
  $region43: #{l0layer_forward.3} parent=0 // pred_check_branch
    %37 = sbr.rel (0) target = $region45
  $region44: #{l0layer_forward.3} parent=0 // pred_region
    _
  $region45: #{l0layer_forward.3} parent=0 // pred_fallthru
    _
  %v38 = vld [vmem:[%s0] sm:$0xff]
  %v39 = vld [vmem:[%s0 + $0x8] sm:$0xff]
  %v40 = vld [vmem:[%s0 + $0x10] sm:$0xff]
  %v41 = vld [vmem:[%s0 + $0x18] sm:$0xff]
  %v42 = vld [vmem:[%s1] sm:$0xff]
  %v43 = vld [vmem:[%s1 + $0x8] sm:$0xff]
  %v44 = vld [vmem:[%s1 + $0x10] sm:$0xff]
  %v45 = vld [vmem:[%s1 + $0x18] sm:$0xff]
  %v46 = vld [vmem:[%s1 + $0x20] sm:$0xff]
  %v47 = vld [vmem:[%s1 + $0x28] sm:$0xff]
  %v48 = vld [vmem:[%s1 + $0x30] sm:$0xff]
  %v49 = vld [vmem:[%s1 + $0x38] sm:$0xff]
  %v50 = vld [vmem:[%s1 + $0x40] sm:$0xff]
  %v51 = vld [vmem:[%s1 + $0x48] sm:$0xff]
  %v52 = vld [vmem:[%s1 + $0x50] sm:$0xff]
  %v53 = vld [vmem:[%s1 + $0x58] sm:$0xff]
  %v54 = vld [vmem:[%s1 + $0x60] sm:$0xff]
  %v55 = vld [vmem:[%s1 + $0x68] sm:$0xff]
  %v56 = vld [vmem:[%s1 + $0x70] sm:$0xff]
  %v57 = vld [vmem:[%s1 + $0x78] sm:$0xff]
  %58 = vmatprep.subr.mxu0 0.0
  %59 = vmatpush1.msra.mxu0 %v57
  %60 = vmatprep.subr.mxu0 0.0
  %61 = vmatpush1.msra.mxu0 %v56
  %62 = vmatprep.subr.mxu0 0.0
  %63 = vmatpush1.msra.mxu0 %v55
  %64 = vmatprep.subr.mxu0 0.0
  %65 = vmatpush1.msra.mxu0 %v54
  %66 = vmatprep.subr.mxu0 0.0
  %67 = vmatpush1.msra.mxu0 %v53
  %68 = vmatprep.subr.mxu0 0.0
  %69 = vmatpush1.msra.mxu0 %v52
  %70 = vmatprep.subr.mxu0 0.0
  %71 = vmatpush1.msra.mxu0 %v51
  %72 = vmatprep.subr.mxu0 0.0
  %73 = vmatpush1.msra.mxu0 %v50
  %74 = vmatprep.subr.mxu0 0.0
  %75 = vmatpush1.msra.mxu0 %v49
  %76 = vmatprep.subr.mxu0 0.0
  %77 = vmatpush1.msra.mxu0 %v48
  %78 = vmatprep.subr.mxu0 0.0
  %79 = vmatpush1.msra.mxu0 %v47
  %80 = vmatprep.subr.mxu0 0.0
  %81 = vmatpush1.msra.mxu0 %v46
  %82 = vmatprep.subr.mxu0 0.0
  %83 = vmatpush1.msra.mxu0 %v45
  %84 = vmatprep.subr.mxu0 0.0
  %85 = vmatpush1.msra.mxu0 %v44
  %86 = vmatprep.subr.mxu0 0.0
  %87 = vmatpush1.msra.mxu0 %v43
  %88 = vmatprep.subr.mxu0 0.0
  %89 = vmatpush1.msra.mxu0 %v42
  %90 = vmatprep.subr.mxu0 0.0
  %91 = vmatpush2.msra.mxu0 0.0
  %92 = vmatprep.subr.mxu0 0.0
  %93 = vmatpush2.msra.mxu0 0.0
  %94 = vmatprep.subr.mxu0 0.0
  %95 = vmatpush2.msra.mxu0 0.0
  %96 = vmatprep.subr.mxu0 0.0
  %97 = vmatpush2.msra.mxu0 0.0
  %98 = vmatprep.subr.mxu0 0.0
  %99 = vmatpush2.msra.mxu0 0.0
  %100 = vmatprep.subr.mxu0 0.0
  %101 = vmatpush2.msra.mxu0 0.0
  %102 = vmatprep.subr.mxu0 0.0
  %103 = vmatpush2.msra.mxu0 0.0
  %104 = vmatprep.subr.mxu0 0.0
  %105 = vmatpush2.msra.mxu0 0.0
  %106 = vmatprep.subr.mxu0 0.0
  %107 = vmatpush2.msra.mxu0 0.0
  %108 = vmatprep.subr.mxu0 0.0
  %109 = vmatpush2.msra.mxu0 0.0
  %110 = vmatprep.subr.mxu0 0.0
  %111 = vmatpush2.msra.mxu0 0.0
  %112 = vmatprep.subr.mxu0 0.0
  %113 = vmatpush2.msra.mxu0 0.0
  %114 = vmatprep.subr.mxu0 0.0
  %115 = vmatpush2.msra.mxu0 0.0
  %116 = vmatprep.subr.mxu0 0.0
  %117 = vmatpush2.msra.mxu0 0.0
  %118 = vmatprep.subr.mxu0 0.0
  %119 = vmatpush2.msra.mxu0 0.0
  %120 = vmatprep.subr.mxu0 0.0
  %121 = vmatpush2.msra.mxu0 0.0
  %122 = vmatprep.mubr.f32.mxu0 0.0
  %123 = vmatmul.mubr.f32.gmra.mxu0 %v38
  %v124 = vpop.f32.mrf.mxu0
  %v125 = vadd.f32 0.0, %v124
  %v126 = vpop.f32.mrf.mxu0
  %127 = vmatprep.mubr.f32.mxu0 0.0
  %128 = vmatmul.mubr.f32.gmra.mxu0 %v39
  %v129 = vpop.f32.mrf.mxu0
  %v130 = vadd.f32 0.0, %v129
  %v131 = vpop.f32.mrf.mxu0
  %132 = vmatprep.mubr.f32.mxu0 0.0
  %133 = vmatmul.mubr.f32.gmra.mxu0 %v40
  %v134 = vpop.f32.mrf.mxu0
  %v135 = vadd.f32 0.0, %v134
  %v136 = vpop.f32.mrf.mxu0
  %137 = vmatprep.mubr.f32.mxu0 0.0
  %138 = vmatmul.mubr.f32.gmra.mxu0 %v41
  %v139 = vpop.f32.mrf.mxu0
  %v140 = vadd.f32 0.0, %v139
  %v141 = vpop.f32.mrf.mxu0
  %142 = vdwg.mxu0
  %v143 = vld [vmem:[%s8] sm:$0xff]
  %v144 = vld [vmem:[%s8 + $0x8] sm:$0xff]
  %v145 = vld [vmem:[%s8 + $0x10] sm:$0xff]
  %v146 = vld [vmem:[%s8 + $0x18] sm:$0xff]
  %v147 = vld [vmem:[%s8 + $0x20] sm:$0xff]
  %v148 = vld [vmem:[%s8 + $0x28] sm:$0xff]
  %v149 = vld [vmem:[%s8 + $0x30] sm:$0xff]
  %v150 = vld [vmem:[%s8 + $0x38] sm:$0xff]
  %v151 = vld [vmem:[%s8 + $0x40] sm:$0xff]
  %v152 = vld [vmem:[%s8 + $0x48] sm:$0xff]
  %v153 = vld [vmem:[%s8 + $0x50] sm:$0xff]
  %v154 = vld [vmem:[%s8 + $0x58] sm:$0xff]
  %v155 = vld [vmem:[%s8 + $0x60] sm:$0xff]
  %v156 = vld [vmem:[%s8 + $0x68] sm:$0xff]
  %v157 = vld [vmem:[%s8 + $0x70] sm:$0xff]
  %v158 = vld [vmem:[%s8 + $0x78] sm:$0xff]
  %159 = vmatprep.subr.mxu0 0.0
  %160 = vmatpush1.msra.mxu0 %v158
  %161 = vmatprep.subr.mxu0 0.0
  %162 = vmatpush1.msra.mxu0 %v157
  %163 = vmatprep.subr.mxu0 0.0
  %164 = vmatpush1.msra.mxu0 %v156
  %165 = vmatprep.subr.mxu0 0.0
  %166 = vmatpush1.msra.mxu0 %v155
  %167 = vmatprep.subr.mxu0 0.0
  %168 = vmatpush1.msra.mxu0 %v154
  %169 = vmatprep.subr.mxu0 0.0
  %170 = vmatpush1.msra.mxu0 %v153
  %171 = vmatprep.subr.mxu0 0.0
  %172 = vmatpush1.msra.mxu0 %v152
  %173 = vmatprep.subr.mxu0 0.0
  %174 = vmatpush1.msra.mxu0 %v151
  %175 = vmatprep.subr.mxu0 0.0
  %176 = vmatpush1.msra.mxu0 %v150
  %177 = vmatprep.subr.mxu0 0.0
  %178 = vmatpush1.msra.mxu0 %v149
  %179 = vmatprep.subr.mxu0 0.0
  %180 = vmatpush1.msra.mxu0 %v148
  %181 = vmatprep.subr.mxu0 0.0
  %182 = vmatpush1.msra.mxu0 %v147
  %183 = vmatprep.subr.mxu0 0.0
  %184 = vmatpush1.msra.mxu0 %v146
  %185 = vmatprep.subr.mxu0 0.0
  %186 = vmatpush1.msra.mxu0 %v145
  %187 = vmatprep.subr.mxu0 0.0
  %188 = vmatpush1.msra.mxu0 %v144
  %189 = vmatprep.subr.mxu0 0.0
  %190 = vmatpush1.msra.mxu0 %v143
  %191 = vmatprep.subr.mxu0 0.0
  %192 = vmatpush2.msra.mxu0 0.0
  %193 = vmatprep.subr.mxu0 0.0
  %194 = vmatpush2.msra.mxu0 0.0
  %195 = vmatprep.subr.mxu0 0.0
  %196 = vmatpush2.msra.mxu0 0.0
  %197 = vmatprep.subr.mxu0 0.0
  %198 = vmatpush2.msra.mxu0 0.0
  %199 = vmatprep.subr.mxu0 0.0
  %200 = vmatpush2.msra.mxu0 0.0
  %201 = vmatprep.subr.mxu0 0.0
  %202 = vmatpush2.msra.mxu0 0.0
  %203 = vmatprep.subr.mxu0 0.0
  %204 = vmatpush2.msra.mxu0 0.0
  %205 = vmatprep.subr.mxu0 0.0
  %206 = vmatpush2.msra.mxu0 0.0
  %207 = vmatprep.subr.mxu0 0.0
  %208 = vmatpush2.msra.mxu0 0.0
  %209 = vmatprep.subr.mxu0 0.0
  %210 = vmatpush2.msra.mxu0 0.0
  %211 = vmatprep.subr.mxu0 0.0
  %212 = vmatpush2.msra.mxu0 0.0
  %213 = vmatprep.subr.mxu0 0.0
  %214 = vmatpush2.msra.mxu0 0.0
  %215 = vmatprep.subr.mxu0 0.0
  %216 = vmatpush2.msra.mxu0 0.0
  %217 = vmatprep.subr.mxu0 0.0
  %218 = vmatpush2.msra.mxu0 0.0
  %219 = vmatprep.subr.mxu0 0.0
  %220 = vmatpush2.msra.mxu0 0.0
  %221 = vmatprep.subr.mxu0 0.0
  %222 = vmatpush2.msra.mxu0 0.0
  %223 = vmatprep.mubr.f32.mxu0 0.0
  %224 = vmatmul.mubr.f32.gmra.mxu0 %v125
  %v225 = vpop.f32.mrf.mxu0
  %v226 = vadd.f32 0.0, %v225
  %v227 = vpop.f32.mrf.mxu0
  %228 = vmatprep.mubr.f32.mxu0 0.0
  %229 = vmatmul.mubr.f32.gmra.mxu0 %v130
  %v230 = vpop.f32.mrf.mxu0
  %v231 = vadd.f32 0.0, %v230
  %v232 = vpop.f32.mrf.mxu0
  %233 = vmatprep.mubr.f32.mxu0 0.0
  %234 = vmatmul.mubr.f32.gmra.mxu0 %v135
  %v235 = vpop.f32.mrf.mxu0
  %v236 = vadd.f32 0.0, %v235
  %v237 = vpop.f32.mrf.mxu0
  %238 = vmatprep.mubr.f32.mxu0 0.0
  %239 = vmatmul.mubr.f32.gmra.mxu0 %v140
  %v240 = vpop.f32.mrf.mxu0
  %v241 = vadd.f32 0.0, %v240
  %v242 = vpop.f32.mrf.mxu0
  %243 = vdwg.mxu0
  %v244 = vmul.f32 %v125, %v125
  %v245 = vmul.f32 %v130, %v130
  %v246 = vmul.f32 %v135, %v135
  %v247 = vmul.f32 %v140, %v140
  %248 = vmatprep.subr.mxu0 0.0
  %249 = vmatpush1.msra.mxu0 %v158
  %250 = vmatprep.subr.mxu0 0.0
  %251 = vmatpush1.msra.mxu0 %v157
  %252 = vmatprep.subr.mxu0 0.0
  %253 = vmatpush1.msra.mxu0 %v156
  %254 = vmatprep.subr.mxu0 0.0
  %255 = vmatpush1.msra.mxu0 %v155
  %256 = vmatprep.subr.mxu0 0.0
  %257 = vmatpush1.msra.mxu0 %v154
  %258 = vmatprep.subr.mxu0 0.0
  %259 = vmatpush1.msra.mxu0 %v153
  %260 = vmatprep.subr.mxu0 0.0
  %261 = vmatpush1.msra.mxu0 %v152
  %262 = vmatprep.subr.mxu0 0.0
  %263 = vmatpush1.msra.mxu0 %v151
  %264 = vmatprep.subr.mxu0 0.0
  %265 = vmatpush1.msra.mxu0 %v150
  %266 = vmatprep.subr.mxu0 0.0
  %267 = vmatpush1.msra.mxu0 %v149
  %268 = vmatprep.subr.mxu0 0.0
  %269 = vmatpush1.msra.mxu0 %v148
  %270 = vmatprep.subr.mxu0 0.0
  %271 = vmatpush1.msra.mxu0 %v147
  %272 = vmatprep.subr.mxu0 0.0
  %273 = vmatpush1.msra.mxu0 %v146
  %274 = vmatprep.subr.mxu0 0.0
  %275 = vmatpush1.msra.mxu0 %v145
  %276 = vmatprep.subr.mxu0 0.0
  %277 = vmatpush1.msra.mxu0 %v144
  %278 = vmatprep.subr.mxu0 0.0
  %279 = vmatpush1.msra.mxu0 %v143
  %280 = vmatprep.subr.mxu0 0.0
  %281 = vmatpush2.msra.mxu0 0.0
  %282 = vmatprep.subr.mxu0 0.0
  %283 = vmatpush2.msra.mxu0 0.0
  %284 = vmatprep.subr.mxu0 0.0
  %285 = vmatpush2.msra.mxu0 0.0
  %286 = vmatprep.subr.mxu0 0.0
  %287 = vmatpush2.msra.mxu0 0.0
  %288 = vmatprep.subr.mxu0 0.0
  %289 = vmatpush2.msra.mxu0 0.0
  %290 = vmatprep.subr.mxu0 0.0
  %291 = vmatpush2.msra.mxu0 0.0
  %292 = vmatprep.subr.mxu0 0.0
  %293 = vmatpush2.msra.mxu0 0.0
  %294 = vmatprep.subr.mxu0 0.0
  %295 = vmatpush2.msra.mxu0 0.0
  %296 = vmatprep.subr.mxu0 0.0
  %297 = vmatpush2.msra.mxu0 0.0
  %298 = vmatprep.subr.mxu0 0.0
  %299 = vmatpush2.msra.mxu0 0.0
  %300 = vmatprep.subr.mxu0 0.0
  %301 = vmatpush2.msra.mxu0 0.0
  %302 = vmatprep.subr.mxu0 0.0
  %303 = vmatpush2.msra.mxu0 0.0
  %304 = vmatprep.subr.mxu0 0.0
  %305 = vmatpush2.msra.mxu0 0.0
  %306 = vmatprep.subr.mxu0 0.0
  %307 = vmatpush2.msra.mxu0 0.0
  %308 = vmatprep.subr.mxu0 0.0
  %309 = vmatpush2.msra.mxu0 0.0
  %310 = vmatprep.subr.mxu0 0.0
  %311 = vmatpush2.msra.mxu0 0.0
  %312 = vmatprep.mubr.f32.mxu0 0.0
  %313 = vmatmul.mubr.f32.gmra.mxu0 %v244
  %v314 = vpop.f32.mrf.mxu0
  %v315 = vadd.f32 0.0, %v314
  %v316 = vpop.f32.mrf.mxu0
  %317 = vmatprep.mubr.f32.mxu0 0.0
  %318 = vmatmul.mubr.f32.gmra.mxu0 %v245
  %v319 = vpop.f32.mrf.mxu0
  %v320 = vadd.f32 0.0, %v319
  %v321 = vpop.f32.mrf.mxu0
  %322 = vmatprep.mubr.f32.mxu0 0.0
  %323 = vmatmul.mubr.f32.gmra.mxu0 %v246
  %v324 = vpop.f32.mrf.mxu0
  %v325 = vadd.f32 0.0, %v324
  %v326 = vpop.f32.mrf.mxu0
  %327 = vmatprep.mubr.f32.mxu0 0.0
  %328 = vmatmul.mubr.f32.gmra.mxu0 %v247
  %v329 = vpop.f32.mrf.mxu0
  %v330 = vadd.f32 0.0, %v329
  %v331 = vpop.f32.mrf.mxu0
  %332 = vdwg.mxu0
  %v333 = vadd.f32 %v226, %v231
  %v334 = vadd.f32 %v333, %v236
  %v335 = vadd.f32 %v334, %v241
  %v336 = vrot.slane %v335, 4
  %v337 = vadd.f32 %v335, %v336
  %v338 = vrot.slane %v337, 2
  %v339 = vadd.f32 %v337, %v338
  %v340 = vrot.slane %v339, 1
  %v341 = vadd.f32 %v339, %v340
  %v342 = vmul.f32 %v341, 0.001953125
  %v343 = vadd.f32 %v315, %v320
  %v344 = vadd.f32 %v343, %v325
  %v345 = vadd.f32 %v344, %v330
  %v346 = vrot.slane %v345, 4
  %v347 = vadd.f32 %v345, %v346
  %v348 = vrot.slane %v347, 2
  %v349 = vadd.f32 %v347, %v348
  %v350 = vrot.slane %v349, 1
  %v351 = vadd.f32 %v349, %v350
  %v352 = vmul.f32 %v351, 0.001953125
  %v353 = vmul.f32 %v342, %v342
  %v354 = vsub.f32 %v352, %v353
  %v355 = vmax.f32 %v354, 0.0
  %v356 = vld [vmem:[%s9] sm:$0x1]
  %v357 = vadd.f32 %v355, 1e-05
  %v358 = vrsqrt.pop %v357
  %v359 = vmul.f32 %v356, %v358
  %v360 = vld [vmem:[%s9 + $0x1] sm:$0x1]
  %v361 = vmul.f32 %v342, %v359
  %v362 = vsub.f32 %v360, %v361
  %v363 = vlaneseq
  %v364 = vshrl.u32 %v363, 7
  %v365 = vsub.s32 0, %v364
  %v366 = vrot.slane %v359, %v365
  %v367 = vmul.f32 %v125, %v366
  %v368 = vmul.f32 %v130, %v366
  %v369 = vmul.f32 %v135, %v366
  %v370 = vmul.f32 %v140, %v366
  %v371 = vlaneseq
  %v372 = vshrl.u32 %v371, 7
  %v373 = vsub.s32 0, %v372
  %v374 = vrot.slane %v362, %v373
  %v375 = vadd.f32 %v367, %v374
  %v376 = vadd.f32 %v368, %v374
  %v377 = vadd.f32 %v369, %v374
  %v378 = vadd.f32 %v370, %v374
  %v379 = vld [vmem:[%s6] sm:$0xff]
  %v380 = vld [vmem:[%s6 + $0x8] sm:$0xff]
  %v381 = vld [vmem:[%s6 + $0x10] sm:$0xff]
  %v382 = vld [vmem:[%s6 + $0x18] sm:$0xff]
  %vm383 = vcmask 261120
  %v385 = vsel %vm383, %v379, 0
  %v388 = vsel %vm383, %v380, 0
  %v391 = vsel %vm383, %v381, 0
  %v394 = vsel %vm383, %v382, 0
  %396 = vmatprep.subr.mxu0 0.0
  %397 = vmatpush1.msra.mxu0 0.0
  %398 = vmatprep.subr.mxu0 0.0
  %399 = vmatpush1.msra.mxu0 0.0
  %400 = vmatprep.subr.mxu0 0.0
  %401 = vmatpush1.msra.mxu0 0.0
  %402 = vmatprep.subr.mxu0 0.0
  %403 = vmatpush1.msra.mxu0 0.0
  %404 = vmatprep.subr.mxu0 0.0
  %405 = vmatpush1.msra.mxu0 0.0
  %406 = vmatprep.subr.mxu0 0.0
  %407 = vmatpush1.msra.mxu0 0.0
  %408 = vmatprep.subr.mxu0 0.0
  %409 = vmatpush1.msra.mxu0 0.0
  %410 = vmatprep.subr.mxu0 0.0
  %411 = vmatpush1.msra.mxu0 0.0
  %412 = vmatprep.subr.mxu0 0.0
  %413 = vmatpush1.msra.mxu0 0.0
  %414 = vmatprep.subr.mxu0 0.0
  %415 = vmatpush1.msra.mxu0 0.0
  %416 = vmatprep.subr.mxu0 0.0
  %417 = vmatpush1.msra.mxu0 0.0
  %418 = vmatprep.subr.mxu0 0.0
  %419 = vmatpush1.msra.mxu0 0.0
  %420 = vmatprep.subr.mxu0 0.0
  %421 = vmatpush1.msra.mxu0 %v41
  %422 = vmatprep.subr.mxu0 0.0
  %423 = vmatpush1.msra.mxu0 %v40
  %424 = vmatprep.subr.mxu0 0.0
  %425 = vmatpush1.msra.mxu0 %v39
  %426 = vmatprep.subr.mxu0 0.0
  %427 = vmatpush1.msra.mxu0 %v38
  %428 = vmatprep.subr.mxu0 0.0
  %429 = vmatpush2.msra.mxu0 0.0
  %430 = vmatprep.subr.mxu0 0.0
  %431 = vmatpush2.msra.mxu0 0.0
  %432 = vmatprep.subr.mxu0 0.0
  %433 = vmatpush2.msra.mxu0 0.0
  %434 = vmatprep.subr.mxu0 0.0
  %435 = vmatpush2.msra.mxu0 0.0
  %436 = vmatprep.subr.mxu0 0.0
  %437 = vmatpush2.msra.mxu0 0.0
  %438 = vmatprep.subr.mxu0 0.0
  %439 = vmatpush2.msra.mxu0 0.0
  %440 = vmatprep.subr.mxu0 0.0
  %441 = vmatpush2.msra.mxu0 0.0
  %442 = vmatprep.subr.mxu0 0.0
  %443 = vmatpush2.msra.mxu0 0.0
  %444 = vmatprep.subr.mxu0 0.0
  %445 = vmatpush2.msra.mxu0 0.0
  %446 = vmatprep.subr.mxu0 0.0
  %447 = vmatpush2.msra.mxu0 0.0
  %448 = vmatprep.subr.mxu0 0.0
  %449 = vmatpush2.msra.mxu0 0.0
  %450 = vmatprep.subr.mxu0 0.0
  %451 = vmatpush2.msra.mxu0 0.0
  %452 = vmatprep.subr.mxu0 0.0
  %453 = vmatpush2.msra.mxu0 0.0
  %454 = vmatprep.subr.mxu0 0.0
  %455 = vmatpush2.msra.mxu0 0.0
  %456 = vmatprep.subr.mxu0 0.0
  %457 = vmatpush2.msra.mxu0 0.0
  %458 = vmatprep.subr.mxu0 0.0
  %459 = vmatpush2.msra.mxu0 0.0
  %460 = vmatprep.mubr.f32.mxu0 0.0
  %461 = vmatmul.mubr.f32.gmra.mxu0 %v385
  %v462 = vpop.f32.mrf.mxu0
  %v463 = vadd.f32 0.0, %v462
  %v464 = vpop.f32.mrf.mxu0
  %465 = vmatprep.mubr.f32.mxu0 0.0
  %466 = vmatmul.mubr.f32.gmra.mxu0 %v388
  %v467 = vpop.f32.mrf.mxu0
  %v468 = vadd.f32 0.0, %v467
  %v469 = vpop.f32.mrf.mxu0
  %470 = vmatprep.mubr.f32.mxu0 0.0
  %471 = vmatmul.mubr.f32.gmra.mxu0 %v391
  %v472 = vpop.f32.mrf.mxu0
  %v473 = vadd.f32 0.0, %v472
  %v474 = vpop.f32.mrf.mxu0
  %475 = vmatprep.mubr.f32.mxu0 0.0
  %476 = vmatmul.mubr.f32.gmra.mxu0 %v394
  %v477 = vpop.f32.mrf.mxu0
  %v478 = vadd.f32 0.0, %v477
  %v479 = vpop.f32.mrf.mxu0
  %480 = vdwg.mxu0
  %v481 = vld [vmem:[%s7] sm:$0xff]
  %v482 = vld [vmem:[%s7 + $0x8] sm:$0xff]
  %v483 = vld [vmem:[%s7 + $0x10] sm:$0xff]
  %v484 = vld [vmem:[%s7 + $0x18] sm:$0xff]
  %v486 = vsel %vm383, %v481, 0
  %v489 = vsel %vm383, %v482, 0
  %v492 = vsel %vm383, %v483, 0
  %v495 = vsel %vm383, %v484, 0
  %497 = vmatprep.subr.mxu0 0.0
  %498 = vmatpush1.msra.mxu0 0.0
  %499 = vmatprep.subr.mxu0 0.0
  %500 = vmatpush1.msra.mxu0 0.0
  %501 = vmatprep.subr.mxu0 0.0
  %502 = vmatpush1.msra.mxu0 0.0
  %503 = vmatprep.subr.mxu0 0.0
  %504 = vmatpush1.msra.mxu0 0.0
  %505 = vmatprep.subr.mxu0 0.0
  %506 = vmatpush1.msra.mxu0 0.0
  %507 = vmatprep.subr.mxu0 0.0
  %508 = vmatpush1.msra.mxu0 0.0
  %509 = vmatprep.subr.mxu0 0.0
  %510 = vmatpush1.msra.mxu0 0.0
  %511 = vmatprep.subr.mxu0 0.0
  %512 = vmatpush1.msra.mxu0 0.0
  %513 = vmatprep.subr.mxu0 0.0
  %514 = vmatpush1.msra.mxu0 0.0
  %515 = vmatprep.subr.mxu0 0.0
  %516 = vmatpush1.msra.mxu0 0.0
  %517 = vmatprep.subr.mxu0 0.0
  %518 = vmatpush1.msra.mxu0 0.0
  %519 = vmatprep.subr.mxu0 0.0
  %520 = vmatpush1.msra.mxu0 0.0
  %521 = vmatprep.subr.mxu0 0.0
  %522 = vmatpush1.msra.mxu0 %v41
  %523 = vmatprep.subr.mxu0 0.0
  %524 = vmatpush1.msra.mxu0 %v40
  %525 = vmatprep.subr.mxu0 0.0
  %526 = vmatpush1.msra.mxu0 %v39
  %527 = vmatprep.subr.mxu0 0.0
  %528 = vmatpush1.msra.mxu0 %v38
  %529 = vmatprep.subr.mxu0 0.0
  %530 = vmatpush2.msra.mxu0 0.0
  %531 = vmatprep.subr.mxu0 0.0
  %532 = vmatpush2.msra.mxu0 0.0
  %533 = vmatprep.subr.mxu0 0.0
  %534 = vmatpush2.msra.mxu0 0.0
  %535 = vmatprep.subr.mxu0 0.0
  %536 = vmatpush2.msra.mxu0 0.0
  %537 = vmatprep.subr.mxu0 0.0
  %538 = vmatpush2.msra.mxu0 0.0
  %539 = vmatprep.subr.mxu0 0.0
  %540 = vmatpush2.msra.mxu0 0.0
  %541 = vmatprep.subr.mxu0 0.0
  %542 = vmatpush2.msra.mxu0 0.0
  %543 = vmatprep.subr.mxu0 0.0
  %544 = vmatpush2.msra.mxu0 0.0
  %545 = vmatprep.subr.mxu0 0.0
  %546 = vmatpush2.msra.mxu0 0.0
  %547 = vmatprep.subr.mxu0 0.0
  %548 = vmatpush2.msra.mxu0 0.0
  %549 = vmatprep.subr.mxu0 0.0
  %550 = vmatpush2.msra.mxu0 0.0
  %551 = vmatprep.subr.mxu0 0.0
  %552 = vmatpush2.msra.mxu0 0.0
  %553 = vmatprep.subr.mxu0 0.0
  %554 = vmatpush2.msra.mxu0 0.0
  %555 = vmatprep.subr.mxu0 0.0
  %556 = vmatpush2.msra.mxu0 0.0
  %557 = vmatprep.subr.mxu0 0.0
  %558 = vmatpush2.msra.mxu0 0.0
  %559 = vmatprep.subr.mxu0 0.0
  %560 = vmatpush2.msra.mxu0 0.0
  %561 = vmatprep.mubr.f32.mxu0 0.0
  %562 = vmatmul.mubr.f32.gmra.mxu0 %v486
  %v563 = vpop.f32.mrf.mxu0
  %v564 = vadd.f32 0.0, %v563
  %v565 = vpop.f32.mrf.mxu0
  %566 = vmatprep.mubr.f32.mxu0 0.0
  %567 = vmatmul.mubr.f32.gmra.mxu0 %v489
  %v568 = vpop.f32.mrf.mxu0
  %v569 = vadd.f32 0.0, %v568
  %v570 = vpop.f32.mrf.mxu0
  %571 = vmatprep.mubr.f32.mxu0 0.0
  %572 = vmatmul.mubr.f32.gmra.mxu0 %v492
  %v573 = vpop.f32.mrf.mxu0
  %v574 = vadd.f32 0.0, %v573
  %v575 = vpop.f32.mrf.mxu0
  %576 = vmatprep.mubr.f32.mxu0 0.0
  %577 = vmatmul.mubr.f32.gmra.mxu0 %v495
  %v578 = vpop.f32.mrf.mxu0
  %v579 = vadd.f32 0.0, %v578
  %v580 = vpop.f32.mrf.mxu0
  %581 = vdwg.mxu0
  %v582 = vld [vmem:[%s2] sm:$0xff]
  %v583 = vld [vmem:[%s2 + $0x8] sm:$0xff]
  %v584 = vld [vmem:[%s2 + $0x10] sm:$0xff]
  %v585 = vld [vmem:[%s2 + $0x18] sm:$0xff]
  %v586 = vld [vmem:[%s2 + $0x20] sm:$0xff]
  %v587 = vld [vmem:[%s2 + $0x28] sm:$0xff]
  %v588 = vld [vmem:[%s2 + $0x30] sm:$0xff]
  %v589 = vld [vmem:[%s2 + $0x38] sm:$0xff]
  %v590 = vld [vmem:[%s2 + $0x40] sm:$0xff]
  %v591 = vld [vmem:[%s2 + $0x48] sm:$0xff]
  %v592 = vld [vmem:[%s2 + $0x50] sm:$0xff]
  %v593 = vld [vmem:[%s2 + $0x58] sm:$0xff]
  %v594 = vld [vmem:[%s2 + $0x60] sm:$0xff]
  %v595 = vld [vmem:[%s2 + $0x68] sm:$0xff]
  %v596 = vld [vmem:[%s2 + $0x70] sm:$0xff]
  %v597 = vld [vmem:[%s2 + $0x78] sm:$0xff]
  %s598 = scalar_lea.vmem %s2, 128
  %v599 = vld [vmem:[%s598] sm:$0xff]
  %v600 = vld [vmem:[%s598 + $0x8] sm:$0xff]
  %v601 = vld [vmem:[%s598 + $0x10] sm:$0xff]
  %v602 = vld [vmem:[%s598 + $0x18] sm:$0xff]
  %v603 = vld [vmem:[%s598 + $0x20] sm:$0xff]
  %v604 = vld [vmem:[%s598 + $0x28] sm:$0xff]
  %v605 = vld [vmem:[%s598 + $0x30] sm:$0xff]
  %v606 = vld [vmem:[%s598 + $0x38] sm:$0xff]
  %v607 = vld [vmem:[%s598 + $0x40] sm:$0xff]
  %v608 = vld [vmem:[%s598 + $0x48] sm:$0xff]
  %v609 = vld [vmem:[%s598 + $0x50] sm:$0xff]
  %v610 = vld [vmem:[%s598 + $0x58] sm:$0xff]
  %v611 = vld [vmem:[%s598 + $0x60] sm:$0xff]
  %v612 = vld [vmem:[%s598 + $0x68] sm:$0xff]
  %v613 = vld [vmem:[%s598 + $0x70] sm:$0xff]
  %v614 = vld [vmem:[%s598 + $0x78] sm:$0xff]
  %615 = vmatprep.subr.mxu0 0.0
  %616 = vmatpush1.msra.mxu0 %v614
  %617 = vmatprep.subr.mxu0 0.0
  %618 = vmatpush1.msra.mxu0 %v613
  %619 = vmatprep.subr.mxu0 0.0
  %620 = vmatpush1.msra.mxu0 %v612
  %621 = vmatprep.subr.mxu0 0.0
  %622 = vmatpush1.msra.mxu0 %v611
  %623 = vmatprep.subr.mxu0 0.0
  %624 = vmatpush1.msra.mxu0 %v610
  %625 = vmatprep.subr.mxu0 0.0
  %626 = vmatpush1.msra.mxu0 %v609
  %627 = vmatprep.subr.mxu0 0.0
  %628 = vmatpush1.msra.mxu0 %v608
  %629 = vmatprep.subr.mxu0 0.0
  %630 = vmatpush1.msra.mxu0 %v607
  %631 = vmatprep.subr.mxu0 0.0
  %632 = vmatpush1.msra.mxu0 %v606
  %633 = vmatprep.subr.mxu0 0.0
  %634 = vmatpush1.msra.mxu0 %v605
  %635 = vmatprep.subr.mxu0 0.0
  %636 = vmatpush1.msra.mxu0 %v604
  %637 = vmatprep.subr.mxu0 0.0
  %638 = vmatpush1.msra.mxu0 %v603
  %639 = vmatprep.subr.mxu0 0.0
  %640 = vmatpush1.msra.mxu0 %v602
  %641 = vmatprep.subr.mxu0 0.0
  %642 = vmatpush1.msra.mxu0 %v601
  %643 = vmatprep.subr.mxu0 0.0
  %644 = vmatpush1.msra.mxu0 %v600
  %645 = vmatprep.subr.mxu0 0.0
  %646 = vmatpush1.msra.mxu0 %v599
  %647 = vmatprep.subr.mxu0 0.0
  %648 = vmatpush2.msra.mxu0 0.0
  %649 = vmatprep.subr.mxu0 0.0
  %650 = vmatpush2.msra.mxu0 0.0
  %651 = vmatprep.subr.mxu0 0.0
  %652 = vmatpush2.msra.mxu0 0.0
  %653 = vmatprep.subr.mxu0 0.0
  %654 = vmatpush2.msra.mxu0 0.0
  %655 = vmatprep.subr.mxu0 0.0
  %656 = vmatpush2.msra.mxu0 0.0
  %657 = vmatprep.subr.mxu0 0.0
  %658 = vmatpush2.msra.mxu0 0.0
  %659 = vmatprep.subr.mxu0 0.0
  %660 = vmatpush2.msra.mxu0 0.0
  %661 = vmatprep.subr.mxu0 0.0
  %662 = vmatpush2.msra.mxu0 0.0
  %663 = vmatprep.subr.mxu0 0.0
  %664 = vmatpush2.msra.mxu0 0.0
  %665 = vmatprep.subr.mxu0 0.0
  %666 = vmatpush2.msra.mxu0 0.0
  %667 = vmatprep.subr.mxu0 0.0
  %668 = vmatpush2.msra.mxu0 0.0
  %669 = vmatprep.subr.mxu0 0.0
  %670 = vmatpush2.msra.mxu0 0.0
  %671 = vmatprep.subr.mxu0 0.0
  %672 = vmatpush2.msra.mxu0 0.0
  %673 = vmatprep.subr.mxu0 0.0
  %674 = vmatpush2.msra.mxu0 0.0
  %675 = vmatprep.subr.mxu0 0.0
  %676 = vmatpush2.msra.mxu0 0.0
  %677 = vmatprep.subr.mxu0 0.0
  %678 = vmatpush2.msra.mxu0 0.0
  %679 = vmatprep.mubr.f32.mxu0 0.0
  %680 = vmatmul.mubr.f32.gmra.mxu0 %v38
  %v681 = vpop.f32.mrf.mxu0
  %v682 = vadd.f32 0.0, %v681
  %v683 = vpop.f32.mrf.mxu0
  %684 = vmatprep.mubr.f32.mxu0 0.0
  %685 = vmatmul.mubr.f32.gmra.mxu0 %v39
  %v686 = vpop.f32.mrf.mxu0
  %v687 = vadd.f32 0.0, %v686
  %v688 = vpop.f32.mrf.mxu0
  %689 = vmatprep.mubr.f32.mxu0 0.0
  %690 = vmatmul.mubr.f32.gmra.mxu0 %v40
  %v691 = vpop.f32.mrf.mxu0
  %v692 = vadd.f32 0.0, %v691
  %v693 = vpop.f32.mrf.mxu0
  %694 = vmatprep.mubr.f32.mxu0 0.0
  %695 = vmatmul.mubr.f32.gmra.mxu0 %v41
  %v696 = vpop.f32.mrf.mxu0
  %v697 = vadd.f32 0.0, %v696
  %v698 = vpop.f32.mrf.mxu0
  %699 = vdwg.mxu0
  %700 = vmatprep.subr.mxu0 0.0
  %701 = vmatpush1.msra.mxu0 %v597
  %702 = vmatprep.subr.mxu0 0.0
  %703 = vmatpush1.msra.mxu0 %v596
  %704 = vmatprep.subr.mxu0 0.0
  %705 = vmatpush1.msra.mxu0 %v595
  %706 = vmatprep.subr.mxu0 0.0
  %707 = vmatpush1.msra.mxu0 %v594
  %708 = vmatprep.subr.mxu0 0.0
  %709 = vmatpush1.msra.mxu0 %v593
  %710 = vmatprep.subr.mxu0 0.0
  %711 = vmatpush1.msra.mxu0 %v592
  %712 = vmatprep.subr.mxu0 0.0
  %713 = vmatpush1.msra.mxu0 %v591
  %714 = vmatprep.subr.mxu0 0.0
  %715 = vmatpush1.msra.mxu0 %v590
  %716 = vmatprep.subr.mxu0 0.0
  %717 = vmatpush1.msra.mxu0 %v589
  %718 = vmatprep.subr.mxu0 0.0
  %719 = vmatpush1.msra.mxu0 %v588
  %720 = vmatprep.subr.mxu0 0.0
  %721 = vmatpush1.msra.mxu0 %v587
  %722 = vmatprep.subr.mxu0 0.0
  %723 = vmatpush1.msra.mxu0 %v586
  %724 = vmatprep.subr.mxu0 0.0
  %725 = vmatpush1.msra.mxu0 %v585
  %726 = vmatprep.subr.mxu0 0.0
  %727 = vmatpush1.msra.mxu0 %v584
  %728 = vmatprep.subr.mxu0 0.0
  %729 = vmatpush1.msra.mxu0 %v583
  %730 = vmatprep.subr.mxu0 0.0
  %731 = vmatpush1.msra.mxu0 %v582
  %732 = vmatprep.subr.mxu0 0.0
  %733 = vmatpush2.msra.mxu0 0.0
  %734 = vmatprep.subr.mxu0 0.0
  %735 = vmatpush2.msra.mxu0 0.0
  %736 = vmatprep.subr.mxu0 0.0
  %737 = vmatpush2.msra.mxu0 0.0
  %738 = vmatprep.subr.mxu0 0.0
  %739 = vmatpush2.msra.mxu0 0.0
  %740 = vmatprep.subr.mxu0 0.0
  %741 = vmatpush2.msra.mxu0 0.0
  %742 = vmatprep.subr.mxu0 0.0
  %743 = vmatpush2.msra.mxu0 0.0
  %744 = vmatprep.subr.mxu0 0.0
  %745 = vmatpush2.msra.mxu0 0.0
  %746 = vmatprep.subr.mxu0 0.0
  %747 = vmatpush2.msra.mxu0 0.0
  %748 = vmatprep.subr.mxu0 0.0
  %749 = vmatpush2.msra.mxu0 0.0
  %750 = vmatprep.subr.mxu0 0.0
  %751 = vmatpush2.msra.mxu0 0.0
  %752 = vmatprep.subr.mxu0 0.0
  %753 = vmatpush2.msra.mxu0 0.0
  %754 = vmatprep.subr.mxu0 0.0
  %755 = vmatpush2.msra.mxu0 0.0
  %756 = vmatprep.subr.mxu0 0.0
  %757 = vmatpush2.msra.mxu0 0.0
  %758 = vmatprep.subr.mxu0 0.0
  %759 = vmatpush2.msra.mxu0 0.0
  %760 = vmatprep.subr.mxu0 0.0
  %761 = vmatpush2.msra.mxu0 0.0
  %762 = vmatprep.subr.mxu0 0.0
  %763 = vmatpush2.msra.mxu0 0.0
  %764 = vmatprep.mubr.f32.mxu0 0.0
  %765 = vmatmul.mubr.f32.gmra.mxu0 %v463
  %v766 = vpop.f32.mrf.mxu0
  %v767 = vadd.f32 %v682, %v766
  %v768 = vpop.f32.mrf.mxu0
  %769 = vmatprep.mubr.f32.mxu0 0.0
  %770 = vmatmul.mubr.f32.gmra.mxu0 %v468
  %v771 = vpop.f32.mrf.mxu0
  %v772 = vadd.f32 %v687, %v771
  %v773 = vpop.f32.mrf.mxu0
  %774 = vmatprep.mubr.f32.mxu0 0.0
  %775 = vmatmul.mubr.f32.gmra.mxu0 %v473
  %v776 = vpop.f32.mrf.mxu0
  %v777 = vadd.f32 %v692, %v776
  %v778 = vpop.f32.mrf.mxu0
  %779 = vmatprep.mubr.f32.mxu0 0.0
  %780 = vmatmul.mubr.f32.gmra.mxu0 %v478
  %v781 = vpop.f32.mrf.mxu0
  %v782 = vadd.f32 %v697, %v781
  %v783 = vpop.f32.mrf.mxu0
  %784 = vdwg.mxu0
  %s785 = scalar_lea.vmem %s2, 256
  %v786 = vld [vmem:[%s785] sm:$0xff]
  %v787 = vld [vmem:[%s785 + $0x8] sm:$0xff]
  %v788 = vld [vmem:[%s785 + $0x10] sm:$0xff]
  %v789 = vld [vmem:[%s785 + $0x18] sm:$0xff]
  %v790 = vld [vmem:[%s785 + $0x20] sm:$0xff]
  %v791 = vld [vmem:[%s785 + $0x28] sm:$0xff]
  %v792 = vld [vmem:[%s785 + $0x30] sm:$0xff]
  %v793 = vld [vmem:[%s785 + $0x38] sm:$0xff]
  %v794 = vld [vmem:[%s785 + $0x40] sm:$0xff]
  %v795 = vld [vmem:[%s785 + $0x48] sm:$0xff]
  %v796 = vld [vmem:[%s785 + $0x50] sm:$0xff]
  %v797 = vld [vmem:[%s785 + $0x58] sm:$0xff]
  %v798 = vld [vmem:[%s785 + $0x60] sm:$0xff]
  %v799 = vld [vmem:[%s785 + $0x68] sm:$0xff]
  %v800 = vld [vmem:[%s785 + $0x70] sm:$0xff]
  %v801 = vld [vmem:[%s785 + $0x78] sm:$0xff]
  %802 = vmatprep.subr.mxu0 0.0
  %803 = vmatpush1.msra.mxu0 %v801
  %804 = vmatprep.subr.mxu0 0.0
  %805 = vmatpush1.msra.mxu0 %v800
  %806 = vmatprep.subr.mxu0 0.0
  %807 = vmatpush1.msra.mxu0 %v799
  %808 = vmatprep.subr.mxu0 0.0
  %809 = vmatpush1.msra.mxu0 %v798
  %810 = vmatprep.subr.mxu0 0.0
  %811 = vmatpush1.msra.mxu0 %v797
  %812 = vmatprep.subr.mxu0 0.0
  %813 = vmatpush1.msra.mxu0 %v796
  %814 = vmatprep.subr.mxu0 0.0
  %815 = vmatpush1.msra.mxu0 %v795
  %816 = vmatprep.subr.mxu0 0.0
  %817 = vmatpush1.msra.mxu0 %v794
  %818 = vmatprep.subr.mxu0 0.0
  %819 = vmatpush1.msra.mxu0 %v793
  %820 = vmatprep.subr.mxu0 0.0
  %821 = vmatpush1.msra.mxu0 %v792
  %822 = vmatprep.subr.mxu0 0.0
  %823 = vmatpush1.msra.mxu0 %v791
  %824 = vmatprep.subr.mxu0 0.0
  %825 = vmatpush1.msra.mxu0 %v790
  %826 = vmatprep.subr.mxu0 0.0
  %827 = vmatpush1.msra.mxu0 %v789
  %828 = vmatprep.subr.mxu0 0.0
  %829 = vmatpush1.msra.mxu0 %v788
  %830 = vmatprep.subr.mxu0 0.0
  %831 = vmatpush1.msra.mxu0 %v787
  %832 = vmatprep.subr.mxu0 0.0
  %833 = vmatpush1.msra.mxu0 %v786
  %834 = vmatprep.subr.mxu0 0.0
  %835 = vmatpush2.msra.mxu0 0.0
  %836 = vmatprep.subr.mxu0 0.0
  %837 = vmatpush2.msra.mxu0 0.0
  %838 = vmatprep.subr.mxu0 0.0
  %839 = vmatpush2.msra.mxu0 0.0
  %840 = vmatprep.subr.mxu0 0.0
  %841 = vmatpush2.msra.mxu0 0.0
  %842 = vmatprep.subr.mxu0 0.0
  %843 = vmatpush2.msra.mxu0 0.0
  %844 = vmatprep.subr.mxu0 0.0
  %845 = vmatpush2.msra.mxu0 0.0
  %846 = vmatprep.subr.mxu0 0.0
  %847 = vmatpush2.msra.mxu0 0.0
  %848 = vmatprep.subr.mxu0 0.0
  %849 = vmatpush2.msra.mxu0 0.0
  %850 = vmatprep.subr.mxu0 0.0
  %851 = vmatpush2.msra.mxu0 0.0
  %852 = vmatprep.subr.mxu0 0.0
  %853 = vmatpush2.msra.mxu0 0.0
  %854 = vmatprep.subr.mxu0 0.0
  %855 = vmatpush2.msra.mxu0 0.0
  %856 = vmatprep.subr.mxu0 0.0
  %857 = vmatpush2.msra.mxu0 0.0
  %858 = vmatprep.subr.mxu0 0.0
  %859 = vmatpush2.msra.mxu0 0.0
  %860 = vmatprep.subr.mxu0 0.0
  %861 = vmatpush2.msra.mxu0 0.0
  %862 = vmatprep.subr.mxu0 0.0
  %863 = vmatpush2.msra.mxu0 0.0
  %864 = vmatprep.subr.mxu0 0.0
  %865 = vmatpush2.msra.mxu0 0.0
  %866 = vmatprep.mubr.f32.mxu0 0.0
  %867 = vmatmul.mubr.f32.gmra.mxu0 %v564
  %v868 = vpop.f32.mrf.mxu0
  %v869 = vadd.f32 0.0, %v868
  %v870 = vpop.f32.mrf.mxu0
  %871 = vmatprep.mubr.f32.mxu0 0.0
  %872 = vmatmul.mubr.f32.gmra.mxu0 %v569
  %v873 = vpop.f32.mrf.mxu0
  %v874 = vadd.f32 0.0, %v873
  %v875 = vpop.f32.mrf.mxu0
  %876 = vmatprep.mubr.f32.mxu0 0.0
  %877 = vmatmul.mubr.f32.gmra.mxu0 %v574
  %v878 = vpop.f32.mrf.mxu0
  %v879 = vadd.f32 0.0, %v878
  %v880 = vpop.f32.mrf.mxu0
  %881 = vmatprep.mubr.f32.mxu0 0.0
  %882 = vmatmul.mubr.f32.gmra.mxu0 %v579
  %v883 = vpop.f32.mrf.mxu0
  %v884 = vadd.f32 0.0, %v883
  %v885 = vpop.f32.mrf.mxu0
  %886 = vdwg.mxu0
  %v887 = vadd.f32 %v767, %v869
  %v888 = vadd.f32 %v772, %v874
  %v889 = vadd.f32 %v777, %v879
  %v890 = vadd.f32 %v782, %v884
  %v891 = vld [vmem:[%s10] sm:$0x1]
  %892 = vmatprep.subr.mxu0 0.0
  %893 = vmatpush1.msra.mxu0 %v158
  %894 = vmatprep.subr.mxu0 0.0
  %895 = vmatpush1.msra.mxu0 %v157
  %896 = vmatprep.subr.mxu0 0.0
  %897 = vmatpush1.msra.mxu0 %v156
  %898 = vmatprep.subr.mxu0 0.0
  %899 = vmatpush1.msra.mxu0 %v155
  %900 = vmatprep.subr.mxu0 0.0
  %901 = vmatpush1.msra.mxu0 %v154
  %902 = vmatprep.subr.mxu0 0.0
  %903 = vmatpush1.msra.mxu0 %v153
  %904 = vmatprep.subr.mxu0 0.0
  %905 = vmatpush1.msra.mxu0 %v152
  %906 = vmatprep.subr.mxu0 0.0
  %907 = vmatpush1.msra.mxu0 %v151
  %908 = vmatprep.subr.mxu0 0.0
  %909 = vmatpush1.msra.mxu0 %v150
  %910 = vmatprep.subr.mxu0 0.0
  %911 = vmatpush1.msra.mxu0 %v149
  %912 = vmatprep.subr.mxu0 0.0
  %913 = vmatpush1.msra.mxu0 %v148
  %914 = vmatprep.subr.mxu0 0.0
  %915 = vmatpush1.msra.mxu0 %v147
  %916 = vmatprep.subr.mxu0 0.0
  %917 = vmatpush1.msra.mxu0 %v146
  %918 = vmatprep.subr.mxu0 0.0
  %919 = vmatpush1.msra.mxu0 %v145
  %920 = vmatprep.subr.mxu0 0.0
  %921 = vmatpush1.msra.mxu0 %v144
  %922 = vmatprep.subr.mxu0 0.0
  %923 = vmatpush1.msra.mxu0 %v143
  %924 = vmatprep.subr.mxu0 0.0
  %925 = vmatpush2.msra.mxu0 0.0
  %926 = vmatprep.subr.mxu0 0.0
  %927 = vmatpush2.msra.mxu0 0.0
  %928 = vmatprep.subr.mxu0 0.0
  %929 = vmatpush2.msra.mxu0 0.0
  %930 = vmatprep.subr.mxu0 0.0
  %931 = vmatpush2.msra.mxu0 0.0
  %932 = vmatprep.subr.mxu0 0.0
  %933 = vmatpush2.msra.mxu0 0.0
  %934 = vmatprep.subr.mxu0 0.0
  %935 = vmatpush2.msra.mxu0 0.0
  %936 = vmatprep.subr.mxu0 0.0
  %937 = vmatpush2.msra.mxu0 0.0
  %938 = vmatprep.subr.mxu0 0.0
  %939 = vmatpush2.msra.mxu0 0.0
  %940 = vmatprep.subr.mxu0 0.0
  %941 = vmatpush2.msra.mxu0 0.0
  %942 = vmatprep.subr.mxu0 0.0
  %943 = vmatpush2.msra.mxu0 0.0
  %944 = vmatprep.subr.mxu0 0.0
  %945 = vmatpush2.msra.mxu0 0.0
  %946 = vmatprep.subr.mxu0 0.0
  %947 = vmatpush2.msra.mxu0 0.0
  %948 = vmatprep.subr.mxu0 0.0
  %949 = vmatpush2.msra.mxu0 0.0
  %950 = vmatprep.subr.mxu0 0.0
  %951 = vmatpush2.msra.mxu0 0.0
  %952 = vmatprep.subr.mxu0 0.0
  %953 = vmatpush2.msra.mxu0 0.0
  %954 = vmatprep.subr.mxu0 0.0
  %955 = vmatpush2.msra.mxu0 0.0
  %956 = vmatprep.mubr.f32.mxu0 0.0
  %957 = vmatmul.mubr.f32.gmra.mxu0 %v887
  %v958 = vpop.f32.mrf.mxu0
  %v959 = vadd.f32 0.0, %v958
  %v960 = vpop.f32.mrf.mxu0
  %961 = vmatprep.mubr.f32.mxu0 0.0
  %962 = vmatmul.mubr.f32.gmra.mxu0 %v888
  %v963 = vpop.f32.mrf.mxu0
  %v964 = vadd.f32 0.0, %v963
  %v965 = vpop.f32.mrf.mxu0
  %966 = vmatprep.mubr.f32.mxu0 0.0
  %967 = vmatmul.mubr.f32.gmra.mxu0 %v889
  %v968 = vpop.f32.mrf.mxu0
  %v969 = vadd.f32 0.0, %v968
  %v970 = vpop.f32.mrf.mxu0
  %971 = vmatprep.mubr.f32.mxu0 0.0
  %972 = vmatmul.mubr.f32.gmra.mxu0 %v890
  %v973 = vpop.f32.mrf.mxu0
  %v974 = vadd.f32 0.0, %v973
  %v975 = vpop.f32.mrf.mxu0
  %976 = vdwg.mxu0
  %v977 = vmul.f32 %v887, %v887
  %v978 = vmul.f32 %v888, %v888
  %v979 = vmul.f32 %v889, %v889
  %v980 = vmul.f32 %v890, %v890
  %981 = vmatprep.subr.mxu0 0.0
  %982 = vmatpush1.msra.mxu0 %v158
  %983 = vmatprep.subr.mxu0 0.0
  %984 = vmatpush1.msra.mxu0 %v157
  %985 = vmatprep.subr.mxu0 0.0
  %986 = vmatpush1.msra.mxu0 %v156
  %987 = vmatprep.subr.mxu0 0.0
  %988 = vmatpush1.msra.mxu0 %v155
  %989 = vmatprep.subr.mxu0 0.0
  %990 = vmatpush1.msra.mxu0 %v154
  %991 = vmatprep.subr.mxu0 0.0
  %992 = vmatpush1.msra.mxu0 %v153
  %993 = vmatprep.subr.mxu0 0.0
  %994 = vmatpush1.msra.mxu0 %v152
  %995 = vmatprep.subr.mxu0 0.0
  %996 = vmatpush1.msra.mxu0 %v151
  %997 = vmatprep.subr.mxu0 0.0
  %998 = vmatpush1.msra.mxu0 %v150
  %999 = vmatprep.subr.mxu0 0.0
  %1000 = vmatpush1.msra.mxu0 %v149
  %1001 = vmatprep.subr.mxu0 0.0
  %1002 = vmatpush1.msra.mxu0 %v148
  %1003 = vmatprep.subr.mxu0 0.0
  %1004 = vmatpush1.msra.mxu0 %v147
  %1005 = vmatprep.subr.mxu0 0.0
  %1006 = vmatpush1.msra.mxu0 %v146
  %1007 = vmatprep.subr.mxu0 0.0
  %1008 = vmatpush1.msra.mxu0 %v145
  %1009 = vmatprep.subr.mxu0 0.0
  %1010 = vmatpush1.msra.mxu0 %v144
  %1011 = vmatprep.subr.mxu0 0.0
  %1012 = vmatpush1.msra.mxu0 %v143
  %1013 = vmatprep.subr.mxu0 0.0
  %1014 = vmatpush2.msra.mxu0 0.0
  %1015 = vmatprep.subr.mxu0 0.0
  %1016 = vmatpush2.msra.mxu0 0.0
  %1017 = vmatprep.subr.mxu0 0.0
  %1018 = vmatpush2.msra.mxu0 0.0
  %1019 = vmatprep.subr.mxu0 0.0
  %1020 = vmatpush2.msra.mxu0 0.0
  %1021 = vmatprep.subr.mxu0 0.0
  %1022 = vmatpush2.msra.mxu0 0.0
  %1023 = vmatprep.subr.mxu0 0.0
  %1024 = vmatpush2.msra.mxu0 0.0
  %1025 = vmatprep.subr.mxu0 0.0
  %1026 = vmatpush2.msra.mxu0 0.0
  %1027 = vmatprep.subr.mxu0 0.0
  %1028 = vmatpush2.msra.mxu0 0.0
  %1029 = vmatprep.subr.mxu0 0.0
  %1030 = vmatpush2.msra.mxu0 0.0
  %1031 = vmatprep.subr.mxu0 0.0
  %1032 = vmatpush2.msra.mxu0 0.0
  %1033 = vmatprep.subr.mxu0 0.0
  %1034 = vmatpush2.msra.mxu0 0.0
  %1035 = vmatprep.subr.mxu0 0.0
  %1036 = vmatpush2.msra.mxu0 0.0
  %1037 = vmatprep.subr.mxu0 0.0
  %1038 = vmatpush2.msra.mxu0 0.0
  %1039 = vmatprep.subr.mxu0 0.0
  %1040 = vmatpush2.msra.mxu0 0.0
  %1041 = vmatprep.subr.mxu0 0.0
  %1042 = vmatpush2.msra.mxu0 0.0
  %1043 = vmatprep.subr.mxu0 0.0
  %1044 = vmatpush2.msra.mxu0 0.0
  %1045 = vmatprep.mubr.f32.mxu0 0.0
  %1046 = vmatmul.mubr.f32.gmra.mxu0 %v977
  %v1047 = vpop.f32.mrf.mxu0
  %v1048 = vadd.f32 0.0, %v1047
  %v1049 = vpop.f32.mrf.mxu0
  %1050 = vmatprep.mubr.f32.mxu0 0.0
  %1051 = vmatmul.mubr.f32.gmra.mxu0 %v978
  %v1052 = vpop.f32.mrf.mxu0
  %v1053 = vadd.f32 0.0, %v1052
  %v1054 = vpop.f32.mrf.mxu0
  %1055 = vmatprep.mubr.f32.mxu0 0.0
  %1056 = vmatmul.mubr.f32.gmra.mxu0 %v979
  %v1057 = vpop.f32.mrf.mxu0
  %v1058 = vadd.f32 0.0, %v1057
  %v1059 = vpop.f32.mrf.mxu0
  %1060 = vmatprep.mubr.f32.mxu0 0.0
  %1061 = vmatmul.mubr.f32.gmra.mxu0 %v980
  %v1062 = vpop.f32.mrf.mxu0
  %v1063 = vadd.f32 0.0, %v1062
  %v1064 = vpop.f32.mrf.mxu0
  %1065 = vdwg.mxu0
  %v1066 = vadd.f32 %v959, %v964
  %v1067 = vadd.f32 %v1066, %v969
  %v1068 = vadd.f32 %v1067, %v974
  %v1069 = vrot.slane %v1068, 4
  %v1070 = vadd.f32 %v1068, %v1069
  %v1071 = vrot.slane %v1070, 2
  %v1072 = vadd.f32 %v1070, %v1071
  %v1073 = vrot.slane %v1072, 1
  %v1074 = vadd.f32 %v1072, %v1073
  %v1075 = vmul.f32 %v1074, 0.001953125
  %v1076 = vadd.f32 %v1048, %v1053
  %v1077 = vadd.f32 %v1076, %v1058
  %v1078 = vadd.f32 %v1077, %v1063
  %v1079 = vrot.slane %v1078, 4
  %v1080 = vadd.f32 %v1078, %v1079
  %v1081 = vrot.slane %v1080, 2
  %v1082 = vadd.f32 %v1080, %v1081
  %v1083 = vrot.slane %v1082, 1
  %v1084 = vadd.f32 %v1082, %v1083
  %v1085 = vmul.f32 %v1084, 0.001953125
  %v1086 = vmul.f32 %v1075, %v1075
  %v1087 = vsub.f32 %v1085, %v1086
  %v1088 = vmax.f32 %v1087, 0.0
  %s1089 = scalar_lea.vmem %s9, 2
  %v1090 = vld [vmem:[%s1089] sm:$0x1]
  %v1091 = vadd.f32 %v1088, 1e-05
  %v1092 = vrsqrt.pop %v1091
  %v1093 = vmul.f32 %v1090, %v1092
  %v1094 = vld [vmem:[%s1089 + $0x1] sm:$0x1]
  %v1095 = vmul.f32 %v1075, %v1093
  %v1096 = vsub.f32 %v1094, %v1095
  %v1097 = vlaneseq
  %v1098 = vshrl.u32 %v1097, 7
  %v1099 = vsub.s32 0, %v1098
  %v1100 = vrot.slane %v1093, %v1099
  %v1101 = vmul.f32 %v887, %v1100
  %v1102 = vmul.f32 %v888, %v1100
  %v1103 = vmul.f32 %v889, %v1100
  %v1104 = vmul.f32 %v890, %v1100
  %v1105 = vlaneseq
  %v1106 = vshrl.u32 %v1105, 7
  %v1107 = vsub.s32 0, %v1106
  %v1108 = vrot.slane %v1096, %v1107
  %v1109 = vadd.f32 %v1101, %v1108
  %v1110 = vadd.f32 %v1102, %v1108
  %v1111 = vadd.f32 %v1103, %v1108
  %v1112 = vadd.f32 %v1104, %v1108
  %v1113 = vmax.f32 %v1109, 0.0
  %v1114 = vmax.f32 %v1110, 0.0
  %v1115 = vmax.f32 %v1111, 0.0
  %v1116 = vmax.f32 %v1112, 0.0
  %v1117 = vlaneseq
  %v1118 = vshrl.u32 %v1117, 7
  %v1119 = vsub.s32 0, %v1118
  %v1120 = vrot.slane %v891, %v1119
  %v1121 = vmul.f32 %v1113, %v1120
  %v1122 = vmul.f32 %v1114, %v1120
  %v1123 = vmul.f32 %v1115, %v1120
  %v1124 = vmul.f32 %v1116, %v1120
  %1125 = vmatprep.subr.mxu0 0.0
  %1126 = vmatpush1.msra.mxu0 0.0
  %1127 = vmatprep.subr.mxu0 0.0
  %1128 = vmatpush1.msra.mxu0 0.0
  %1129 = vmatprep.subr.mxu0 0.0
  %1130 = vmatpush1.msra.mxu0 0.0
  %1131 = vmatprep.subr.mxu0 0.0
  %1132 = vmatpush1.msra.mxu0 0.0
  %1133 = vmatprep.subr.mxu0 0.0
  %1134 = vmatpush1.msra.mxu0 0.0
  %1135 = vmatprep.subr.mxu0 0.0
  %1136 = vmatpush1.msra.mxu0 0.0
  %1137 = vmatprep.subr.mxu0 0.0
  %1138 = vmatpush1.msra.mxu0 0.0
  %1139 = vmatprep.subr.mxu0 0.0
  %1140 = vmatpush1.msra.mxu0 0.0
  %1141 = vmatprep.subr.mxu0 0.0
  %1142 = vmatpush1.msra.mxu0 0.0
  %1143 = vmatprep.subr.mxu0 0.0
  %1144 = vmatpush1.msra.mxu0 0.0
  %1145 = vmatprep.subr.mxu0 0.0
  %1146 = vmatpush1.msra.mxu0 0.0
  %1147 = vmatprep.subr.mxu0 0.0
  %1148 = vmatpush1.msra.mxu0 0.0
  %1149 = vmatprep.subr.mxu0 0.0
  %1150 = vmatpush1.msra.mxu0 %v1124
  %1151 = vmatprep.subr.mxu0 0.0
  %1152 = vmatpush1.msra.mxu0 %v1123
  %1153 = vmatprep.subr.mxu0 0.0
  %1154 = vmatpush1.msra.mxu0 %v1122
  %1155 = vmatprep.subr.mxu0 0.0
  %1156 = vmatpush1.msra.mxu0 %v1121
  %1157 = vmatprep.subr.mxu0 0.0
  %1158 = vmatpush2.msra.mxu0 0.0
  %1159 = vmatprep.subr.mxu0 0.0
  %1160 = vmatpush2.msra.mxu0 0.0
  %1161 = vmatprep.subr.mxu0 0.0
  %1162 = vmatpush2.msra.mxu0 0.0
  %1163 = vmatprep.subr.mxu0 0.0
  %1164 = vmatpush2.msra.mxu0 0.0
  %1165 = vmatprep.subr.mxu0 0.0
  %1166 = vmatpush2.msra.mxu0 0.0
  %1167 = vmatprep.subr.mxu0 0.0
  %1168 = vmatpush2.msra.mxu0 0.0
  %1169 = vmatprep.subr.mxu0 0.0
  %1170 = vmatpush2.msra.mxu0 0.0
  %1171 = vmatprep.subr.mxu0 0.0
  %1172 = vmatpush2.msra.mxu0 0.0
  %1173 = vmatprep.subr.mxu0 0.0
  %1174 = vmatpush2.msra.mxu0 0.0
  %1175 = vmatprep.subr.mxu0 0.0
  %1176 = vmatpush2.msra.mxu0 0.0
  %1177 = vmatprep.subr.mxu0 0.0
  %1178 = vmatpush2.msra.mxu0 0.0
  %1179 = vmatprep.subr.mxu0 0.0
  %1180 = vmatpush2.msra.mxu0 0.0
  %1181 = vmatprep.subr.mxu0 0.0
  %1182 = vmatpush2.msra.mxu0 0.0
  %1183 = vmatprep.subr.mxu0 0.0
  %1184 = vmatpush2.msra.mxu0 0.0
  %1185 = vmatprep.subr.mxu0 0.0
  %1186 = vmatpush2.msra.mxu0 0.0
  %1187 = vmatprep.subr.mxu0 0.0
  %1188 = vmatpush2.msra.mxu0 0.0
  %1189 = vmatprep.mubr.f32.mxu0 0.0
  %1190 = vmatmul.mubr.f32.gmra.mxu0 %v385
  %v1191 = vpop.f32.mrf.mxu0
  %v1192 = vadd.f32 0.0, %v1191
  %v1193 = vpop.f32.mrf.mxu0
  %1194 = vmatprep.mubr.f32.mxu0 0.0
  %1195 = vmatmul.mubr.f32.gmra.mxu0 %v388
  %v1196 = vpop.f32.mrf.mxu0
  %v1197 = vadd.f32 0.0, %v1196
  %v1198 = vpop.f32.mrf.mxu0
  %1199 = vmatprep.mubr.f32.mxu0 0.0
  %1200 = vmatmul.mubr.f32.gmra.mxu0 %v391
  %v1201 = vpop.f32.mrf.mxu0
  %v1202 = vadd.f32 0.0, %v1201
  %v1203 = vpop.f32.mrf.mxu0
  %1204 = vmatprep.mubr.f32.mxu0 0.0
  %1205 = vmatmul.mubr.f32.gmra.mxu0 %v394
  %v1206 = vpop.f32.mrf.mxu0
  %v1207 = vadd.f32 0.0, %v1206
  %v1208 = vpop.f32.mrf.mxu0
  %1209 = vdwg.mxu0
  %1210 = vmatprep.subr.mxu0 0.0
  %1211 = vmatpush1.msra.mxu0 0.0
  %1212 = vmatprep.subr.mxu0 0.0
  %1213 = vmatpush1.msra.mxu0 0.0
  %1214 = vmatprep.subr.mxu0 0.0
  %1215 = vmatpush1.msra.mxu0 0.0
  %1216 = vmatprep.subr.mxu0 0.0
  %1217 = vmatpush1.msra.mxu0 0.0
  %1218 = vmatprep.subr.mxu0 0.0
  %1219 = vmatpush1.msra.mxu0 0.0
  %1220 = vmatprep.subr.mxu0 0.0
  %1221 = vmatpush1.msra.mxu0 0.0
  %1222 = vmatprep.subr.mxu0 0.0
  %1223 = vmatpush1.msra.mxu0 0.0
  %1224 = vmatprep.subr.mxu0 0.0
  %1225 = vmatpush1.msra.mxu0 0.0
  %1226 = vmatprep.subr.mxu0 0.0
  %1227 = vmatpush1.msra.mxu0 0.0
  %1228 = vmatprep.subr.mxu0 0.0
  %1229 = vmatpush1.msra.mxu0 0.0
  %1230 = vmatprep.subr.mxu0 0.0
  %1231 = vmatpush1.msra.mxu0 0.0
  %1232 = vmatprep.subr.mxu0 0.0
  %1233 = vmatpush1.msra.mxu0 0.0
  %1234 = vmatprep.subr.mxu0 0.0
  %1235 = vmatpush1.msra.mxu0 %v1124
  %1236 = vmatprep.subr.mxu0 0.0
  %1237 = vmatpush1.msra.mxu0 %v1123
  %1238 = vmatprep.subr.mxu0 0.0
  %1239 = vmatpush1.msra.mxu0 %v1122
  %1240 = vmatprep.subr.mxu0 0.0
  %1241 = vmatpush1.msra.mxu0 %v1121
  %1242 = vmatprep.subr.mxu0 0.0
  %1243 = vmatpush2.msra.mxu0 0.0
  %1244 = vmatprep.subr.mxu0 0.0
  %1245 = vmatpush2.msra.mxu0 0.0
  %1246 = vmatprep.subr.mxu0 0.0
  %1247 = vmatpush2.msra.mxu0 0.0
  %1248 = vmatprep.subr.mxu0 0.0
  %1249 = vmatpush2.msra.mxu0 0.0
  %1250 = vmatprep.subr.mxu0 0.0
  %1251 = vmatpush2.msra.mxu0 0.0
  %1252 = vmatprep.subr.mxu0 0.0
  %1253 = vmatpush2.msra.mxu0 0.0
  %1254 = vmatprep.subr.mxu0 0.0
  %1255 = vmatpush2.msra.mxu0 0.0
  %1256 = vmatprep.subr.mxu0 0.0
  %1257 = vmatpush2.msra.mxu0 0.0
  %1258 = vmatprep.subr.mxu0 0.0
  %1259 = vmatpush2.msra.mxu0 0.0
  %1260 = vmatprep.subr.mxu0 0.0
  %1261 = vmatpush2.msra.mxu0 0.0
  %1262 = vmatprep.subr.mxu0 0.0
  %1263 = vmatpush2.msra.mxu0 0.0
  %1264 = vmatprep.subr.mxu0 0.0
  %1265 = vmatpush2.msra.mxu0 0.0
  %1266 = vmatprep.subr.mxu0 0.0
  %1267 = vmatpush2.msra.mxu0 0.0
  %1268 = vmatprep.subr.mxu0 0.0
  %1269 = vmatpush2.msra.mxu0 0.0
  %1270 = vmatprep.subr.mxu0 0.0
  %1271 = vmatpush2.msra.mxu0 0.0
  %1272 = vmatprep.subr.mxu0 0.0
  %1273 = vmatpush2.msra.mxu0 0.0
  %1274 = vmatprep.mubr.f32.mxu0 0.0
  %1275 = vmatmul.mubr.f32.gmra.mxu0 %v486
  %v1276 = vpop.f32.mrf.mxu0
  %v1277 = vadd.f32 0.0, %v1276
  %v1278 = vpop.f32.mrf.mxu0
  %1279 = vmatprep.mubr.f32.mxu0 0.0
  %1280 = vmatmul.mubr.f32.gmra.mxu0 %v489
  %v1281 = vpop.f32.mrf.mxu0
  %v1282 = vadd.f32 0.0, %v1281
  %v1283 = vpop.f32.mrf.mxu0
  %1284 = vmatprep.mubr.f32.mxu0 0.0
  %1285 = vmatmul.mubr.f32.gmra.mxu0 %v492
  %v1286 = vpop.f32.mrf.mxu0
  %v1287 = vadd.f32 0.0, %v1286
  %v1288 = vpop.f32.mrf.mxu0
  %1289 = vmatprep.mubr.f32.mxu0 0.0
  %1290 = vmatmul.mubr.f32.gmra.mxu0 %v495
  %v1291 = vpop.f32.mrf.mxu0
  %v1292 = vadd.f32 0.0, %v1291
  %v1293 = vpop.f32.mrf.mxu0
  %1294 = vdwg.mxu0
  %v1295 = vld [vmem:[%s3] sm:$0xff]
  %v1296 = vld [vmem:[%s3 + $0x8] sm:$0xff]
  %v1297 = vld [vmem:[%s3 + $0x10] sm:$0xff]
  %v1298 = vld [vmem:[%s3 + $0x18] sm:$0xff]
  %v1299 = vld [vmem:[%s3 + $0x20] sm:$0xff]
  %v1300 = vld [vmem:[%s3 + $0x28] sm:$0xff]
  %v1301 = vld [vmem:[%s3 + $0x30] sm:$0xff]
  %v1302 = vld [vmem:[%s3 + $0x38] sm:$0xff]
  %v1303 = vld [vmem:[%s3 + $0x40] sm:$0xff]
  %v1304 = vld [vmem:[%s3 + $0x48] sm:$0xff]
  %v1305 = vld [vmem:[%s3 + $0x50] sm:$0xff]
  %v1306 = vld [vmem:[%s3 + $0x58] sm:$0xff]
  %v1307 = vld [vmem:[%s3 + $0x60] sm:$0xff]
  %v1308 = vld [vmem:[%s3 + $0x68] sm:$0xff]
  %v1309 = vld [vmem:[%s3 + $0x70] sm:$0xff]
  %v1310 = vld [vmem:[%s3 + $0x78] sm:$0xff]
  %s1311 = scalar_lea.vmem %s3, 128
  %v1312 = vld [vmem:[%s1311] sm:$0xff]
  %v1313 = vld [vmem:[%s1311 + $0x8] sm:$0xff]
  %v1314 = vld [vmem:[%s1311 + $0x10] sm:$0xff]
  %v1315 = vld [vmem:[%s1311 + $0x18] sm:$0xff]
  %v1316 = vld [vmem:[%s1311 + $0x20] sm:$0xff]
  %v1317 = vld [vmem:[%s1311 + $0x28] sm:$0xff]
  %v1318 = vld [vmem:[%s1311 + $0x30] sm:$0xff]
  %v1319 = vld [vmem:[%s1311 + $0x38] sm:$0xff]
  %v1320 = vld [vmem:[%s1311 + $0x40] sm:$0xff]
  %v1321 = vld [vmem:[%s1311 + $0x48] sm:$0xff]
  %v1322 = vld [vmem:[%s1311 + $0x50] sm:$0xff]
  %v1323 = vld [vmem:[%s1311 + $0x58] sm:$0xff]
  %v1324 = vld [vmem:[%s1311 + $0x60] sm:$0xff]
  %v1325 = vld [vmem:[%s1311 + $0x68] sm:$0xff]
  %v1326 = vld [vmem:[%s1311 + $0x70] sm:$0xff]
  %v1327 = vld [vmem:[%s1311 + $0x78] sm:$0xff]
  %1328 = vmatprep.subr.mxu0 0.0
  %1329 = vmatpush1.msra.mxu0 %v1327
  %1330 = vmatprep.subr.mxu0 0.0
  %1331 = vmatpush1.msra.mxu0 %v1326
  %1332 = vmatprep.subr.mxu0 0.0
  %1333 = vmatpush1.msra.mxu0 %v1325
  %1334 = vmatprep.subr.mxu0 0.0
  %1335 = vmatpush1.msra.mxu0 %v1324
  %1336 = vmatprep.subr.mxu0 0.0
  %1337 = vmatpush1.msra.mxu0 %v1323
  %1338 = vmatprep.subr.mxu0 0.0
  %1339 = vmatpush1.msra.mxu0 %v1322
  %1340 = vmatprep.subr.mxu0 0.0
  %1341 = vmatpush1.msra.mxu0 %v1321
  %1342 = vmatprep.subr.mxu0 0.0
  %1343 = vmatpush1.msra.mxu0 %v1320
  %1344 = vmatprep.subr.mxu0 0.0
  %1345 = vmatpush1.msra.mxu0 %v1319
  %1346 = vmatprep.subr.mxu0 0.0
  %1347 = vmatpush1.msra.mxu0 %v1318
  %1348 = vmatprep.subr.mxu0 0.0
  %1349 = vmatpush1.msra.mxu0 %v1317
  %1350 = vmatprep.subr.mxu0 0.0
  %1351 = vmatpush1.msra.mxu0 %v1316
  %1352 = vmatprep.subr.mxu0 0.0
  %1353 = vmatpush1.msra.mxu0 %v1315
  %1354 = vmatprep.subr.mxu0 0.0
  %1355 = vmatpush1.msra.mxu0 %v1314
  %1356 = vmatprep.subr.mxu0 0.0
  %1357 = vmatpush1.msra.mxu0 %v1313
  %1358 = vmatprep.subr.mxu0 0.0
  %1359 = vmatpush1.msra.mxu0 %v1312
  %1360 = vmatprep.subr.mxu0 0.0
  %1361 = vmatpush2.msra.mxu0 0.0
  %1362 = vmatprep.subr.mxu0 0.0
  %1363 = vmatpush2.msra.mxu0 0.0
  %1364 = vmatprep.subr.mxu0 0.0
  %1365 = vmatpush2.msra.mxu0 0.0
  %1366 = vmatprep.subr.mxu0 0.0
  %1367 = vmatpush2.msra.mxu0 0.0
  %1368 = vmatprep.subr.mxu0 0.0
  %1369 = vmatpush2.msra.mxu0 0.0
  %1370 = vmatprep.subr.mxu0 0.0
  %1371 = vmatpush2.msra.mxu0 0.0
  %1372 = vmatprep.subr.mxu0 0.0
  %1373 = vmatpush2.msra.mxu0 0.0
  %1374 = vmatprep.subr.mxu0 0.0
  %1375 = vmatpush2.msra.mxu0 0.0
  %1376 = vmatprep.subr.mxu0 0.0
  %1377 = vmatpush2.msra.mxu0 0.0
  %1378 = vmatprep.subr.mxu0 0.0
  %1379 = vmatpush2.msra.mxu0 0.0
  %1380 = vmatprep.subr.mxu0 0.0
  %1381 = vmatpush2.msra.mxu0 0.0
  %1382 = vmatprep.subr.mxu0 0.0
  %1383 = vmatpush2.msra.mxu0 0.0
  %1384 = vmatprep.subr.mxu0 0.0
  %1385 = vmatpush2.msra.mxu0 0.0
  %1386 = vmatprep.subr.mxu0 0.0
  %1387 = vmatpush2.msra.mxu0 0.0
  %1388 = vmatprep.subr.mxu0 0.0
  %1389 = vmatpush2.msra.mxu0 0.0
  %1390 = vmatprep.subr.mxu0 0.0
  %1391 = vmatpush2.msra.mxu0 0.0
  %1392 = vmatprep.mubr.f32.mxu0 0.0
  %1393 = vmatmul.mubr.f32.gmra.mxu0 %v1121
  %v1394 = vpop.f32.mrf.mxu0
  %v1395 = vadd.f32 0.0, %v1394
  %v1396 = vpop.f32.mrf.mxu0
  %1397 = vmatprep.mubr.f32.mxu0 0.0
  %1398 = vmatmul.mubr.f32.gmra.mxu0 %v1122
  %v1399 = vpop.f32.mrf.mxu0
  %v1400 = vadd.f32 0.0, %v1399
  %v1401 = vpop.f32.mrf.mxu0
  %1402 = vmatprep.mubr.f32.mxu0 0.0
  %1403 = vmatmul.mubr.f32.gmra.mxu0 %v1123
  %v1404 = vpop.f32.mrf.mxu0
  %v1405 = vadd.f32 0.0, %v1404
  %v1406 = vpop.f32.mrf.mxu0
  %1407 = vmatprep.mubr.f32.mxu0 0.0
  %1408 = vmatmul.mubr.f32.gmra.mxu0 %v1124
  %v1409 = vpop.f32.mrf.mxu0
  %v1410 = vadd.f32 0.0, %v1409
  %v1411 = vpop.f32.mrf.mxu0
  %1412 = vdwg.mxu0
  %1413 = vmatprep.subr.mxu0 0.0
  %1414 = vmatpush1.msra.mxu0 %v1310
  %1415 = vmatprep.subr.mxu0 0.0
  %1416 = vmatpush1.msra.mxu0 %v1309
  %1417 = vmatprep.subr.mxu0 0.0
  %1418 = vmatpush1.msra.mxu0 %v1308
  %1419 = vmatprep.subr.mxu0 0.0
  %1420 = vmatpush1.msra.mxu0 %v1307
  %1421 = vmatprep.subr.mxu0 0.0
  %1422 = vmatpush1.msra.mxu0 %v1306
  %1423 = vmatprep.subr.mxu0 0.0
  %1424 = vmatpush1.msra.mxu0 %v1305
  %1425 = vmatprep.subr.mxu0 0.0
  %1426 = vmatpush1.msra.mxu0 %v1304
  %1427 = vmatprep.subr.mxu0 0.0
  %1428 = vmatpush1.msra.mxu0 %v1303
  %1429 = vmatprep.subr.mxu0 0.0
  %1430 = vmatpush1.msra.mxu0 %v1302
  %1431 = vmatprep.subr.mxu0 0.0
  %1432 = vmatpush1.msra.mxu0 %v1301
  %1433 = vmatprep.subr.mxu0 0.0
  %1434 = vmatpush1.msra.mxu0 %v1300
  %1435 = vmatprep.subr.mxu0 0.0
  %1436 = vmatpush1.msra.mxu0 %v1299
  %1437 = vmatprep.subr.mxu0 0.0
  %1438 = vmatpush1.msra.mxu0 %v1298
  %1439 = vmatprep.subr.mxu0 0.0
  %1440 = vmatpush1.msra.mxu0 %v1297
  %1441 = vmatprep.subr.mxu0 0.0
  %1442 = vmatpush1.msra.mxu0 %v1296
  %1443 = vmatprep.subr.mxu0 0.0
  %1444 = vmatpush1.msra.mxu0 %v1295
  %1445 = vmatprep.subr.mxu0 0.0
  %1446 = vmatpush2.msra.mxu0 0.0
  %1447 = vmatprep.subr.mxu0 0.0
  %1448 = vmatpush2.msra.mxu0 0.0
  %1449 = vmatprep.subr.mxu0 0.0
  %1450 = vmatpush2.msra.mxu0 0.0
  %1451 = vmatprep.subr.mxu0 0.0
  %1452 = vmatpush2.msra.mxu0 0.0
  %1453 = vmatprep.subr.mxu0 0.0
  %1454 = vmatpush2.msra.mxu0 0.0
  %1455 = vmatprep.subr.mxu0 0.0
  %1456 = vmatpush2.msra.mxu0 0.0
  %1457 = vmatprep.subr.mxu0 0.0
  %1458 = vmatpush2.msra.mxu0 0.0
  %1459 = vmatprep.subr.mxu0 0.0
  %1460 = vmatpush2.msra.mxu0 0.0
  %1461 = vmatprep.subr.mxu0 0.0
  %1462 = vmatpush2.msra.mxu0 0.0
  %1463 = vmatprep.subr.mxu0 0.0
  %1464 = vmatpush2.msra.mxu0 0.0
  %1465 = vmatprep.subr.mxu0 0.0
  %1466 = vmatpush2.msra.mxu0 0.0
  %1467 = vmatprep.subr.mxu0 0.0
  %1468 = vmatpush2.msra.mxu0 0.0
  %1469 = vmatprep.subr.mxu0 0.0
  %1470 = vmatpush2.msra.mxu0 0.0
  %1471 = vmatprep.subr.mxu0 0.0
  %1472 = vmatpush2.msra.mxu0 0.0
  %1473 = vmatprep.subr.mxu0 0.0
  %1474 = vmatpush2.msra.mxu0 0.0
  %1475 = vmatprep.subr.mxu0 0.0
  %1476 = vmatpush2.msra.mxu0 0.0
  %1477 = vmatprep.mubr.f32.mxu0 0.0
  %1478 = vmatmul.mubr.f32.gmra.mxu0 %v1192
  %v1479 = vpop.f32.mrf.mxu0
  %v1480 = vadd.f32 %v1395, %v1479
  %v1481 = vpop.f32.mrf.mxu0
  %1482 = vmatprep.mubr.f32.mxu0 0.0
  %1483 = vmatmul.mubr.f32.gmra.mxu0 %v1197
  %v1484 = vpop.f32.mrf.mxu0
  %v1485 = vadd.f32 %v1400, %v1484
  %v1486 = vpop.f32.mrf.mxu0
  %1487 = vmatprep.mubr.f32.mxu0 0.0
  %1488 = vmatmul.mubr.f32.gmra.mxu0 %v1202
  %v1489 = vpop.f32.mrf.mxu0
  %v1490 = vadd.f32 %v1405, %v1489
  %v1491 = vpop.f32.mrf.mxu0
  %1492 = vmatprep.mubr.f32.mxu0 0.0
  %1493 = vmatmul.mubr.f32.gmra.mxu0 %v1207
  %v1494 = vpop.f32.mrf.mxu0
  %v1495 = vadd.f32 %v1410, %v1494
  %v1496 = vpop.f32.mrf.mxu0
  %1497 = vdwg.mxu0
  %s1498 = scalar_lea.vmem %s3, 256
  %v1499 = vld [vmem:[%s1498] sm:$0xff]
  %v1500 = vld [vmem:[%s1498 + $0x8] sm:$0xff]
  %v1501 = vld [vmem:[%s1498 + $0x10] sm:$0xff]
  %v1502 = vld [vmem:[%s1498 + $0x18] sm:$0xff]
  %v1503 = vld [vmem:[%s1498 + $0x20] sm:$0xff]
  %v1504 = vld [vmem:[%s1498 + $0x28] sm:$0xff]
  %v1505 = vld [vmem:[%s1498 + $0x30] sm:$0xff]
  %v1506 = vld [vmem:[%s1498 + $0x38] sm:$0xff]
  %v1507 = vld [vmem:[%s1498 + $0x40] sm:$0xff]
  %v1508 = vld [vmem:[%s1498 + $0x48] sm:$0xff]
  %v1509 = vld [vmem:[%s1498 + $0x50] sm:$0xff]
  %v1510 = vld [vmem:[%s1498 + $0x58] sm:$0xff]
  %v1511 = vld [vmem:[%s1498 + $0x60] sm:$0xff]
  %v1512 = vld [vmem:[%s1498 + $0x68] sm:$0xff]
  %v1513 = vld [vmem:[%s1498 + $0x70] sm:$0xff]
  %v1514 = vld [vmem:[%s1498 + $0x78] sm:$0xff]
  %1515 = vmatprep.subr.mxu0 0.0
  %1516 = vmatpush1.msra.mxu0 %v1514
  %1517 = vmatprep.subr.mxu0 0.0
  %1518 = vmatpush1.msra.mxu0 %v1513
  %1519 = vmatprep.subr.mxu0 0.0
  %1520 = vmatpush1.msra.mxu0 %v1512
  %1521 = vmatprep.subr.mxu0 0.0
  %1522 = vmatpush1.msra.mxu0 %v1511
  %1523 = vmatprep.subr.mxu0 0.0
  %1524 = vmatpush1.msra.mxu0 %v1510
  %1525 = vmatprep.subr.mxu0 0.0
  %1526 = vmatpush1.msra.mxu0 %v1509
  %1527 = vmatprep.subr.mxu0 0.0
  %1528 = vmatpush1.msra.mxu0 %v1508
  %1529 = vmatprep.subr.mxu0 0.0
  %1530 = vmatpush1.msra.mxu0 %v1507
  %1531 = vmatprep.subr.mxu0 0.0
  %1532 = vmatpush1.msra.mxu0 %v1506
  %1533 = vmatprep.subr.mxu0 0.0
  %1534 = vmatpush1.msra.mxu0 %v1505
  %1535 = vmatprep.subr.mxu0 0.0
  %1536 = vmatpush1.msra.mxu0 %v1504
  %1537 = vmatprep.subr.mxu0 0.0
  %1538 = vmatpush1.msra.mxu0 %v1503
  %1539 = vmatprep.subr.mxu0 0.0
  %1540 = vmatpush1.msra.mxu0 %v1502
  %1541 = vmatprep.subr.mxu0 0.0
  %1542 = vmatpush1.msra.mxu0 %v1501
  %1543 = vmatprep.subr.mxu0 0.0
  %1544 = vmatpush1.msra.mxu0 %v1500
  %1545 = vmatprep.subr.mxu0 0.0
  %1546 = vmatpush1.msra.mxu0 %v1499
  %1547 = vmatprep.subr.mxu0 0.0
  %1548 = vmatpush2.msra.mxu0 0.0
  %1549 = vmatprep.subr.mxu0 0.0
  %1550 = vmatpush2.msra.mxu0 0.0
  %1551 = vmatprep.subr.mxu0 0.0
  %1552 = vmatpush2.msra.mxu0 0.0
  %1553 = vmatprep.subr.mxu0 0.0
  %1554 = vmatpush2.msra.mxu0 0.0
  %1555 = vmatprep.subr.mxu0 0.0
  %1556 = vmatpush2.msra.mxu0 0.0
  %1557 = vmatprep.subr.mxu0 0.0
  %1558 = vmatpush2.msra.mxu0 0.0
  %1559 = vmatprep.subr.mxu0 0.0
  %1560 = vmatpush2.msra.mxu0 0.0
  %1561 = vmatprep.subr.mxu0 0.0
  %1562 = vmatpush2.msra.mxu0 0.0
  %1563 = vmatprep.subr.mxu0 0.0
  %1564 = vmatpush2.msra.mxu0 0.0
  %1565 = vmatprep.subr.mxu0 0.0
  %1566 = vmatpush2.msra.mxu0 0.0
  %1567 = vmatprep.subr.mxu0 0.0
  %1568 = vmatpush2.msra.mxu0 0.0
  %1569 = vmatprep.subr.mxu0 0.0
  %1570 = vmatpush2.msra.mxu0 0.0
  %1571 = vmatprep.subr.mxu0 0.0
  %1572 = vmatpush2.msra.mxu0 0.0
  %1573 = vmatprep.subr.mxu0 0.0
  %1574 = vmatpush2.msra.mxu0 0.0
  %1575 = vmatprep.subr.mxu0 0.0
  %1576 = vmatpush2.msra.mxu0 0.0
  %1577 = vmatprep.subr.mxu0 0.0
  %1578 = vmatpush2.msra.mxu0 0.0
  %1579 = vmatprep.mubr.f32.mxu0 0.0
  %1580 = vmatmul.mubr.f32.gmra.mxu0 %v1277
  %v1581 = vpop.f32.mrf.mxu0
  %v1582 = vadd.f32 0.0, %v1581
  %v1583 = vpop.f32.mrf.mxu0
  %1584 = vmatprep.mubr.f32.mxu0 0.0
  %1585 = vmatmul.mubr.f32.gmra.mxu0 %v1282
  %v1586 = vpop.f32.mrf.mxu0
  %v1587 = vadd.f32 0.0, %v1586
  %v1588 = vpop.f32.mrf.mxu0
  %1589 = vmatprep.mubr.f32.mxu0 0.0
  %1590 = vmatmul.mubr.f32.gmra.mxu0 %v1287
  %v1591 = vpop.f32.mrf.mxu0
  %v1592 = vadd.f32 0.0, %v1591
  %v1593 = vpop.f32.mrf.mxu0
  %1594 = vmatprep.mubr.f32.mxu0 0.0
  %1595 = vmatmul.mubr.f32.gmra.mxu0 %v1292
  %v1596 = vpop.f32.mrf.mxu0
  %v1597 = vadd.f32 0.0, %v1596
  %v1598 = vpop.f32.mrf.mxu0
  %1599 = vdwg.mxu0
  %v1600 = vadd.f32 %v1480, %v1582
  %v1601 = vadd.f32 %v1485, %v1587
  %v1602 = vadd.f32 %v1490, %v1592
  %v1603 = vadd.f32 %v1495, %v1597
  %v1604 = vld [vmem:[%s10 + $0x1] sm:$0x1]
  %1605 = vmatprep.subr.mxu0 0.0
  %1606 = vmatpush1.msra.mxu0 %v158
  %1607 = vmatprep.subr.mxu0 0.0
  %1608 = vmatpush1.msra.mxu0 %v157
  %1609 = vmatprep.subr.mxu0 0.0
  %1610 = vmatpush1.msra.mxu0 %v156
  %1611 = vmatprep.subr.mxu0 0.0
  %1612 = vmatpush1.msra.mxu0 %v155
  %1613 = vmatprep.subr.mxu0 0.0
  %1614 = vmatpush1.msra.mxu0 %v154
  %1615 = vmatprep.subr.mxu0 0.0
  %1616 = vmatpush1.msra.mxu0 %v153
  %1617 = vmatprep.subr.mxu0 0.0
  %1618 = vmatpush1.msra.mxu0 %v152
  %1619 = vmatprep.subr.mxu0 0.0
  %1620 = vmatpush1.msra.mxu0 %v151
  %1621 = vmatprep.subr.mxu0 0.0
  %1622 = vmatpush1.msra.mxu0 %v150
  %1623 = vmatprep.subr.mxu0 0.0
  %1624 = vmatpush1.msra.mxu0 %v149
  %1625 = vmatprep.subr.mxu0 0.0
  %1626 = vmatpush1.msra.mxu0 %v148
  %1627 = vmatprep.subr.mxu0 0.0
  %1628 = vmatpush1.msra.mxu0 %v147
  %1629 = vmatprep.subr.mxu0 0.0
  %1630 = vmatpush1.msra.mxu0 %v146
  %1631 = vmatprep.subr.mxu0 0.0
  %1632 = vmatpush1.msra.mxu0 %v145
  %1633 = vmatprep.subr.mxu0 0.0
  %1634 = vmatpush1.msra.mxu0 %v144
  %1635 = vmatprep.subr.mxu0 0.0
  %1636 = vmatpush1.msra.mxu0 %v143
  %1637 = vmatprep.subr.mxu0 0.0
  %1638 = vmatpush2.msra.mxu0 0.0
  %1639 = vmatprep.subr.mxu0 0.0
  %1640 = vmatpush2.msra.mxu0 0.0
  %1641 = vmatprep.subr.mxu0 0.0
  %1642 = vmatpush2.msra.mxu0 0.0
  %1643 = vmatprep.subr.mxu0 0.0
  %1644 = vmatpush2.msra.mxu0 0.0
  %1645 = vmatprep.subr.mxu0 0.0
  %1646 = vmatpush2.msra.mxu0 0.0
  %1647 = vmatprep.subr.mxu0 0.0
  %1648 = vmatpush2.msra.mxu0 0.0
  %1649 = vmatprep.subr.mxu0 0.0
  %1650 = vmatpush2.msra.mxu0 0.0
  %1651 = vmatprep.subr.mxu0 0.0
  %1652 = vmatpush2.msra.mxu0 0.0
  %1653 = vmatprep.subr.mxu0 0.0
  %1654 = vmatpush2.msra.mxu0 0.0
  %1655 = vmatprep.subr.mxu0 0.0
  %1656 = vmatpush2.msra.mxu0 0.0
  %1657 = vmatprep.subr.mxu0 0.0
  %1658 = vmatpush2.msra.mxu0 0.0
  %1659 = vmatprep.subr.mxu0 0.0
  %1660 = vmatpush2.msra.mxu0 0.0
  %1661 = vmatprep.subr.mxu0 0.0
  %1662 = vmatpush2.msra.mxu0 0.0
  %1663 = vmatprep.subr.mxu0 0.0
  %1664 = vmatpush2.msra.mxu0 0.0
  %1665 = vmatprep.subr.mxu0 0.0
  %1666 = vmatpush2.msra.mxu0 0.0
  %1667 = vmatprep.subr.mxu0 0.0
  %1668 = vmatpush2.msra.mxu0 0.0
  %1669 = vmatprep.mubr.f32.mxu0 0.0
  %1670 = vmatmul.mubr.f32.gmra.mxu0 %v1600
  %v1671 = vpop.f32.mrf.mxu0
  %v1672 = vadd.f32 0.0, %v1671
  %v1673 = vpop.f32.mrf.mxu0
  %1674 = vmatprep.mubr.f32.mxu0 0.0
  %1675 = vmatmul.mubr.f32.gmra.mxu0 %v1601
  %v1676 = vpop.f32.mrf.mxu0
  %v1677 = vadd.f32 0.0, %v1676
  %v1678 = vpop.f32.mrf.mxu0
  %1679 = vmatprep.mubr.f32.mxu0 0.0
  %1680 = vmatmul.mubr.f32.gmra.mxu0 %v1602
  %v1681 = vpop.f32.mrf.mxu0
  %v1682 = vadd.f32 0.0, %v1681
  %v1683 = vpop.f32.mrf.mxu0
  %1684 = vmatprep.mubr.f32.mxu0 0.0
  %1685 = vmatmul.mubr.f32.gmra.mxu0 %v1603
  %v1686 = vpop.f32.mrf.mxu0
  %v1687 = vadd.f32 0.0, %v1686
  %v1688 = vpop.f32.mrf.mxu0
  %1689 = vdwg.mxu0
  %v1690 = vmul.f32 %v1600, %v1600
  %v1691 = vmul.f32 %v1601, %v1601
  %v1692 = vmul.f32 %v1602, %v1602
  %v1693 = vmul.f32 %v1603, %v1603
  %1694 = vmatprep.subr.mxu0 0.0
  %1695 = vmatpush1.msra.mxu0 %v158
  %1696 = vmatprep.subr.mxu0 0.0
  %1697 = vmatpush1.msra.mxu0 %v157
  %1698 = vmatprep.subr.mxu0 0.0
  %1699 = vmatpush1.msra.mxu0 %v156
  %1700 = vmatprep.subr.mxu0 0.0
  %1701 = vmatpush1.msra.mxu0 %v155
  %1702 = vmatprep.subr.mxu0 0.0
  %1703 = vmatpush1.msra.mxu0 %v154
  %1704 = vmatprep.subr.mxu0 0.0
  %1705 = vmatpush1.msra.mxu0 %v153
  %1706 = vmatprep.subr.mxu0 0.0
  %1707 = vmatpush1.msra.mxu0 %v152
  %1708 = vmatprep.subr.mxu0 0.0
  %1709 = vmatpush1.msra.mxu0 %v151
  %1710 = vmatprep.subr.mxu0 0.0
  %1711 = vmatpush1.msra.mxu0 %v150
  %1712 = vmatprep.subr.mxu0 0.0
  %1713 = vmatpush1.msra.mxu0 %v149
  %1714 = vmatprep.subr.mxu0 0.0
  %1715 = vmatpush1.msra.mxu0 %v148
  %1716 = vmatprep.subr.mxu0 0.0
  %1717 = vmatpush1.msra.mxu0 %v147
  %1718 = vmatprep.subr.mxu0 0.0
  %1719 = vmatpush1.msra.mxu0 %v146
  %1720 = vmatprep.subr.mxu0 0.0
  %1721 = vmatpush1.msra.mxu0 %v145
  %1722 = vmatprep.subr.mxu0 0.0
  %1723 = vmatpush1.msra.mxu0 %v144
  %1724 = vmatprep.subr.mxu0 0.0
  %1725 = vmatpush1.msra.mxu0 %v143
  %1726 = vmatprep.subr.mxu0 0.0
  %1727 = vmatpush2.msra.mxu0 0.0
  %1728 = vmatprep.subr.mxu0 0.0
  %1729 = vmatpush2.msra.mxu0 0.0
  %1730 = vmatprep.subr.mxu0 0.0
  %1731 = vmatpush2.msra.mxu0 0.0
  %1732 = vmatprep.subr.mxu0 0.0
  %1733 = vmatpush2.msra.mxu0 0.0
  %1734 = vmatprep.subr.mxu0 0.0
  %1735 = vmatpush2.msra.mxu0 0.0
  %1736 = vmatprep.subr.mxu0 0.0
  %1737 = vmatpush2.msra.mxu0 0.0
  %1738 = vmatprep.subr.mxu0 0.0
  %1739 = vmatpush2.msra.mxu0 0.0
  %1740 = vmatprep.subr.mxu0 0.0
  %1741 = vmatpush2.msra.mxu0 0.0
  %1742 = vmatprep.subr.mxu0 0.0
  %1743 = vmatpush2.msra.mxu0 0.0
  %1744 = vmatprep.subr.mxu0 0.0
  %1745 = vmatpush2.msra.mxu0 0.0
  %1746 = vmatprep.subr.mxu0 0.0
  %1747 = vmatpush2.msra.mxu0 0.0
  %1748 = vmatprep.subr.mxu0 0.0
  %1749 = vmatpush2.msra.mxu0 0.0
  %1750 = vmatprep.subr.mxu0 0.0
  %1751 = vmatpush2.msra.mxu0 0.0
  %1752 = vmatprep.subr.mxu0 0.0
  %1753 = vmatpush2.msra.mxu0 0.0
  %1754 = vmatprep.subr.mxu0 0.0
  %1755 = vmatpush2.msra.mxu0 0.0
  %1756 = vmatprep.subr.mxu0 0.0
  %1757 = vmatpush2.msra.mxu0 0.0
  %1758 = vmatprep.mubr.f32.mxu0 0.0
  %1759 = vmatmul.mubr.f32.gmra.mxu0 %v1690
  %v1760 = vpop.f32.mrf.mxu0
  %v1761 = vadd.f32 0.0, %v1760
  %v1762 = vpop.f32.mrf.mxu0
  %1763 = vmatprep.mubr.f32.mxu0 0.0
  %1764 = vmatmul.mubr.f32.gmra.mxu0 %v1691
  %v1765 = vpop.f32.mrf.mxu0
  %v1766 = vadd.f32 0.0, %v1765
  %v1767 = vpop.f32.mrf.mxu0
  %1768 = vmatprep.mubr.f32.mxu0 0.0
  %1769 = vmatmul.mubr.f32.gmra.mxu0 %v1692
  %v1770 = vpop.f32.mrf.mxu0
  %v1771 = vadd.f32 0.0, %v1770
  %v1772 = vpop.f32.mrf.mxu0
  %1773 = vmatprep.mubr.f32.mxu0 0.0
  %1774 = vmatmul.mubr.f32.gmra.mxu0 %v1693
  %v1775 = vpop.f32.mrf.mxu0
  %v1776 = vadd.f32 0.0, %v1775
  %v1777 = vpop.f32.mrf.mxu0
  %1778 = vdwg.mxu0
  %v1779 = vadd.f32 %v1672, %v1677
  %v1780 = vadd.f32 %v1779, %v1682
  %v1781 = vadd.f32 %v1780, %v1687
  %v1782 = vrot.slane %v1781, 4
  %v1783 = vadd.f32 %v1781, %v1782
  %v1784 = vrot.slane %v1783, 2
  %v1785 = vadd.f32 %v1783, %v1784
  %v1786 = vrot.slane %v1785, 1
  %v1787 = vadd.f32 %v1785, %v1786
  %v1788 = vmul.f32 %v1787, 0.001953125
  %v1789 = vadd.f32 %v1761, %v1766
  %v1790 = vadd.f32 %v1789, %v1771
  %v1791 = vadd.f32 %v1790, %v1776
  %v1792 = vrot.slane %v1791, 4
  %v1793 = vadd.f32 %v1791, %v1792
  %v1794 = vrot.slane %v1793, 2
  %v1795 = vadd.f32 %v1793, %v1794
  %v1796 = vrot.slane %v1795, 1
  %v1797 = vadd.f32 %v1795, %v1796
  %v1798 = vmul.f32 %v1797, 0.001953125
  %v1799 = vmul.f32 %v1788, %v1788
  %v1800 = vsub.f32 %v1798, %v1799
  %v1801 = vmax.f32 %v1800, 0.0
  %s1802 = scalar_lea.vmem %s9, 4
  %v1803 = vld [vmem:[%s1802] sm:$0x1]
  %v1804 = vadd.f32 %v1801, 1e-05
  %v1805 = vrsqrt.pop %v1804
  %v1806 = vmul.f32 %v1803, %v1805
  %v1807 = vld [vmem:[%s1802 + $0x1] sm:$0x1]
  %v1808 = vmul.f32 %v1788, %v1806
  %v1809 = vsub.f32 %v1807, %v1808
  %v1810 = vlaneseq
  %v1811 = vshrl.u32 %v1810, 7
  %v1812 = vsub.s32 0, %v1811
  %v1813 = vrot.slane %v1806, %v1812
  %v1814 = vmul.f32 %v1600, %v1813
  %v1815 = vmul.f32 %v1601, %v1813
  %v1816 = vmul.f32 %v1602, %v1813
  %v1817 = vmul.f32 %v1603, %v1813
  %v1818 = vlaneseq
  %v1819 = vshrl.u32 %v1818, 7
  %v1820 = vsub.s32 0, %v1819
  %v1821 = vrot.slane %v1809, %v1820
  %v1822 = vadd.f32 %v1814, %v1821
  %v1823 = vadd.f32 %v1815, %v1821
  %v1824 = vadd.f32 %v1816, %v1821
  %v1825 = vadd.f32 %v1817, %v1821
  %v1826 = vadd.f32 %v1822, %v375
  %v1827 = vadd.f32 %v1823, %v376
  %v1828 = vadd.f32 %v1824, %v377
  %v1829 = vadd.f32 %v1825, %v378
  %v1830 = vmax.f32 %v1826, 0.0
  %v1831 = vmax.f32 %v1827, 0.0
  %v1832 = vmax.f32 %v1828, 0.0
  %v1833 = vmax.f32 %v1829, 0.0
  %v1834 = vlaneseq
  %v1835 = vshrl.u32 %v1834, 7
  %v1836 = vsub.s32 0, %v1835
  %v1837 = vrot.slane %v1604, %v1836
  %v1838 = vmul.f32 %v1830, %v1837
  %v1839 = vmul.f32 %v1831, %v1837
  %v1840 = vmul.f32 %v1832, %v1837
  %v1841 = vmul.f32 %v1833, %v1837
  %1842 = vmatprep.subr.mxu0 0.0
  %1843 = vmatpush1.msra.mxu0 0.0
  %1844 = vmatprep.subr.mxu0 0.0
  %1845 = vmatpush1.msra.mxu0 0.0
  %1846 = vmatprep.subr.mxu0 0.0
  %1847 = vmatpush1.msra.mxu0 0.0
  %1848 = vmatprep.subr.mxu0 0.0
  %1849 = vmatpush1.msra.mxu0 0.0
  %1850 = vmatprep.subr.mxu0 0.0
  %1851 = vmatpush1.msra.mxu0 0.0
  %1852 = vmatprep.subr.mxu0 0.0
  %1853 = vmatpush1.msra.mxu0 0.0
  %1854 = vmatprep.subr.mxu0 0.0
  %1855 = vmatpush1.msra.mxu0 0.0
  %1856 = vmatprep.subr.mxu0 0.0
  %1857 = vmatpush1.msra.mxu0 0.0
  %1858 = vmatprep.subr.mxu0 0.0
  %1859 = vmatpush1.msra.mxu0 0.0
  %1860 = vmatprep.subr.mxu0 0.0
  %1861 = vmatpush1.msra.mxu0 0.0
  %1862 = vmatprep.subr.mxu0 0.0
  %1863 = vmatpush1.msra.mxu0 0.0
  %1864 = vmatprep.subr.mxu0 0.0
  %1865 = vmatpush1.msra.mxu0 0.0
  %1866 = vmatprep.subr.mxu0 0.0
  %1867 = vmatpush1.msra.mxu0 %v1841
  %1868 = vmatprep.subr.mxu0 0.0
  %1869 = vmatpush1.msra.mxu0 %v1840
  %1870 = vmatprep.subr.mxu0 0.0
  %1871 = vmatpush1.msra.mxu0 %v1839
  %1872 = vmatprep.subr.mxu0 0.0
  %1873 = vmatpush1.msra.mxu0 %v1838
  %1874 = vmatprep.subr.mxu0 0.0
  %1875 = vmatpush2.msra.mxu0 0.0
  %1876 = vmatprep.subr.mxu0 0.0
  %1877 = vmatpush2.msra.mxu0 0.0
  %1878 = vmatprep.subr.mxu0 0.0
  %1879 = vmatpush2.msra.mxu0 0.0
  %1880 = vmatprep.subr.mxu0 0.0
  %1881 = vmatpush2.msra.mxu0 0.0
  %1882 = vmatprep.subr.mxu0 0.0
  %1883 = vmatpush2.msra.mxu0 0.0
  %1884 = vmatprep.subr.mxu0 0.0
  %1885 = vmatpush2.msra.mxu0 0.0
  %1886 = vmatprep.subr.mxu0 0.0
  %1887 = vmatpush2.msra.mxu0 0.0
  %1888 = vmatprep.subr.mxu0 0.0
  %1889 = vmatpush2.msra.mxu0 0.0
  %1890 = vmatprep.subr.mxu0 0.0
  %1891 = vmatpush2.msra.mxu0 0.0
  %1892 = vmatprep.subr.mxu0 0.0
  %1893 = vmatpush2.msra.mxu0 0.0
  %1894 = vmatprep.subr.mxu0 0.0
  %1895 = vmatpush2.msra.mxu0 0.0
  %1896 = vmatprep.subr.mxu0 0.0
  %1897 = vmatpush2.msra.mxu0 0.0
  %1898 = vmatprep.subr.mxu0 0.0
  %1899 = vmatpush2.msra.mxu0 0.0
  %1900 = vmatprep.subr.mxu0 0.0
  %1901 = vmatpush2.msra.mxu0 0.0
  %1902 = vmatprep.subr.mxu0 0.0
  %1903 = vmatpush2.msra.mxu0 0.0
  %1904 = vmatprep.subr.mxu0 0.0
  %1905 = vmatpush2.msra.mxu0 0.0
  %1906 = vmatprep.mubr.f32.mxu0 0.0
  %1907 = vmatmul.mubr.f32.gmra.mxu0 %v385
  %v1908 = vpop.f32.mrf.mxu0
  %v1909 = vadd.f32 0.0, %v1908
  %v1910 = vpop.f32.mrf.mxu0
  %1911 = vmatprep.mubr.f32.mxu0 0.0
  %1912 = vmatmul.mubr.f32.gmra.mxu0 %v388
  %v1913 = vpop.f32.mrf.mxu0
  %v1914 = vadd.f32 0.0, %v1913
  %v1915 = vpop.f32.mrf.mxu0
  %1916 = vmatprep.mubr.f32.mxu0 0.0
  %1917 = vmatmul.mubr.f32.gmra.mxu0 %v391
  %v1918 = vpop.f32.mrf.mxu0
  %v1919 = vadd.f32 0.0, %v1918
  %v1920 = vpop.f32.mrf.mxu0
  %1921 = vmatprep.mubr.f32.mxu0 0.0
  %1922 = vmatmul.mubr.f32.gmra.mxu0 %v394
  %v1923 = vpop.f32.mrf.mxu0
  %v1924 = vadd.f32 0.0, %v1923
  %v1925 = vpop.f32.mrf.mxu0
  %1926 = vdwg.mxu0
  %1927 = vmatprep.subr.mxu0 0.0
  %1928 = vmatpush1.msra.mxu0 0.0
  %1929 = vmatprep.subr.mxu0 0.0
  %1930 = vmatpush1.msra.mxu0 0.0
  %1931 = vmatprep.subr.mxu0 0.0
  %1932 = vmatpush1.msra.mxu0 0.0
  %1933 = vmatprep.subr.mxu0 0.0
  %1934 = vmatpush1.msra.mxu0 0.0
  %1935 = vmatprep.subr.mxu0 0.0
  %1936 = vmatpush1.msra.mxu0 0.0
  %1937 = vmatprep.subr.mxu0 0.0
  %1938 = vmatpush1.msra.mxu0 0.0
  %1939 = vmatprep.subr.mxu0 0.0
  %1940 = vmatpush1.msra.mxu0 0.0
  %1941 = vmatprep.subr.mxu0 0.0
  %1942 = vmatpush1.msra.mxu0 0.0
  %1943 = vmatprep.subr.mxu0 0.0
  %1944 = vmatpush1.msra.mxu0 0.0
  %1945 = vmatprep.subr.mxu0 0.0
  %1946 = vmatpush1.msra.mxu0 0.0
  %1947 = vmatprep.subr.mxu0 0.0
  %1948 = vmatpush1.msra.mxu0 0.0
  %1949 = vmatprep.subr.mxu0 0.0
  %1950 = vmatpush1.msra.mxu0 0.0
  %1951 = vmatprep.subr.mxu0 0.0
  %1952 = vmatpush1.msra.mxu0 %v1841
  %1953 = vmatprep.subr.mxu0 0.0
  %1954 = vmatpush1.msra.mxu0 %v1840
  %1955 = vmatprep.subr.mxu0 0.0
  %1956 = vmatpush1.msra.mxu0 %v1839
  %1957 = vmatprep.subr.mxu0 0.0
  %1958 = vmatpush1.msra.mxu0 %v1838
  %1959 = vmatprep.subr.mxu0 0.0
  %1960 = vmatpush2.msra.mxu0 0.0
  %1961 = vmatprep.subr.mxu0 0.0
  %1962 = vmatpush2.msra.mxu0 0.0
  %1963 = vmatprep.subr.mxu0 0.0
  %1964 = vmatpush2.msra.mxu0 0.0
  %1965 = vmatprep.subr.mxu0 0.0
  %1966 = vmatpush2.msra.mxu0 0.0
  %1967 = vmatprep.subr.mxu0 0.0
  %1968 = vmatpush2.msra.mxu0 0.0
  %1969 = vmatprep.subr.mxu0 0.0
  %1970 = vmatpush2.msra.mxu0 0.0
  %1971 = vmatprep.subr.mxu0 0.0
  %1972 = vmatpush2.msra.mxu0 0.0
  %1973 = vmatprep.subr.mxu0 0.0
  %1974 = vmatpush2.msra.mxu0 0.0
  %1975 = vmatprep.subr.mxu0 0.0
  %1976 = vmatpush2.msra.mxu0 0.0
  %1977 = vmatprep.subr.mxu0 0.0
  %1978 = vmatpush2.msra.mxu0 0.0
  %1979 = vmatprep.subr.mxu0 0.0
  %1980 = vmatpush2.msra.mxu0 0.0
  %1981 = vmatprep.subr.mxu0 0.0
  %1982 = vmatpush2.msra.mxu0 0.0
  %1983 = vmatprep.subr.mxu0 0.0
  %1984 = vmatpush2.msra.mxu0 0.0
  %1985 = vmatprep.subr.mxu0 0.0
  %1986 = vmatpush2.msra.mxu0 0.0
  %1987 = vmatprep.subr.mxu0 0.0
  %1988 = vmatpush2.msra.mxu0 0.0
  %1989 = vmatprep.subr.mxu0 0.0
  %1990 = vmatpush2.msra.mxu0 0.0
  %1991 = vmatprep.mubr.f32.mxu0 0.0
  %1992 = vmatmul.mubr.f32.gmra.mxu0 %v486
  %v1993 = vpop.f32.mrf.mxu0
  %v1994 = vadd.f32 0.0, %v1993
  %v1995 = vpop.f32.mrf.mxu0
  %1996 = vmatprep.mubr.f32.mxu0 0.0
  %1997 = vmatmul.mubr.f32.gmra.mxu0 %v489
  %v1998 = vpop.f32.mrf.mxu0
  %v1999 = vadd.f32 0.0, %v1998
  %v2000 = vpop.f32.mrf.mxu0
  %2001 = vmatprep.mubr.f32.mxu0 0.0
  %2002 = vmatmul.mubr.f32.gmra.mxu0 %v492
  %v2003 = vpop.f32.mrf.mxu0
  %v2004 = vadd.f32 0.0, %v2003
  %v2005 = vpop.f32.mrf.mxu0
  %2006 = vmatprep.mubr.f32.mxu0 0.0
  %2007 = vmatmul.mubr.f32.gmra.mxu0 %v495
  %v2008 = vpop.f32.mrf.mxu0
  %v2009 = vadd.f32 0.0, %v2008
  %v2010 = vpop.f32.mrf.mxu0
  %2011 = vdwg.mxu0
  %v2012 = vld [vmem:[%s4] sm:$0xff]
  %v2013 = vld [vmem:[%s4 + $0x8] sm:$0xff]
  %v2014 = vld [vmem:[%s4 + $0x10] sm:$0xff]
  %v2015 = vld [vmem:[%s4 + $0x18] sm:$0xff]
  %v2016 = vld [vmem:[%s4 + $0x20] sm:$0xff]
  %v2017 = vld [vmem:[%s4 + $0x28] sm:$0xff]
  %v2018 = vld [vmem:[%s4 + $0x30] sm:$0xff]
  %v2019 = vld [vmem:[%s4 + $0x38] sm:$0xff]
  %v2020 = vld [vmem:[%s4 + $0x40] sm:$0xff]
  %v2021 = vld [vmem:[%s4 + $0x48] sm:$0xff]
  %v2022 = vld [vmem:[%s4 + $0x50] sm:$0xff]
  %v2023 = vld [vmem:[%s4 + $0x58] sm:$0xff]
  %v2024 = vld [vmem:[%s4 + $0x60] sm:$0xff]
  %v2025 = vld [vmem:[%s4 + $0x68] sm:$0xff]
  %v2026 = vld [vmem:[%s4 + $0x70] sm:$0xff]
  %v2027 = vld [vmem:[%s4 + $0x78] sm:$0xff]
  %s2028 = scalar_lea.vmem %s4, 128
  %v2029 = vld [vmem:[%s2028] sm:$0xff]
  %v2030 = vld [vmem:[%s2028 + $0x8] sm:$0xff]
  %v2031 = vld [vmem:[%s2028 + $0x10] sm:$0xff]
  %v2032 = vld [vmem:[%s2028 + $0x18] sm:$0xff]
  %v2033 = vld [vmem:[%s2028 + $0x20] sm:$0xff]
  %v2034 = vld [vmem:[%s2028 + $0x28] sm:$0xff]
  %v2035 = vld [vmem:[%s2028 + $0x30] sm:$0xff]
  %v2036 = vld [vmem:[%s2028 + $0x38] sm:$0xff]
  %v2037 = vld [vmem:[%s2028 + $0x40] sm:$0xff]
  %v2038 = vld [vmem:[%s2028 + $0x48] sm:$0xff]
  %v2039 = vld [vmem:[%s2028 + $0x50] sm:$0xff]
  %v2040 = vld [vmem:[%s2028 + $0x58] sm:$0xff]
  %v2041 = vld [vmem:[%s2028 + $0x60] sm:$0xff]
  %v2042 = vld [vmem:[%s2028 + $0x68] sm:$0xff]
  %v2043 = vld [vmem:[%s2028 + $0x70] sm:$0xff]
  %v2044 = vld [vmem:[%s2028 + $0x78] sm:$0xff]
  %2045 = vmatprep.subr.mxu0 0.0
  %2046 = vmatpush1.msra.mxu0 %v2044
  %2047 = vmatprep.subr.mxu0 0.0
  %2048 = vmatpush1.msra.mxu0 %v2043
  %2049 = vmatprep.subr.mxu0 0.0
  %2050 = vmatpush1.msra.mxu0 %v2042
  %2051 = vmatprep.subr.mxu0 0.0
  %2052 = vmatpush1.msra.mxu0 %v2041
  %2053 = vmatprep.subr.mxu0 0.0
  %2054 = vmatpush1.msra.mxu0 %v2040
  %2055 = vmatprep.subr.mxu0 0.0
  %2056 = vmatpush1.msra.mxu0 %v2039
  %2057 = vmatprep.subr.mxu0 0.0
  %2058 = vmatpush1.msra.mxu0 %v2038
  %2059 = vmatprep.subr.mxu0 0.0
  %2060 = vmatpush1.msra.mxu0 %v2037
  %2061 = vmatprep.subr.mxu0 0.0
  %2062 = vmatpush1.msra.mxu0 %v2036
  %2063 = vmatprep.subr.mxu0 0.0
  %2064 = vmatpush1.msra.mxu0 %v2035
  %2065 = vmatprep.subr.mxu0 0.0
  %2066 = vmatpush1.msra.mxu0 %v2034
  %2067 = vmatprep.subr.mxu0 0.0
  %2068 = vmatpush1.msra.mxu0 %v2033
  %2069 = vmatprep.subr.mxu0 0.0
  %2070 = vmatpush1.msra.mxu0 %v2032
  %2071 = vmatprep.subr.mxu0 0.0
  %2072 = vmatpush1.msra.mxu0 %v2031
  %2073 = vmatprep.subr.mxu0 0.0
  %2074 = vmatpush1.msra.mxu0 %v2030
  %2075 = vmatprep.subr.mxu0 0.0
  %2076 = vmatpush1.msra.mxu0 %v2029
  %2077 = vmatprep.subr.mxu0 0.0
  %2078 = vmatpush2.msra.mxu0 0.0
  %2079 = vmatprep.subr.mxu0 0.0
  %2080 = vmatpush2.msra.mxu0 0.0
  %2081 = vmatprep.subr.mxu0 0.0
  %2082 = vmatpush2.msra.mxu0 0.0
  %2083 = vmatprep.subr.mxu0 0.0
  %2084 = vmatpush2.msra.mxu0 0.0
  %2085 = vmatprep.subr.mxu0 0.0
  %2086 = vmatpush2.msra.mxu0 0.0
  %2087 = vmatprep.subr.mxu0 0.0
  %2088 = vmatpush2.msra.mxu0 0.0
  %2089 = vmatprep.subr.mxu0 0.0
  %2090 = vmatpush2.msra.mxu0 0.0
  %2091 = vmatprep.subr.mxu0 0.0
  %2092 = vmatpush2.msra.mxu0 0.0
  %2093 = vmatprep.subr.mxu0 0.0
  %2094 = vmatpush2.msra.mxu0 0.0
  %2095 = vmatprep.subr.mxu0 0.0
  %2096 = vmatpush2.msra.mxu0 0.0
  %2097 = vmatprep.subr.mxu0 0.0
  %2098 = vmatpush2.msra.mxu0 0.0
  %2099 = vmatprep.subr.mxu0 0.0
  %2100 = vmatpush2.msra.mxu0 0.0
  %2101 = vmatprep.subr.mxu0 0.0
  %2102 = vmatpush2.msra.mxu0 0.0
  %2103 = vmatprep.subr.mxu0 0.0
  %2104 = vmatpush2.msra.mxu0 0.0
  %2105 = vmatprep.subr.mxu0 0.0
  %2106 = vmatpush2.msra.mxu0 0.0
  %2107 = vmatprep.subr.mxu0 0.0
  %2108 = vmatpush2.msra.mxu0 0.0
  %2109 = vmatprep.mubr.f32.mxu0 0.0
  %2110 = vmatmul.mubr.f32.gmra.mxu0 %v1838
  %v2111 = vpop.f32.mrf.mxu0
  %v2112 = vadd.f32 0.0, %v2111
  %v2113 = vpop.f32.mrf.mxu0
  %2114 = vmatprep.mubr.f32.mxu0 0.0
  %2115 = vmatmul.mubr.f32.gmra.mxu0 %v1839
  %v2116 = vpop.f32.mrf.mxu0
  %v2117 = vadd.f32 0.0, %v2116
  %v2118 = vpop.f32.mrf.mxu0
  %2119 = vmatprep.mubr.f32.mxu0 0.0
  %2120 = vmatmul.mubr.f32.gmra.mxu0 %v1840
  %v2121 = vpop.f32.mrf.mxu0
  %v2122 = vadd.f32 0.0, %v2121
  %v2123 = vpop.f32.mrf.mxu0
  %2124 = vmatprep.mubr.f32.mxu0 0.0
  %2125 = vmatmul.mubr.f32.gmra.mxu0 %v1841
  %v2126 = vpop.f32.mrf.mxu0
  %v2127 = vadd.f32 0.0, %v2126
  %v2128 = vpop.f32.mrf.mxu0
  %2129 = vdwg.mxu0
  %2130 = vmatprep.subr.mxu0 0.0
  %2131 = vmatpush1.msra.mxu0 %v2027
  %2132 = vmatprep.subr.mxu0 0.0
  %2133 = vmatpush1.msra.mxu0 %v2026
  %2134 = vmatprep.subr.mxu0 0.0
  %2135 = vmatpush1.msra.mxu0 %v2025
  %2136 = vmatprep.subr.mxu0 0.0
  %2137 = vmatpush1.msra.mxu0 %v2024
  %2138 = vmatprep.subr.mxu0 0.0
  %2139 = vmatpush1.msra.mxu0 %v2023
  %2140 = vmatprep.subr.mxu0 0.0
  %2141 = vmatpush1.msra.mxu0 %v2022
  %2142 = vmatprep.subr.mxu0 0.0
  %2143 = vmatpush1.msra.mxu0 %v2021
  %2144 = vmatprep.subr.mxu0 0.0
  %2145 = vmatpush1.msra.mxu0 %v2020
  %2146 = vmatprep.subr.mxu0 0.0
  %2147 = vmatpush1.msra.mxu0 %v2019
  %2148 = vmatprep.subr.mxu0 0.0
  %2149 = vmatpush1.msra.mxu0 %v2018
  %2150 = vmatprep.subr.mxu0 0.0
  %2151 = vmatpush1.msra.mxu0 %v2017
  %2152 = vmatprep.subr.mxu0 0.0
  %2153 = vmatpush1.msra.mxu0 %v2016
  %2154 = vmatprep.subr.mxu0 0.0
  %2155 = vmatpush1.msra.mxu0 %v2015
  %2156 = vmatprep.subr.mxu0 0.0
  %2157 = vmatpush1.msra.mxu0 %v2014
  %2158 = vmatprep.subr.mxu0 0.0
  %2159 = vmatpush1.msra.mxu0 %v2013
  %2160 = vmatprep.subr.mxu0 0.0
  %2161 = vmatpush1.msra.mxu0 %v2012
  %2162 = vmatprep.subr.mxu0 0.0
  %2163 = vmatpush2.msra.mxu0 0.0
  %2164 = vmatprep.subr.mxu0 0.0
  %2165 = vmatpush2.msra.mxu0 0.0
  %2166 = vmatprep.subr.mxu0 0.0
  %2167 = vmatpush2.msra.mxu0 0.0
  %2168 = vmatprep.subr.mxu0 0.0
  %2169 = vmatpush2.msra.mxu0 0.0
  %2170 = vmatprep.subr.mxu0 0.0
  %2171 = vmatpush2.msra.mxu0 0.0
  %2172 = vmatprep.subr.mxu0 0.0
  %2173 = vmatpush2.msra.mxu0 0.0
  %2174 = vmatprep.subr.mxu0 0.0
  %2175 = vmatpush2.msra.mxu0 0.0
  %2176 = vmatprep.subr.mxu0 0.0
  %2177 = vmatpush2.msra.mxu0 0.0
  %2178 = vmatprep.subr.mxu0 0.0
  %2179 = vmatpush2.msra.mxu0 0.0
  %2180 = vmatprep.subr.mxu0 0.0
  %2181 = vmatpush2.msra.mxu0 0.0
  %2182 = vmatprep.subr.mxu0 0.0
  %2183 = vmatpush2.msra.mxu0 0.0
  %2184 = vmatprep.subr.mxu0 0.0
  %2185 = vmatpush2.msra.mxu0 0.0
  %2186 = vmatprep.subr.mxu0 0.0
  %2187 = vmatpush2.msra.mxu0 0.0
  %2188 = vmatprep.subr.mxu0 0.0
  %2189 = vmatpush2.msra.mxu0 0.0
  %2190 = vmatprep.subr.mxu0 0.0
  %2191 = vmatpush2.msra.mxu0 0.0
  %2192 = vmatprep.subr.mxu0 0.0
  %2193 = vmatpush2.msra.mxu0 0.0
  %2194 = vmatprep.mubr.f32.mxu0 0.0
  %2195 = vmatmul.mubr.f32.gmra.mxu0 %v1909
  %v2196 = vpop.f32.mrf.mxu0
  %v2197 = vadd.f32 %v2112, %v2196
  %v2198 = vpop.f32.mrf.mxu0
  %2199 = vmatprep.mubr.f32.mxu0 0.0
  %2200 = vmatmul.mubr.f32.gmra.mxu0 %v1914
  %v2201 = vpop.f32.mrf.mxu0
  %v2202 = vadd.f32 %v2117, %v2201
  %v2203 = vpop.f32.mrf.mxu0
  %2204 = vmatprep.mubr.f32.mxu0 0.0
  %2205 = vmatmul.mubr.f32.gmra.mxu0 %v1919
  %v2206 = vpop.f32.mrf.mxu0
  %v2207 = vadd.f32 %v2122, %v2206
  %v2208 = vpop.f32.mrf.mxu0
  %2209 = vmatprep.mubr.f32.mxu0 0.0
  %2210 = vmatmul.mubr.f32.gmra.mxu0 %v1924
  %v2211 = vpop.f32.mrf.mxu0
  %v2212 = vadd.f32 %v2127, %v2211
  %v2213 = vpop.f32.mrf.mxu0
  %2214 = vdwg.mxu0
  %s2215 = scalar_lea.vmem %s4, 256
  %v2216 = vld [vmem:[%s2215] sm:$0xff]
  %v2217 = vld [vmem:[%s2215 + $0x8] sm:$0xff]
  %v2218 = vld [vmem:[%s2215 + $0x10] sm:$0xff]
  %v2219 = vld [vmem:[%s2215 + $0x18] sm:$0xff]
  %v2220 = vld [vmem:[%s2215 + $0x20] sm:$0xff]
  %v2221 = vld [vmem:[%s2215 + $0x28] sm:$0xff]
  %v2222 = vld [vmem:[%s2215 + $0x30] sm:$0xff]
  %v2223 = vld [vmem:[%s2215 + $0x38] sm:$0xff]
  %v2224 = vld [vmem:[%s2215 + $0x40] sm:$0xff]
  %v2225 = vld [vmem:[%s2215 + $0x48] sm:$0xff]
  %v2226 = vld [vmem:[%s2215 + $0x50] sm:$0xff]
  %v2227 = vld [vmem:[%s2215 + $0x58] sm:$0xff]
  %v2228 = vld [vmem:[%s2215 + $0x60] sm:$0xff]
  %v2229 = vld [vmem:[%s2215 + $0x68] sm:$0xff]
  %v2230 = vld [vmem:[%s2215 + $0x70] sm:$0xff]
  %v2231 = vld [vmem:[%s2215 + $0x78] sm:$0xff]
  %2232 = vmatprep.subr.mxu0 0.0
  %2233 = vmatpush1.msra.mxu0 %v2231
  %2234 = vmatprep.subr.mxu0 0.0
  %2235 = vmatpush1.msra.mxu0 %v2230
  %2236 = vmatprep.subr.mxu0 0.0
  %2237 = vmatpush1.msra.mxu0 %v2229
  %2238 = vmatprep.subr.mxu0 0.0
  %2239 = vmatpush1.msra.mxu0 %v2228
  %2240 = vmatprep.subr.mxu0 0.0
  %2241 = vmatpush1.msra.mxu0 %v2227
  %2242 = vmatprep.subr.mxu0 0.0
  %2243 = vmatpush1.msra.mxu0 %v2226
  %2244 = vmatprep.subr.mxu0 0.0
  %2245 = vmatpush1.msra.mxu0 %v2225
  %2246 = vmatprep.subr.mxu0 0.0
  %2247 = vmatpush1.msra.mxu0 %v2224
  %2248 = vmatprep.subr.mxu0 0.0
  %2249 = vmatpush1.msra.mxu0 %v2223
  %2250 = vmatprep.subr.mxu0 0.0
  %2251 = vmatpush1.msra.mxu0 %v2222
  %2252 = vmatprep.subr.mxu0 0.0
  %2253 = vmatpush1.msra.mxu0 %v2221
  %2254 = vmatprep.subr.mxu0 0.0
  %2255 = vmatpush1.msra.mxu0 %v2220
  %2256 = vmatprep.subr.mxu0 0.0
  %2257 = vmatpush1.msra.mxu0 %v2219
  %2258 = vmatprep.subr.mxu0 0.0
  %2259 = vmatpush1.msra.mxu0 %v2218
  %2260 = vmatprep.subr.mxu0 0.0
  %2261 = vmatpush1.msra.mxu0 %v2217
  %2262 = vmatprep.subr.mxu0 0.0
  %2263 = vmatpush1.msra.mxu0 %v2216
  %2264 = vmatprep.subr.mxu0 0.0
  %2265 = vmatpush2.msra.mxu0 0.0
  %2266 = vmatprep.subr.mxu0 0.0
  %2267 = vmatpush2.msra.mxu0 0.0
  %2268 = vmatprep.subr.mxu0 0.0
  %2269 = vmatpush2.msra.mxu0 0.0
  %2270 = vmatprep.subr.mxu0 0.0
  %2271 = vmatpush2.msra.mxu0 0.0
  %2272 = vmatprep.subr.mxu0 0.0
  %2273 = vmatpush2.msra.mxu0 0.0
  %2274 = vmatprep.subr.mxu0 0.0
  %2275 = vmatpush2.msra.mxu0 0.0
  %2276 = vmatprep.subr.mxu0 0.0
  %2277 = vmatpush2.msra.mxu0 0.0
  %2278 = vmatprep.subr.mxu0 0.0
  %2279 = vmatpush2.msra.mxu0 0.0
  %2280 = vmatprep.subr.mxu0 0.0
  %2281 = vmatpush2.msra.mxu0 0.0
  %2282 = vmatprep.subr.mxu0 0.0
  %2283 = vmatpush2.msra.mxu0 0.0
  %2284 = vmatprep.subr.mxu0 0.0
  %2285 = vmatpush2.msra.mxu0 0.0
  %2286 = vmatprep.subr.mxu0 0.0
  %2287 = vmatpush2.msra.mxu0 0.0
  %2288 = vmatprep.subr.mxu0 0.0
  %2289 = vmatpush2.msra.mxu0 0.0
  %2290 = vmatprep.subr.mxu0 0.0
  %2291 = vmatpush2.msra.mxu0 0.0
  %2292 = vmatprep.subr.mxu0 0.0
  %2293 = vmatpush2.msra.mxu0 0.0
  %2294 = vmatprep.subr.mxu0 0.0
  %2295 = vmatpush2.msra.mxu0 0.0
  %2296 = vmatprep.mubr.f32.mxu0 0.0
  %2297 = vmatmul.mubr.f32.gmra.mxu0 %v1994
  %v2298 = vpop.f32.mrf.mxu0
  %v2299 = vadd.f32 0.0, %v2298
  %v2300 = vpop.f32.mrf.mxu0
  %2301 = vmatprep.mubr.f32.mxu0 0.0
  %2302 = vmatmul.mubr.f32.gmra.mxu0 %v1999
  %v2303 = vpop.f32.mrf.mxu0
  %v2304 = vadd.f32 0.0, %v2303
  %v2305 = vpop.f32.mrf.mxu0
  %2306 = vmatprep.mubr.f32.mxu0 0.0
  %2307 = vmatmul.mubr.f32.gmra.mxu0 %v2004
  %v2308 = vpop.f32.mrf.mxu0
  %v2309 = vadd.f32 0.0, %v2308
  %v2310 = vpop.f32.mrf.mxu0
  %2311 = vmatprep.mubr.f32.mxu0 0.0
  %2312 = vmatmul.mubr.f32.gmra.mxu0 %v2009
  %v2313 = vpop.f32.mrf.mxu0
  %v2314 = vadd.f32 0.0, %v2313
  %v2315 = vpop.f32.mrf.mxu0
  %2316 = vdwg.mxu0
  %v2317 = vadd.f32 %v2197, %v2299
  %v2318 = vadd.f32 %v2202, %v2304
  %v2319 = vadd.f32 %v2207, %v2309
  %v2320 = vadd.f32 %v2212, %v2314
  %v2321 = vld [vmem:[%s10 + $0x2] sm:$0x1]
  %2322 = vmatprep.subr.mxu0 0.0
  %2323 = vmatpush1.msra.mxu0 %v158
  %2324 = vmatprep.subr.mxu0 0.0
  %2325 = vmatpush1.msra.mxu0 %v157
  %2326 = vmatprep.subr.mxu0 0.0
  %2327 = vmatpush1.msra.mxu0 %v156
  %2328 = vmatprep.subr.mxu0 0.0
  %2329 = vmatpush1.msra.mxu0 %v155
  %2330 = vmatprep.subr.mxu0 0.0
  %2331 = vmatpush1.msra.mxu0 %v154
  %2332 = vmatprep.subr.mxu0 0.0
  %2333 = vmatpush1.msra.mxu0 %v153
  %2334 = vmatprep.subr.mxu0 0.0
  %2335 = vmatpush1.msra.mxu0 %v152
  %2336 = vmatprep.subr.mxu0 0.0
  %2337 = vmatpush1.msra.mxu0 %v151
  %2338 = vmatprep.subr.mxu0 0.0
  %2339 = vmatpush1.msra.mxu0 %v150
  %2340 = vmatprep.subr.mxu0 0.0
  %2341 = vmatpush1.msra.mxu0 %v149
  %2342 = vmatprep.subr.mxu0 0.0
  %2343 = vmatpush1.msra.mxu0 %v148
  %2344 = vmatprep.subr.mxu0 0.0
  %2345 = vmatpush1.msra.mxu0 %v147
  %2346 = vmatprep.subr.mxu0 0.0
  %2347 = vmatpush1.msra.mxu0 %v146
  %2348 = vmatprep.subr.mxu0 0.0
  %2349 = vmatpush1.msra.mxu0 %v145
  %2350 = vmatprep.subr.mxu0 0.0
  %2351 = vmatpush1.msra.mxu0 %v144
  %2352 = vmatprep.subr.mxu0 0.0
  %2353 = vmatpush1.msra.mxu0 %v143
  %2354 = vmatprep.subr.mxu0 0.0
  %2355 = vmatpush2.msra.mxu0 0.0
  %2356 = vmatprep.subr.mxu0 0.0
  %2357 = vmatpush2.msra.mxu0 0.0
  %2358 = vmatprep.subr.mxu0 0.0
  %2359 = vmatpush2.msra.mxu0 0.0
  %2360 = vmatprep.subr.mxu0 0.0
  %2361 = vmatpush2.msra.mxu0 0.0
  %2362 = vmatprep.subr.mxu0 0.0
  %2363 = vmatpush2.msra.mxu0 0.0
  %2364 = vmatprep.subr.mxu0 0.0
  %2365 = vmatpush2.msra.mxu0 0.0
  %2366 = vmatprep.subr.mxu0 0.0
  %2367 = vmatpush2.msra.mxu0 0.0
  %2368 = vmatprep.subr.mxu0 0.0
  %2369 = vmatpush2.msra.mxu0 0.0
  %2370 = vmatprep.subr.mxu0 0.0
  %2371 = vmatpush2.msra.mxu0 0.0
  %2372 = vmatprep.subr.mxu0 0.0
  %2373 = vmatpush2.msra.mxu0 0.0
  %2374 = vmatprep.subr.mxu0 0.0
  %2375 = vmatpush2.msra.mxu0 0.0
  %2376 = vmatprep.subr.mxu0 0.0
  %2377 = vmatpush2.msra.mxu0 0.0
  %2378 = vmatprep.subr.mxu0 0.0
  %2379 = vmatpush2.msra.mxu0 0.0
  %2380 = vmatprep.subr.mxu0 0.0
  %2381 = vmatpush2.msra.mxu0 0.0
  %2382 = vmatprep.subr.mxu0 0.0
  %2383 = vmatpush2.msra.mxu0 0.0
  %2384 = vmatprep.subr.mxu0 0.0
  %2385 = vmatpush2.msra.mxu0 0.0
  %2386 = vmatprep.mubr.f32.mxu0 0.0
  %2387 = vmatmul.mubr.f32.gmra.mxu0 %v2317
  %v2388 = vpop.f32.mrf.mxu0
  %v2389 = vadd.f32 0.0, %v2388
  %v2390 = vpop.f32.mrf.mxu0
  %2391 = vmatprep.mubr.f32.mxu0 0.0
  %2392 = vmatmul.mubr.f32.gmra.mxu0 %v2318
  %v2393 = vpop.f32.mrf.mxu0
  %v2394 = vadd.f32 0.0, %v2393
  %v2395 = vpop.f32.mrf.mxu0
  %2396 = vmatprep.mubr.f32.mxu0 0.0
  %2397 = vmatmul.mubr.f32.gmra.mxu0 %v2319
  %v2398 = vpop.f32.mrf.mxu0
  %v2399 = vadd.f32 0.0, %v2398
  %v2400 = vpop.f32.mrf.mxu0
  %2401 = vmatprep.mubr.f32.mxu0 0.0
  %2402 = vmatmul.mubr.f32.gmra.mxu0 %v2320
  %v2403 = vpop.f32.mrf.mxu0
  %v2404 = vadd.f32 0.0, %v2403
  %v2405 = vpop.f32.mrf.mxu0
  %2406 = vdwg.mxu0
  %v2407 = vmul.f32 %v2317, %v2317
  %v2408 = vmul.f32 %v2318, %v2318
  %v2409 = vmul.f32 %v2319, %v2319
  %v2410 = vmul.f32 %v2320, %v2320
  %2411 = vmatprep.subr.mxu0 0.0
  %2412 = vmatpush1.msra.mxu0 %v158
  %2413 = vmatprep.subr.mxu0 0.0
  %2414 = vmatpush1.msra.mxu0 %v157
  %2415 = vmatprep.subr.mxu0 0.0
  %2416 = vmatpush1.msra.mxu0 %v156
  %2417 = vmatprep.subr.mxu0 0.0
  %2418 = vmatpush1.msra.mxu0 %v155
  %2419 = vmatprep.subr.mxu0 0.0
  %2420 = vmatpush1.msra.mxu0 %v154
  %2421 = vmatprep.subr.mxu0 0.0
  %2422 = vmatpush1.msra.mxu0 %v153
  %2423 = vmatprep.subr.mxu0 0.0
  %2424 = vmatpush1.msra.mxu0 %v152
  %2425 = vmatprep.subr.mxu0 0.0
  %2426 = vmatpush1.msra.mxu0 %v151
  %2427 = vmatprep.subr.mxu0 0.0
  %2428 = vmatpush1.msra.mxu0 %v150
  %2429 = vmatprep.subr.mxu0 0.0
  %2430 = vmatpush1.msra.mxu0 %v149
  %2431 = vmatprep.subr.mxu0 0.0
  %2432 = vmatpush1.msra.mxu0 %v148
  %2433 = vmatprep.subr.mxu0 0.0
  %2434 = vmatpush1.msra.mxu0 %v147
  %2435 = vmatprep.subr.mxu0 0.0
  %2436 = vmatpush1.msra.mxu0 %v146
  %2437 = vmatprep.subr.mxu0 0.0
  %2438 = vmatpush1.msra.mxu0 %v145
  %2439 = vmatprep.subr.mxu0 0.0
  %2440 = vmatpush1.msra.mxu0 %v144
  %2441 = vmatprep.subr.mxu0 0.0
  %2442 = vmatpush1.msra.mxu0 %v143
  %2443 = vmatprep.subr.mxu0 0.0
  %2444 = vmatpush2.msra.mxu0 0.0
  %2445 = vmatprep.subr.mxu0 0.0
  %2446 = vmatpush2.msra.mxu0 0.0
  %2447 = vmatprep.subr.mxu0 0.0
  %2448 = vmatpush2.msra.mxu0 0.0
  %2449 = vmatprep.subr.mxu0 0.0
  %2450 = vmatpush2.msra.mxu0 0.0
  %2451 = vmatprep.subr.mxu0 0.0
  %2452 = vmatpush2.msra.mxu0 0.0
  %2453 = vmatprep.subr.mxu0 0.0
  %2454 = vmatpush2.msra.mxu0 0.0
  %2455 = vmatprep.subr.mxu0 0.0
  %2456 = vmatpush2.msra.mxu0 0.0
  %2457 = vmatprep.subr.mxu0 0.0
  %2458 = vmatpush2.msra.mxu0 0.0
  %2459 = vmatprep.subr.mxu0 0.0
  %2460 = vmatpush2.msra.mxu0 0.0
  %2461 = vmatprep.subr.mxu0 0.0
  %2462 = vmatpush2.msra.mxu0 0.0
  %2463 = vmatprep.subr.mxu0 0.0
  %2464 = vmatpush2.msra.mxu0 0.0
  %2465 = vmatprep.subr.mxu0 0.0
  %2466 = vmatpush2.msra.mxu0 0.0
  %2467 = vmatprep.subr.mxu0 0.0
  %2468 = vmatpush2.msra.mxu0 0.0
  %2469 = vmatprep.subr.mxu0 0.0
  %2470 = vmatpush2.msra.mxu0 0.0
  %2471 = vmatprep.subr.mxu0 0.0
  %2472 = vmatpush2.msra.mxu0 0.0
  %2473 = vmatprep.subr.mxu0 0.0
  %2474 = vmatpush2.msra.mxu0 0.0
  %2475 = vmatprep.mubr.f32.mxu0 0.0
  %2476 = vmatmul.mubr.f32.gmra.mxu0 %v2407
  %v2477 = vpop.f32.mrf.mxu0
  %v2478 = vadd.f32 0.0, %v2477
  %v2479 = vpop.f32.mrf.mxu0
  %2480 = vmatprep.mubr.f32.mxu0 0.0
  %2481 = vmatmul.mubr.f32.gmra.mxu0 %v2408
  %v2482 = vpop.f32.mrf.mxu0
  %v2483 = vadd.f32 0.0, %v2482
  %v2484 = vpop.f32.mrf.mxu0
  %2485 = vmatprep.mubr.f32.mxu0 0.0
  %2486 = vmatmul.mubr.f32.gmra.mxu0 %v2409
  %v2487 = vpop.f32.mrf.mxu0
  %v2488 = vadd.f32 0.0, %v2487
  %v2489 = vpop.f32.mrf.mxu0
  %2490 = vmatprep.mubr.f32.mxu0 0.0
  %2491 = vmatmul.mubr.f32.gmra.mxu0 %v2410
  %v2492 = vpop.f32.mrf.mxu0
  %v2493 = vadd.f32 0.0, %v2492
  %v2494 = vpop.f32.mrf.mxu0
  %2495 = vdwg.mxu0
  %v2496 = vadd.f32 %v2389, %v2394
  %v2497 = vadd.f32 %v2496, %v2399
  %v2498 = vadd.f32 %v2497, %v2404
  %v2499 = vrot.slane %v2498, 4
  %v2500 = vadd.f32 %v2498, %v2499
  %v2501 = vrot.slane %v2500, 2
  %v2502 = vadd.f32 %v2500, %v2501
  %v2503 = vrot.slane %v2502, 1
  %v2504 = vadd.f32 %v2502, %v2503
  %v2505 = vmul.f32 %v2504, 0.001953125
  %v2506 = vadd.f32 %v2478, %v2483
  %v2507 = vadd.f32 %v2506, %v2488
  %v2508 = vadd.f32 %v2507, %v2493
  %v2509 = vrot.slane %v2508, 4
  %v2510 = vadd.f32 %v2508, %v2509
  %v2511 = vrot.slane %v2510, 2
  %v2512 = vadd.f32 %v2510, %v2511
  %v2513 = vrot.slane %v2512, 1
  %v2514 = vadd.f32 %v2512, %v2513
  %v2515 = vmul.f32 %v2514, 0.001953125
  %v2516 = vmul.f32 %v2505, %v2505
  %v2517 = vsub.f32 %v2515, %v2516
  %v2518 = vmax.f32 %v2517, 0.0
  %s2519 = scalar_lea.vmem %s9, 6
  %v2520 = vld [vmem:[%s2519] sm:$0x1]
  %v2521 = vadd.f32 %v2518, 1e-05
  %v2522 = vrsqrt.pop %v2521
  %v2523 = vmul.f32 %v2520, %v2522
  %v2524 = vld [vmem:[%s2519 + $0x1] sm:$0x1]
  %v2525 = vmul.f32 %v2505, %v2523
  %v2526 = vsub.f32 %v2524, %v2525
  %v2527 = vlaneseq
  %v2528 = vshrl.u32 %v2527, 7
  %v2529 = vsub.s32 0, %v2528
  %v2530 = vrot.slane %v2523, %v2529
  %v2531 = vmul.f32 %v2317, %v2530
  %v2532 = vmul.f32 %v2318, %v2530
  %v2533 = vmul.f32 %v2319, %v2530
  %v2534 = vmul.f32 %v2320, %v2530
  %v2535 = vlaneseq
  %v2536 = vshrl.u32 %v2535, 7
  %v2537 = vsub.s32 0, %v2536
  %v2538 = vrot.slane %v2526, %v2537
  %v2539 = vadd.f32 %v2531, %v2538
  %v2540 = vadd.f32 %v2532, %v2538
  %v2541 = vadd.f32 %v2533, %v2538
  %v2542 = vadd.f32 %v2534, %v2538
  %v2543 = vmax.f32 %v2539, 0.0
  %v2544 = vmax.f32 %v2540, 0.0
  %v2545 = vmax.f32 %v2541, 0.0
  %v2546 = vmax.f32 %v2542, 0.0
  %v2547 = vlaneseq
  %v2548 = vshrl.u32 %v2547, 7
  %v2549 = vsub.s32 0, %v2548
  %v2550 = vrot.slane %v2321, %v2549
  %v2551 = vmul.f32 %v2543, %v2550
  %v2552 = vmul.f32 %v2544, %v2550
  %v2553 = vmul.f32 %v2545, %v2550
  %v2554 = vmul.f32 %v2546, %v2550
  %2555 = vmatprep.subr.mxu0 0.0
  %2556 = vmatpush1.msra.mxu0 0.0
  %2557 = vmatprep.subr.mxu0 0.0
  %2558 = vmatpush1.msra.mxu0 0.0
  %2559 = vmatprep.subr.mxu0 0.0
  %2560 = vmatpush1.msra.mxu0 0.0
  %2561 = vmatprep.subr.mxu0 0.0
  %2562 = vmatpush1.msra.mxu0 0.0
  %2563 = vmatprep.subr.mxu0 0.0
  %2564 = vmatpush1.msra.mxu0 0.0
  %2565 = vmatprep.subr.mxu0 0.0
  %2566 = vmatpush1.msra.mxu0 0.0
  %2567 = vmatprep.subr.mxu0 0.0
  %2568 = vmatpush1.msra.mxu0 0.0
  %2569 = vmatprep.subr.mxu0 0.0
  %2570 = vmatpush1.msra.mxu0 0.0
  %2571 = vmatprep.subr.mxu0 0.0
  %2572 = vmatpush1.msra.mxu0 0.0
  %2573 = vmatprep.subr.mxu0 0.0
  %2574 = vmatpush1.msra.mxu0 0.0
  %2575 = vmatprep.subr.mxu0 0.0
  %2576 = vmatpush1.msra.mxu0 0.0
  %2577 = vmatprep.subr.mxu0 0.0
  %2578 = vmatpush1.msra.mxu0 0.0
  %2579 = vmatprep.subr.mxu0 0.0
  %2580 = vmatpush1.msra.mxu0 %v2554
  %2581 = vmatprep.subr.mxu0 0.0
  %2582 = vmatpush1.msra.mxu0 %v2553
  %2583 = vmatprep.subr.mxu0 0.0
  %2584 = vmatpush1.msra.mxu0 %v2552
  %2585 = vmatprep.subr.mxu0 0.0
  %2586 = vmatpush1.msra.mxu0 %v2551
  %2587 = vmatprep.subr.mxu0 0.0
  %2588 = vmatpush2.msra.mxu0 0.0
  %2589 = vmatprep.subr.mxu0 0.0
  %2590 = vmatpush2.msra.mxu0 0.0
  %2591 = vmatprep.subr.mxu0 0.0
  %2592 = vmatpush2.msra.mxu0 0.0
  %2593 = vmatprep.subr.mxu0 0.0
  %2594 = vmatpush2.msra.mxu0 0.0
  %2595 = vmatprep.subr.mxu0 0.0
  %2596 = vmatpush2.msra.mxu0 0.0
  %2597 = vmatprep.subr.mxu0 0.0
  %2598 = vmatpush2.msra.mxu0 0.0
  %2599 = vmatprep.subr.mxu0 0.0
  %2600 = vmatpush2.msra.mxu0 0.0
  %2601 = vmatprep.subr.mxu0 0.0
  %2602 = vmatpush2.msra.mxu0 0.0
  %2603 = vmatprep.subr.mxu0 0.0
  %2604 = vmatpush2.msra.mxu0 0.0
  %2605 = vmatprep.subr.mxu0 0.0
  %2606 = vmatpush2.msra.mxu0 0.0
  %2607 = vmatprep.subr.mxu0 0.0
  %2608 = vmatpush2.msra.mxu0 0.0
  %2609 = vmatprep.subr.mxu0 0.0
  %2610 = vmatpush2.msra.mxu0 0.0
  %2611 = vmatprep.subr.mxu0 0.0
  %2612 = vmatpush2.msra.mxu0 0.0
  %2613 = vmatprep.subr.mxu0 0.0
  %2614 = vmatpush2.msra.mxu0 0.0
  %2615 = vmatprep.subr.mxu0 0.0
  %2616 = vmatpush2.msra.mxu0 0.0
  %2617 = vmatprep.subr.mxu0 0.0
  %2618 = vmatpush2.msra.mxu0 0.0
  %2619 = vmatprep.mubr.f32.mxu0 0.0
  %2620 = vmatmul.mubr.f32.gmra.mxu0 %v385
  %v2621 = vpop.f32.mrf.mxu0
  %v2622 = vadd.f32 0.0, %v2621
  %v2623 = vpop.f32.mrf.mxu0
  %2624 = vmatprep.mubr.f32.mxu0 0.0
  %2625 = vmatmul.mubr.f32.gmra.mxu0 %v388
  %v2626 = vpop.f32.mrf.mxu0
  %v2627 = vadd.f32 0.0, %v2626
  %v2628 = vpop.f32.mrf.mxu0
  %2629 = vmatprep.mubr.f32.mxu0 0.0
  %2630 = vmatmul.mubr.f32.gmra.mxu0 %v391
  %v2631 = vpop.f32.mrf.mxu0
  %v2632 = vadd.f32 0.0, %v2631
  %v2633 = vpop.f32.mrf.mxu0
  %2634 = vmatprep.mubr.f32.mxu0 0.0
  %2635 = vmatmul.mubr.f32.gmra.mxu0 %v394
  %v2636 = vpop.f32.mrf.mxu0
  %v2637 = vadd.f32 0.0, %v2636
  %v2638 = vpop.f32.mrf.mxu0
  %2639 = vdwg.mxu0
  %2640 = vmatprep.subr.mxu0 0.0
  %2641 = vmatpush1.msra.mxu0 0.0
  %2642 = vmatprep.subr.mxu0 0.0
  %2643 = vmatpush1.msra.mxu0 0.0
  %2644 = vmatprep.subr.mxu0 0.0
  %2645 = vmatpush1.msra.mxu0 0.0
  %2646 = vmatprep.subr.mxu0 0.0
  %2647 = vmatpush1.msra.mxu0 0.0
  %2648 = vmatprep.subr.mxu0 0.0
  %2649 = vmatpush1.msra.mxu0 0.0
  %2650 = vmatprep.subr.mxu0 0.0
  %2651 = vmatpush1.msra.mxu0 0.0
  %2652 = vmatprep.subr.mxu0 0.0
  %2653 = vmatpush1.msra.mxu0 0.0
  %2654 = vmatprep.subr.mxu0 0.0
  %2655 = vmatpush1.msra.mxu0 0.0
  %2656 = vmatprep.subr.mxu0 0.0
  %2657 = vmatpush1.msra.mxu0 0.0
  %2658 = vmatprep.subr.mxu0 0.0
  %2659 = vmatpush1.msra.mxu0 0.0
  %2660 = vmatprep.subr.mxu0 0.0
  %2661 = vmatpush1.msra.mxu0 0.0
  %2662 = vmatprep.subr.mxu0 0.0
  %2663 = vmatpush1.msra.mxu0 0.0
  %2664 = vmatprep.subr.mxu0 0.0
  %2665 = vmatpush1.msra.mxu0 %v2554
  %2666 = vmatprep.subr.mxu0 0.0
  %2667 = vmatpush1.msra.mxu0 %v2553
  %2668 = vmatprep.subr.mxu0 0.0
  %2669 = vmatpush1.msra.mxu0 %v2552
  %2670 = vmatprep.subr.mxu0 0.0
  %2671 = vmatpush1.msra.mxu0 %v2551
  %2672 = vmatprep.subr.mxu0 0.0
  %2673 = vmatpush2.msra.mxu0 0.0
  %2674 = vmatprep.subr.mxu0 0.0
  %2675 = vmatpush2.msra.mxu0 0.0
  %2676 = vmatprep.subr.mxu0 0.0
  %2677 = vmatpush2.msra.mxu0 0.0
  %2678 = vmatprep.subr.mxu0 0.0
  %2679 = vmatpush2.msra.mxu0 0.0
  %2680 = vmatprep.subr.mxu0 0.0
  %2681 = vmatpush2.msra.mxu0 0.0
  %2682 = vmatprep.subr.mxu0 0.0
  %2683 = vmatpush2.msra.mxu0 0.0
  %2684 = vmatprep.subr.mxu0 0.0
  %2685 = vmatpush2.msra.mxu0 0.0
  %2686 = vmatprep.subr.mxu0 0.0
  %2687 = vmatpush2.msra.mxu0 0.0
  %2688 = vmatprep.subr.mxu0 0.0
  %2689 = vmatpush2.msra.mxu0 0.0
  %2690 = vmatprep.subr.mxu0 0.0
  %2691 = vmatpush2.msra.mxu0 0.0
  %2692 = vmatprep.subr.mxu0 0.0
  %2693 = vmatpush2.msra.mxu0 0.0
  %2694 = vmatprep.subr.mxu0 0.0
  %2695 = vmatpush2.msra.mxu0 0.0
  %2696 = vmatprep.subr.mxu0 0.0
  %2697 = vmatpush2.msra.mxu0 0.0
  %2698 = vmatprep.subr.mxu0 0.0
  %2699 = vmatpush2.msra.mxu0 0.0
  %2700 = vmatprep.subr.mxu0 0.0
  %2701 = vmatpush2.msra.mxu0 0.0
  %2702 = vmatprep.subr.mxu0 0.0
  %2703 = vmatpush2.msra.mxu0 0.0
  %2704 = vmatprep.mubr.f32.mxu0 0.0
  %2705 = vmatmul.mubr.f32.gmra.mxu0 %v486
  %v2706 = vpop.f32.mrf.mxu0
  %v2707 = vadd.f32 0.0, %v2706
  %v2708 = vpop.f32.mrf.mxu0
  %2709 = vmatprep.mubr.f32.mxu0 0.0
  %2710 = vmatmul.mubr.f32.gmra.mxu0 %v489
  %v2711 = vpop.f32.mrf.mxu0
  %v2712 = vadd.f32 0.0, %v2711
  %v2713 = vpop.f32.mrf.mxu0
  %2714 = vmatprep.mubr.f32.mxu0 0.0
  %2715 = vmatmul.mubr.f32.gmra.mxu0 %v492
  %v2716 = vpop.f32.mrf.mxu0
  %v2717 = vadd.f32 0.0, %v2716
  %v2718 = vpop.f32.mrf.mxu0
  %2719 = vmatprep.mubr.f32.mxu0 0.0
  %2720 = vmatmul.mubr.f32.gmra.mxu0 %v495
  %v2721 = vpop.f32.mrf.mxu0
  %v2722 = vadd.f32 0.0, %v2721
  %v2723 = vpop.f32.mrf.mxu0
  %2724 = vdwg.mxu0
  %v2725 = vld [vmem:[%s5] sm:$0xff]
  %v2726 = vld [vmem:[%s5 + $0x8] sm:$0xff]
  %v2727 = vld [vmem:[%s5 + $0x10] sm:$0xff]
  %v2728 = vld [vmem:[%s5 + $0x18] sm:$0xff]
  %v2729 = vld [vmem:[%s5 + $0x20] sm:$0xff]
  %v2730 = vld [vmem:[%s5 + $0x28] sm:$0xff]
  %v2731 = vld [vmem:[%s5 + $0x30] sm:$0xff]
  %v2732 = vld [vmem:[%s5 + $0x38] sm:$0xff]
  %v2733 = vld [vmem:[%s5 + $0x40] sm:$0xff]
  %v2734 = vld [vmem:[%s5 + $0x48] sm:$0xff]
  %v2735 = vld [vmem:[%s5 + $0x50] sm:$0xff]
  %v2736 = vld [vmem:[%s5 + $0x58] sm:$0xff]
  %v2737 = vld [vmem:[%s5 + $0x60] sm:$0xff]
  %v2738 = vld [vmem:[%s5 + $0x68] sm:$0xff]
  %v2739 = vld [vmem:[%s5 + $0x70] sm:$0xff]
  %v2740 = vld [vmem:[%s5 + $0x78] sm:$0xff]
  %s2741 = scalar_lea.vmem %s5, 128
  %v2742 = vld [vmem:[%s2741] sm:$0xff]
  %v2743 = vld [vmem:[%s2741 + $0x8] sm:$0xff]
  %v2744 = vld [vmem:[%s2741 + $0x10] sm:$0xff]
  %v2745 = vld [vmem:[%s2741 + $0x18] sm:$0xff]
  %v2746 = vld [vmem:[%s2741 + $0x20] sm:$0xff]
  %v2747 = vld [vmem:[%s2741 + $0x28] sm:$0xff]
  %v2748 = vld [vmem:[%s2741 + $0x30] sm:$0xff]
  %v2749 = vld [vmem:[%s2741 + $0x38] sm:$0xff]
  %v2750 = vld [vmem:[%s2741 + $0x40] sm:$0xff]
  %v2751 = vld [vmem:[%s2741 + $0x48] sm:$0xff]
  %v2752 = vld [vmem:[%s2741 + $0x50] sm:$0xff]
  %v2753 = vld [vmem:[%s2741 + $0x58] sm:$0xff]
  %v2754 = vld [vmem:[%s2741 + $0x60] sm:$0xff]
  %v2755 = vld [vmem:[%s2741 + $0x68] sm:$0xff]
  %v2756 = vld [vmem:[%s2741 + $0x70] sm:$0xff]
  %v2757 = vld [vmem:[%s2741 + $0x78] sm:$0xff]
  %2758 = vmatprep.subr.mxu0 0.0
  %2759 = vmatpush1.msra.mxu0 %v2757
  %2760 = vmatprep.subr.mxu0 0.0
  %2761 = vmatpush1.msra.mxu0 %v2756
  %2762 = vmatprep.subr.mxu0 0.0
  %2763 = vmatpush1.msra.mxu0 %v2755
  %2764 = vmatprep.subr.mxu0 0.0
  %2765 = vmatpush1.msra.mxu0 %v2754
  %2766 = vmatprep.subr.mxu0 0.0
  %2767 = vmatpush1.msra.mxu0 %v2753
  %2768 = vmatprep.subr.mxu0 0.0
  %2769 = vmatpush1.msra.mxu0 %v2752
  %2770 = vmatprep.subr.mxu0 0.0
  %2771 = vmatpush1.msra.mxu0 %v2751
  %2772 = vmatprep.subr.mxu0 0.0
  %2773 = vmatpush1.msra.mxu0 %v2750
  %2774 = vmatprep.subr.mxu0 0.0
  %2775 = vmatpush1.msra.mxu0 %v2749
  %2776 = vmatprep.subr.mxu0 0.0
  %2777 = vmatpush1.msra.mxu0 %v2748
  %2778 = vmatprep.subr.mxu0 0.0
  %2779 = vmatpush1.msra.mxu0 %v2747
  %2780 = vmatprep.subr.mxu0 0.0
  %2781 = vmatpush1.msra.mxu0 %v2746
  %2782 = vmatprep.subr.mxu0 0.0
  %2783 = vmatpush1.msra.mxu0 %v2745
  %2784 = vmatprep.subr.mxu0 0.0
  %2785 = vmatpush1.msra.mxu0 %v2744
  %2786 = vmatprep.subr.mxu0 0.0
  %2787 = vmatpush1.msra.mxu0 %v2743
  %2788 = vmatprep.subr.mxu0 0.0
  %2789 = vmatpush1.msra.mxu0 %v2742
  %2790 = vmatprep.subr.mxu0 0.0
  %2791 = vmatpush2.msra.mxu0 0.0
  %2792 = vmatprep.subr.mxu0 0.0
  %2793 = vmatpush2.msra.mxu0 0.0
  %2794 = vmatprep.subr.mxu0 0.0
  %2795 = vmatpush2.msra.mxu0 0.0
  %2796 = vmatprep.subr.mxu0 0.0
  %2797 = vmatpush2.msra.mxu0 0.0
  %2798 = vmatprep.subr.mxu0 0.0
  %2799 = vmatpush2.msra.mxu0 0.0
  %2800 = vmatprep.subr.mxu0 0.0
  %2801 = vmatpush2.msra.mxu0 0.0
  %2802 = vmatprep.subr.mxu0 0.0
  %2803 = vmatpush2.msra.mxu0 0.0
  %2804 = vmatprep.subr.mxu0 0.0
  %2805 = vmatpush2.msra.mxu0 0.0
  %2806 = vmatprep.subr.mxu0 0.0
  %2807 = vmatpush2.msra.mxu0 0.0
  %2808 = vmatprep.subr.mxu0 0.0
  %2809 = vmatpush2.msra.mxu0 0.0
  %2810 = vmatprep.subr.mxu0 0.0
  %2811 = vmatpush2.msra.mxu0 0.0
  %2812 = vmatprep.subr.mxu0 0.0
  %2813 = vmatpush2.msra.mxu0 0.0
  %2814 = vmatprep.subr.mxu0 0.0
  %2815 = vmatpush2.msra.mxu0 0.0
  %2816 = vmatprep.subr.mxu0 0.0
  %2817 = vmatpush2.msra.mxu0 0.0
  %2818 = vmatprep.subr.mxu0 0.0
  %2819 = vmatpush2.msra.mxu0 0.0
  %2820 = vmatprep.subr.mxu0 0.0
  %2821 = vmatpush2.msra.mxu0 0.0
  %2822 = vmatprep.mubr.f32.mxu0 0.0
  %2823 = vmatmul.mubr.f32.gmra.mxu0 %v2551
  %v2824 = vpop.f32.mrf.mxu0
  %v2825 = vadd.f32 0.0, %v2824
  %v2826 = vpop.f32.mrf.mxu0
  %2827 = vmatprep.mubr.f32.mxu0 0.0
  %2828 = vmatmul.mubr.f32.gmra.mxu0 %v2552
  %v2829 = vpop.f32.mrf.mxu0
  %v2830 = vadd.f32 0.0, %v2829
  %v2831 = vpop.f32.mrf.mxu0
  %2832 = vmatprep.mubr.f32.mxu0 0.0
  %2833 = vmatmul.mubr.f32.gmra.mxu0 %v2553
  %v2834 = vpop.f32.mrf.mxu0
  %v2835 = vadd.f32 0.0, %v2834
  %v2836 = vpop.f32.mrf.mxu0
  %2837 = vmatprep.mubr.f32.mxu0 0.0
  %2838 = vmatmul.mubr.f32.gmra.mxu0 %v2554
  %v2839 = vpop.f32.mrf.mxu0
  %v2840 = vadd.f32 0.0, %v2839
  %v2841 = vpop.f32.mrf.mxu0
  %2842 = vdwg.mxu0
  %2843 = vmatprep.subr.mxu0 0.0
  %2844 = vmatpush1.msra.mxu0 %v2740
  %2845 = vmatprep.subr.mxu0 0.0
  %2846 = vmatpush1.msra.mxu0 %v2739
  %2847 = vmatprep.subr.mxu0 0.0
  %2848 = vmatpush1.msra.mxu0 %v2738
  %2849 = vmatprep.subr.mxu0 0.0
  %2850 = vmatpush1.msra.mxu0 %v2737
  %2851 = vmatprep.subr.mxu0 0.0
  %2852 = vmatpush1.msra.mxu0 %v2736
  %2853 = vmatprep.subr.mxu0 0.0
  %2854 = vmatpush1.msra.mxu0 %v2735
  %2855 = vmatprep.subr.mxu0 0.0
  %2856 = vmatpush1.msra.mxu0 %v2734
  %2857 = vmatprep.subr.mxu0 0.0
  %2858 = vmatpush1.msra.mxu0 %v2733
  %2859 = vmatprep.subr.mxu0 0.0
  %2860 = vmatpush1.msra.mxu0 %v2732
  %2861 = vmatprep.subr.mxu0 0.0
  %2862 = vmatpush1.msra.mxu0 %v2731
  %2863 = vmatprep.subr.mxu0 0.0
  %2864 = vmatpush1.msra.mxu0 %v2730
  %2865 = vmatprep.subr.mxu0 0.0
  %2866 = vmatpush1.msra.mxu0 %v2729
  %2867 = vmatprep.subr.mxu0 0.0
  %2868 = vmatpush1.msra.mxu0 %v2728
  %2869 = vmatprep.subr.mxu0 0.0
  %2870 = vmatpush1.msra.mxu0 %v2727
  %2871 = vmatprep.subr.mxu0 0.0
  %2872 = vmatpush1.msra.mxu0 %v2726
  %2873 = vmatprep.subr.mxu0 0.0
  %2874 = vmatpush1.msra.mxu0 %v2725
  %2875 = vmatprep.subr.mxu0 0.0
  %2876 = vmatpush2.msra.mxu0 0.0
  %2877 = vmatprep.subr.mxu0 0.0
  %2878 = vmatpush2.msra.mxu0 0.0
  %2879 = vmatprep.subr.mxu0 0.0
  %2880 = vmatpush2.msra.mxu0 0.0
  %2881 = vmatprep.subr.mxu0 0.0
  %2882 = vmatpush2.msra.mxu0 0.0
  %2883 = vmatprep.subr.mxu0 0.0
  %2884 = vmatpush2.msra.mxu0 0.0
  %2885 = vmatprep.subr.mxu0 0.0
  %2886 = vmatpush2.msra.mxu0 0.0
  %2887 = vmatprep.subr.mxu0 0.0
  %2888 = vmatpush2.msra.mxu0 0.0
  %2889 = vmatprep.subr.mxu0 0.0
  %2890 = vmatpush2.msra.mxu0 0.0
  %2891 = vmatprep.subr.mxu0 0.0
  %2892 = vmatpush2.msra.mxu0 0.0
  %2893 = vmatprep.subr.mxu0 0.0
  %2894 = vmatpush2.msra.mxu0 0.0
  %2895 = vmatprep.subr.mxu0 0.0
  %2896 = vmatpush2.msra.mxu0 0.0
  %2897 = vmatprep.subr.mxu0 0.0
  %2898 = vmatpush2.msra.mxu0 0.0
  %2899 = vmatprep.subr.mxu0 0.0
  %2900 = vmatpush2.msra.mxu0 0.0
  %2901 = vmatprep.subr.mxu0 0.0
  %2902 = vmatpush2.msra.mxu0 0.0
  %2903 = vmatprep.subr.mxu0 0.0
  %2904 = vmatpush2.msra.mxu0 0.0
  %2905 = vmatprep.subr.mxu0 0.0
  %2906 = vmatpush2.msra.mxu0 0.0
  %2907 = vmatprep.mubr.f32.mxu0 0.0
  %2908 = vmatmul.mubr.f32.gmra.mxu0 %v2622
  %v2909 = vpop.f32.mrf.mxu0
  %v2910 = vadd.f32 %v2825, %v2909
  %v2911 = vpop.f32.mrf.mxu0
  %2912 = vmatprep.mubr.f32.mxu0 0.0
  %2913 = vmatmul.mubr.f32.gmra.mxu0 %v2627
  %v2914 = vpop.f32.mrf.mxu0
  %v2915 = vadd.f32 %v2830, %v2914
  %v2916 = vpop.f32.mrf.mxu0
  %2917 = vmatprep.mubr.f32.mxu0 0.0
  %2918 = vmatmul.mubr.f32.gmra.mxu0 %v2632
  %v2919 = vpop.f32.mrf.mxu0
  %v2920 = vadd.f32 %v2835, %v2919
  %v2921 = vpop.f32.mrf.mxu0
  %2922 = vmatprep.mubr.f32.mxu0 0.0
  %2923 = vmatmul.mubr.f32.gmra.mxu0 %v2637
  %v2924 = vpop.f32.mrf.mxu0
  %v2925 = vadd.f32 %v2840, %v2924
  %v2926 = vpop.f32.mrf.mxu0
  %2927 = vdwg.mxu0
  %s2928 = scalar_lea.vmem %s5, 256
  %v2929 = vld [vmem:[%s2928] sm:$0xff]
  %v2930 = vld [vmem:[%s2928 + $0x8] sm:$0xff]
  %v2931 = vld [vmem:[%s2928 + $0x10] sm:$0xff]
  %v2932 = vld [vmem:[%s2928 + $0x18] sm:$0xff]
  %v2933 = vld [vmem:[%s2928 + $0x20] sm:$0xff]
  %v2934 = vld [vmem:[%s2928 + $0x28] sm:$0xff]
  %v2935 = vld [vmem:[%s2928 + $0x30] sm:$0xff]
  %v2936 = vld [vmem:[%s2928 + $0x38] sm:$0xff]
  %v2937 = vld [vmem:[%s2928 + $0x40] sm:$0xff]
  %v2938 = vld [vmem:[%s2928 + $0x48] sm:$0xff]
  %v2939 = vld [vmem:[%s2928 + $0x50] sm:$0xff]
  %v2940 = vld [vmem:[%s2928 + $0x58] sm:$0xff]
  %v2941 = vld [vmem:[%s2928 + $0x60] sm:$0xff]
  %v2942 = vld [vmem:[%s2928 + $0x68] sm:$0xff]
  %v2943 = vld [vmem:[%s2928 + $0x70] sm:$0xff]
  %v2944 = vld [vmem:[%s2928 + $0x78] sm:$0xff]
  %2945 = vmatprep.subr.mxu0 0.0
  %2946 = vmatpush1.msra.mxu0 %v2944
  %2947 = vmatprep.subr.mxu0 0.0
  %2948 = vmatpush1.msra.mxu0 %v2943
  %2949 = vmatprep.subr.mxu0 0.0
  %2950 = vmatpush1.msra.mxu0 %v2942
  %2951 = vmatprep.subr.mxu0 0.0
  %2952 = vmatpush1.msra.mxu0 %v2941
  %2953 = vmatprep.subr.mxu0 0.0
  %2954 = vmatpush1.msra.mxu0 %v2940
  %2955 = vmatprep.subr.mxu0 0.0
  %2956 = vmatpush1.msra.mxu0 %v2939
  %2957 = vmatprep.subr.mxu0 0.0
  %2958 = vmatpush1.msra.mxu0 %v2938
  %2959 = vmatprep.subr.mxu0 0.0
  %2960 = vmatpush1.msra.mxu0 %v2937
  %2961 = vmatprep.subr.mxu0 0.0
  %2962 = vmatpush1.msra.mxu0 %v2936
  %2963 = vmatprep.subr.mxu0 0.0
  %2964 = vmatpush1.msra.mxu0 %v2935
  %2965 = vmatprep.subr.mxu0 0.0
  %2966 = vmatpush1.msra.mxu0 %v2934
  %2967 = vmatprep.subr.mxu0 0.0
  %2968 = vmatpush1.msra.mxu0 %v2933
  %2969 = vmatprep.subr.mxu0 0.0
  %2970 = vmatpush1.msra.mxu0 %v2932
  %2971 = vmatprep.subr.mxu0 0.0
  %2972 = vmatpush1.msra.mxu0 %v2931
  %2973 = vmatprep.subr.mxu0 0.0
  %2974 = vmatpush1.msra.mxu0 %v2930
  %2975 = vmatprep.subr.mxu0 0.0
  %2976 = vmatpush1.msra.mxu0 %v2929
  %2977 = vmatprep.subr.mxu0 0.0
  %2978 = vmatpush2.msra.mxu0 0.0
  %2979 = vmatprep.subr.mxu0 0.0
  %2980 = vmatpush2.msra.mxu0 0.0
  %2981 = vmatprep.subr.mxu0 0.0
  %2982 = vmatpush2.msra.mxu0 0.0
  %2983 = vmatprep.subr.mxu0 0.0
  %2984 = vmatpush2.msra.mxu0 0.0
  %2985 = vmatprep.subr.mxu0 0.0
  %2986 = vmatpush2.msra.mxu0 0.0
  %2987 = vmatprep.subr.mxu0 0.0
  %2988 = vmatpush2.msra.mxu0 0.0
  %2989 = vmatprep.subr.mxu0 0.0
  %2990 = vmatpush2.msra.mxu0 0.0
  %2991 = vmatprep.subr.mxu0 0.0
  %2992 = vmatpush2.msra.mxu0 0.0
  %2993 = vmatprep.subr.mxu0 0.0
  %2994 = vmatpush2.msra.mxu0 0.0
  %2995 = vmatprep.subr.mxu0 0.0
  %2996 = vmatpush2.msra.mxu0 0.0
  %2997 = vmatprep.subr.mxu0 0.0
  %2998 = vmatpush2.msra.mxu0 0.0
  %2999 = vmatprep.subr.mxu0 0.0
  %3000 = vmatpush2.msra.mxu0 0.0
  %3001 = vmatprep.subr.mxu0 0.0
  %3002 = vmatpush2.msra.mxu0 0.0
  %3003 = vmatprep.subr.mxu0 0.0
  %3004 = vmatpush2.msra.mxu0 0.0
  %3005 = vmatprep.subr.mxu0 0.0
  %3006 = vmatpush2.msra.mxu0 0.0
  %3007 = vmatprep.subr.mxu0 0.0
  %3008 = vmatpush2.msra.mxu0 0.0
  %3009 = vmatprep.mubr.f32.mxu0 0.0
  %3010 = vmatmul.mubr.f32.gmra.mxu0 %v2707
  %v3011 = vpop.f32.mrf.mxu0
  %v3012 = vadd.f32 0.0, %v3011
  %v3013 = vpop.f32.mrf.mxu0
  %3014 = vmatprep.mubr.f32.mxu0 0.0
  %3015 = vmatmul.mubr.f32.gmra.mxu0 %v2712
  %v3016 = vpop.f32.mrf.mxu0
  %v3017 = vadd.f32 0.0, %v3016
  %v3018 = vpop.f32.mrf.mxu0
  %3019 = vmatprep.mubr.f32.mxu0 0.0
  %3020 = vmatmul.mubr.f32.gmra.mxu0 %v2717
  %v3021 = vpop.f32.mrf.mxu0
  %v3022 = vadd.f32 0.0, %v3021
  %v3023 = vpop.f32.mrf.mxu0
  %3024 = vmatprep.mubr.f32.mxu0 0.0
  %3025 = vmatmul.mubr.f32.gmra.mxu0 %v2722
  %v3026 = vpop.f32.mrf.mxu0
  %v3027 = vadd.f32 0.0, %v3026
  %v3028 = vpop.f32.mrf.mxu0
  %3029 = vdwg.mxu0
  %v3030 = vadd.f32 %v2910, %v3012
  %v3031 = vadd.f32 %v2915, %v3017
  %v3032 = vadd.f32 %v2920, %v3022
  %v3033 = vadd.f32 %v2925, %v3027
  %3034 = vmatprep.subr.mxu0 0.0
  %3035 = vmatpush1.msra.mxu0 %v158
  %3036 = vmatprep.subr.mxu0 0.0
  %3037 = vmatpush1.msra.mxu0 %v157
  %3038 = vmatprep.subr.mxu0 0.0
  %3039 = vmatpush1.msra.mxu0 %v156
  %3040 = vmatprep.subr.mxu0 0.0
  %3041 = vmatpush1.msra.mxu0 %v155
  %3042 = vmatprep.subr.mxu0 0.0
  %3043 = vmatpush1.msra.mxu0 %v154
  %3044 = vmatprep.subr.mxu0 0.0
  %3045 = vmatpush1.msra.mxu0 %v153
  %3046 = vmatprep.subr.mxu0 0.0
  %3047 = vmatpush1.msra.mxu0 %v152
  %3048 = vmatprep.subr.mxu0 0.0
  %3049 = vmatpush1.msra.mxu0 %v151
  %3050 = vmatprep.subr.mxu0 0.0
  %3051 = vmatpush1.msra.mxu0 %v150
  %3052 = vmatprep.subr.mxu0 0.0
  %3053 = vmatpush1.msra.mxu0 %v149
  %3054 = vmatprep.subr.mxu0 0.0
  %3055 = vmatpush1.msra.mxu0 %v148
  %3056 = vmatprep.subr.mxu0 0.0
  %3057 = vmatpush1.msra.mxu0 %v147
  %3058 = vmatprep.subr.mxu0 0.0
  %3059 = vmatpush1.msra.mxu0 %v146
  %3060 = vmatprep.subr.mxu0 0.0
  %3061 = vmatpush1.msra.mxu0 %v145
  %3062 = vmatprep.subr.mxu0 0.0
  %3063 = vmatpush1.msra.mxu0 %v144
  %3064 = vmatprep.subr.mxu0 0.0
  %3065 = vmatpush1.msra.mxu0 %v143
  %3066 = vmatprep.subr.mxu0 0.0
  %3067 = vmatpush2.msra.mxu0 0.0
  %3068 = vmatprep.subr.mxu0 0.0
  %3069 = vmatpush2.msra.mxu0 0.0
  %3070 = vmatprep.subr.mxu0 0.0
  %3071 = vmatpush2.msra.mxu0 0.0
  %3072 = vmatprep.subr.mxu0 0.0
  %3073 = vmatpush2.msra.mxu0 0.0
  %3074 = vmatprep.subr.mxu0 0.0
  %3075 = vmatpush2.msra.mxu0 0.0
  %3076 = vmatprep.subr.mxu0 0.0
  %3077 = vmatpush2.msra.mxu0 0.0
  %3078 = vmatprep.subr.mxu0 0.0
  %3079 = vmatpush2.msra.mxu0 0.0
  %3080 = vmatprep.subr.mxu0 0.0
  %3081 = vmatpush2.msra.mxu0 0.0
  %3082 = vmatprep.subr.mxu0 0.0
  %3083 = vmatpush2.msra.mxu0 0.0
  %3084 = vmatprep.subr.mxu0 0.0
  %3085 = vmatpush2.msra.mxu0 0.0
  %3086 = vmatprep.subr.mxu0 0.0
  %3087 = vmatpush2.msra.mxu0 0.0
  %3088 = vmatprep.subr.mxu0 0.0
  %3089 = vmatpush2.msra.mxu0 0.0
  %3090 = vmatprep.subr.mxu0 0.0
  %3091 = vmatpush2.msra.mxu0 0.0
  %3092 = vmatprep.subr.mxu0 0.0
  %3093 = vmatpush2.msra.mxu0 0.0
  %3094 = vmatprep.subr.mxu0 0.0
  %3095 = vmatpush2.msra.mxu0 0.0
  %3096 = vmatprep.subr.mxu0 0.0
  %3097 = vmatpush2.msra.mxu0 0.0
  %3098 = vmatprep.mubr.f32.mxu0 0.0
  %3099 = vmatmul.mubr.f32.gmra.mxu0 %v3030
  %v3100 = vpop.f32.mrf.mxu0
  %v3101 = vadd.f32 0.0, %v3100
  %v3102 = vpop.f32.mrf.mxu0
  %3103 = vmatprep.mubr.f32.mxu0 0.0
  %3104 = vmatmul.mubr.f32.gmra.mxu0 %v3031
  %v3105 = vpop.f32.mrf.mxu0
  %v3106 = vadd.f32 0.0, %v3105
  %v3107 = vpop.f32.mrf.mxu0
  %3108 = vmatprep.mubr.f32.mxu0 0.0
  %3109 = vmatmul.mubr.f32.gmra.mxu0 %v3032
  %v3110 = vpop.f32.mrf.mxu0
  %v3111 = vadd.f32 0.0, %v3110
  %v3112 = vpop.f32.mrf.mxu0
  %3113 = vmatprep.mubr.f32.mxu0 0.0
  %3114 = vmatmul.mubr.f32.gmra.mxu0 %v3033
  %v3115 = vpop.f32.mrf.mxu0
  %v3116 = vadd.f32 0.0, %v3115
  %v3117 = vpop.f32.mrf.mxu0
  %3118 = vdwg.mxu0
  %v3119 = vmul.f32 %v3030, %v3030
  %v3120 = vmul.f32 %v3031, %v3031
  %v3121 = vmul.f32 %v3032, %v3032
  %v3122 = vmul.f32 %v3033, %v3033
  %3123 = vmatprep.subr.mxu0 0.0
  %3124 = vmatpush1.msra.mxu0 %v158
  %3125 = vmatprep.subr.mxu0 0.0
  %3126 = vmatpush1.msra.mxu0 %v157
  %3127 = vmatprep.subr.mxu0 0.0
  %3128 = vmatpush1.msra.mxu0 %v156
  %3129 = vmatprep.subr.mxu0 0.0
  %3130 = vmatpush1.msra.mxu0 %v155
  %3131 = vmatprep.subr.mxu0 0.0
  %3132 = vmatpush1.msra.mxu0 %v154
  %3133 = vmatprep.subr.mxu0 0.0
  %3134 = vmatpush1.msra.mxu0 %v153
  %3135 = vmatprep.subr.mxu0 0.0
  %3136 = vmatpush1.msra.mxu0 %v152
  %3137 = vmatprep.subr.mxu0 0.0
  %3138 = vmatpush1.msra.mxu0 %v151
  %3139 = vmatprep.subr.mxu0 0.0
  %3140 = vmatpush1.msra.mxu0 %v150
  %3141 = vmatprep.subr.mxu0 0.0
  %3142 = vmatpush1.msra.mxu0 %v149
  %3143 = vmatprep.subr.mxu0 0.0
  %3144 = vmatpush1.msra.mxu0 %v148
  %3145 = vmatprep.subr.mxu0 0.0
  %3146 = vmatpush1.msra.mxu0 %v147
  %3147 = vmatprep.subr.mxu0 0.0
  %3148 = vmatpush1.msra.mxu0 %v146
  %3149 = vmatprep.subr.mxu0 0.0
  %3150 = vmatpush1.msra.mxu0 %v145
  %3151 = vmatprep.subr.mxu0 0.0
  %3152 = vmatpush1.msra.mxu0 %v144
  %3153 = vmatprep.subr.mxu0 0.0
  %3154 = vmatpush1.msra.mxu0 %v143
  %3155 = vmatprep.subr.mxu0 0.0
  %3156 = vmatpush2.msra.mxu0 0.0
  %3157 = vmatprep.subr.mxu0 0.0
  %3158 = vmatpush2.msra.mxu0 0.0
  %3159 = vmatprep.subr.mxu0 0.0
  %3160 = vmatpush2.msra.mxu0 0.0
  %3161 = vmatprep.subr.mxu0 0.0
  %3162 = vmatpush2.msra.mxu0 0.0
  %3163 = vmatprep.subr.mxu0 0.0
  %3164 = vmatpush2.msra.mxu0 0.0
  %3165 = vmatprep.subr.mxu0 0.0
  %3166 = vmatpush2.msra.mxu0 0.0
  %3167 = vmatprep.subr.mxu0 0.0
  %3168 = vmatpush2.msra.mxu0 0.0
  %3169 = vmatprep.subr.mxu0 0.0
  %3170 = vmatpush2.msra.mxu0 0.0
  %3171 = vmatprep.subr.mxu0 0.0
  %3172 = vmatpush2.msra.mxu0 0.0
  %3173 = vmatprep.subr.mxu0 0.0
  %3174 = vmatpush2.msra.mxu0 0.0
  %3175 = vmatprep.subr.mxu0 0.0
  %3176 = vmatpush2.msra.mxu0 0.0
  %3177 = vmatprep.subr.mxu0 0.0
  %3178 = vmatpush2.msra.mxu0 0.0
  %3179 = vmatprep.subr.mxu0 0.0
  %3180 = vmatpush2.msra.mxu0 0.0
  %3181 = vmatprep.subr.mxu0 0.0
  %3182 = vmatpush2.msra.mxu0 0.0
  %3183 = vmatprep.subr.mxu0 0.0
  %3184 = vmatpush2.msra.mxu0 0.0
  %3185 = vmatprep.subr.mxu0 0.0
  %3186 = vmatpush2.msra.mxu0 0.0
  %3187 = vmatprep.mubr.f32.mxu0 0.0
  %3188 = vmatmul.mubr.f32.gmra.mxu0 %v3119
  %v3189 = vpop.f32.mrf.mxu0
  %v3190 = vadd.f32 0.0, %v3189
  %v3191 = vpop.f32.mrf.mxu0
  %3192 = vmatprep.mubr.f32.mxu0 0.0
  %3193 = vmatmul.mubr.f32.gmra.mxu0 %v3120
  %v3194 = vpop.f32.mrf.mxu0
  %v3195 = vadd.f32 0.0, %v3194
  %v3196 = vpop.f32.mrf.mxu0
  %3197 = vmatprep.mubr.f32.mxu0 0.0
  %3198 = vmatmul.mubr.f32.gmra.mxu0 %v3121
  %v3199 = vpop.f32.mrf.mxu0
  %v3200 = vadd.f32 0.0, %v3199
  %v3201 = vpop.f32.mrf.mxu0
  %3202 = vmatprep.mubr.f32.mxu0 0.0
  %3203 = vmatmul.mubr.f32.gmra.mxu0 %v3122
  %v3204 = vpop.f32.mrf.mxu0
  %v3205 = vadd.f32 0.0, %v3204
  %v3206 = vpop.f32.mrf.mxu0
  %3207 = vdwg.mxu0
  %v3208 = vadd.f32 %v3101, %v3106
  %v3209 = vadd.f32 %v3208, %v3111
  %v3210 = vadd.f32 %v3209, %v3116
  %v3211 = vrot.slane %v3210, 4
  %v3212 = vadd.f32 %v3210, %v3211
  %v3213 = vrot.slane %v3212, 2
  %v3214 = vadd.f32 %v3212, %v3213
  %v3215 = vrot.slane %v3214, 1
  %v3216 = vadd.f32 %v3214, %v3215
  %v3217 = vmul.f32 %v3216, 0.001953125
  %v3218 = vadd.f32 %v3190, %v3195
  %v3219 = vadd.f32 %v3218, %v3200
  %v3220 = vadd.f32 %v3219, %v3205
  %v3221 = vrot.slane %v3220, 4
  %v3222 = vadd.f32 %v3220, %v3221
  %v3223 = vrot.slane %v3222, 2
  %v3224 = vadd.f32 %v3222, %v3223
  %v3225 = vrot.slane %v3224, 1
  %v3226 = vadd.f32 %v3224, %v3225
  %v3227 = vmul.f32 %v3226, 0.001953125
  %v3228 = vmul.f32 %v3217, %v3217
  %v3229 = vsub.f32 %v3227, %v3228
  %v3230 = vmax.f32 %v3229, 0.0
  %s3231 = scalar_lea.vmem %s9, 8
  %v3232 = vld [vmem:[%s3231] sm:$0x1]
  %v3233 = vadd.f32 %v3230, 1e-05
  %v3234 = vrsqrt.pop %v3233
  %v3235 = vmul.f32 %v3232, %v3234
  %v3236 = vld [vmem:[%s3231 + $0x1] sm:$0x1]
  %v3237 = vmul.f32 %v3217, %v3235
  %v3238 = vsub.f32 %v3236, %v3237
  %v3239 = vlaneseq
  %v3240 = vshrl.u32 %v3239, 7
  %v3241 = vsub.s32 0, %v3240
  %v3242 = vrot.slane %v3235, %v3241
  %v3243 = vmul.f32 %v3030, %v3242
  %v3244 = vmul.f32 %v3031, %v3242
  %v3245 = vmul.f32 %v3032, %v3242
  %v3246 = vmul.f32 %v3033, %v3242
  %v3247 = vlaneseq
  %v3248 = vshrl.u32 %v3247, 7
  %v3249 = vsub.s32 0, %v3248
  %v3250 = vrot.slane %v3238, %v3249
  %v3251 = vadd.f32 %v3243, %v3250
  %v3252 = vadd.f32 %v3244, %v3250
  %v3253 = vadd.f32 %v3245, %v3250
  %v3254 = vadd.f32 %v3246, %v3250
  %v3255 = vadd.f32 %v3251, %v1838
  %v3256 = vadd.f32 %v3252, %v1839
  %v3257 = vadd.f32 %v3253, %v1840
  %v3258 = vadd.f32 %v3254, %v1841
  %v3259 = vmax.f32 %v3255, 0.0
  %v3260 = vmax.f32 %v3256, 0.0
  %v3261 = vmax.f32 %v3257, 0.0
  %v3262 = vmax.f32 %v3258, 0.0
  %v3263 = vmul.f32 %v3259, %v1837
  %v3264 = vmul.f32 %v3260, %v1837
  %v3265 = vmul.f32 %v3261, %v1837
  %v3266 = vmul.f32 %v3262, %v1837
  %3267 = vst [vmem:[%s11] sm:$0xff] %v3263
  %3268 = vst [vmem:[%s11 + $0x8] sm:$0xff] %v3264
  %3269 = vst [vmem:[%s11 + $0x10] sm:$0xff] %v3265
  %3270 = vst [vmem:[%s11 + $0x18] sm:$0xff] %v3266
  // Predicated region
  $region46: #{l0layer_forward.3} parent=0 // pred_check
    _
  $region47: #{l0layer_forward.3} parent=0 // pred_check_branch
    %3272 = sbr.rel (0) target = $region49
  $region48: #{l0layer_forward.3} parent=0 // pred_region
    _
  $region49: #{l0layer_forward.3} parent=0 // pred_fallthru
    _
  // Predicated region
  $region50: #{l0layer_forward.3} parent=0 // pred_check
    _
  $region51: #{l0layer_forward.3} parent=0 // pred_check_branch
    %3274 = sbr.rel (0) target = $region53
  $region52: #{l0layer_forward.3} parent=0 // pred_region
    _
  $region53: #{l0layer_forward.3} parent=0 // pred_fallthru
    _

</llo_original>
